<compile_context>
chip_gen: v7x
topology: tpu7x:2x2x1
jax: 0.10.0
libtpu: 0.0.40
codegen_flags: <defaults>
</compile_context>

<pallas_src>
import functools

import jax
import jax.numpy as jnp
from jax.experimental import pallas as pl
from jax.experimental.pallas import tpu as pltpu

# Finite sentinel for empty buckets. NOTE(correctness): gathered buckets always
# contain at least the gathering token (phase 0 scatters every valid token before
# phase 1 gathers), so the sentinel never reaches any output value.
_NEG = -1e30

_VMEM_LIMIT = 64 * 1024 * 1024


def _round_up(x, m):
    return ((x + m - 1) // m) * m


# ----------------------------------------------------------------------------
# Kernel 1: fused fc_pos + ResnetBlockFC[0]   (grid over (B, T_tiles))
# ----------------------------------------------------------------------------
def _pos_block0_kernel(p_ref, wp_ref, bp_ref, w0_ref, b0_ref, w13_ref, b1_ref, o_ref):
    p = p_ref[0]                                                         # (Tt, 3)
    x = jnp.dot(p, wp_ref[...], preferred_element_type=jnp.float32) + bp_ref[...]   # (Tt, 2H)
    h = jnp.dot(jnp.maximum(x, 0.0), w0_ref[...],
                preferred_element_type=jnp.float32) + b0_ref[...]        # (Tt, H)
    # merged fc_1 + shortcut: [relu(h), x] @ [w1; ws]  (one 3H-wide MXU pass)
    big = jnp.concatenate([jnp.maximum(h, 0.0), x], axis=1)              # (Tt, 3H)
    o_ref[0] = (jnp.dot(big, w13_ref[...], preferred_element_type=jnp.float32)
                + b1_ref[...]).astype(o_ref.dtype)


def pos_block0(points, wp, bp, w0, b0, w13, b1, *, hidden_dim, tt):
    b, t_pad, d = points.shape
    pin = lambda bi, ti: (0, 0)
    return pl.pallas_call(
        _pos_block0_kernel,
        out_shape=jax.ShapeDtypeStruct((b, t_pad, hidden_dim), jnp.float32),
        grid=(b, t_pad // tt),
        in_specs=[
            pl.BlockSpec((1, tt, d), lambda bi, ti: (bi, ti, 0)),
            pl.BlockSpec(wp.shape, pin), pl.BlockSpec(bp.shape, pin),
            pl.BlockSpec(w0.shape, pin), pl.BlockSpec(b0.shape, pin),
            pl.BlockSpec(w13.shape, pin), pl.BlockSpec(b1.shape, pin),
        ],
        out_specs=pl.BlockSpec((1, tt, hidden_dim), lambda bi, ti: (bi, ti, 0)),
        compiler_params=pltpu.CompilerParams(
            dimension_semantics=("parallel", "parallel"),
            vmem_limit_bytes=_VMEM_LIMIT),
    )(points, wp, bp, w0, b0, w13, b1)


# ----------------------------------------------------------------------------
# Kernel 2: fused pool_local (scatter_max + gather) + ResnetBlockFC (+ fc_c)
#
#   grid = (B, 2, T_tiles);  phase axis: 0 = scatter_max, 1 = gather + resnet
#   indices (flattened (B,K,T_pad)) are scalar-prefetched into SMEM; the bucket
#   maxima (K*R2, H) live only in VMEM scratch (never written to HBM).
# ----------------------------------------------------------------------------
def _make_pool_block_kernel(n_keys, r2, t_total, t_pad, tt, has_fc_c):
    def kernel(idx_sref, net_ref, w0_ref, b0_ref, w13_ref, b1_ref, *rest):
        if has_fc_c:
            wc_ref, bc_ref, o_ref, acc_ref, pooled_ref = rest
        else:
            o_ref, acc_ref, pooled_ref = rest

        b = pl.program_id(0)
        ph = pl.program_id(1)
        ti = pl.program_id(2)
        t0 = ti * tt
        valid = jnp.minimum(tt, t_total - t0)          # skip padded tokens
        base_b = b * (n_keys * t_pad) + t0

        @pl.when((ph == 0) & (ti == 0))
        def _():
            acc_ref[...] = jnp.full(acc_ref.shape, _NEG, acc_ref.dtype)

        # ---- phase 0: per-token dynamic-row RMW scatter_max ----------------
        @pl.when(ph == 0)
        def _():
            def body(i, carry):
                row = net_ref[0, pl.ds(i, 1), :]                        # (1, H)
                for k in range(n_keys):
                    col = idx_sref[base_b + k * t_pad + i]
                    r = k * r2 + col
                    acc_ref[pl.ds(r, 1), :] = jnp.maximum(acc_ref[pl.ds(r, 1), :], row)
                return carry
            jax.lax.fori_loop(0, valid, body, 0)

        # ---- phase 1: gather pooled maxima + ResnetBlockFC ------------------
        @pl.when(ph == 1)
        def _():
            if t_pad != t_total:
                pooled_ref[...] = jnp.zeros(pooled_ref.shape, pooled_ref.dtype)

            def gbody(i, carry):
                col0 = idx_sref[base_b + i]
                s = acc_ref[pl.ds(col0, 1), :]                          # (1, H)
                for k in range(1, n_keys):
                    colk = idx_sref[base_b + k * t_pad + i]
                    s = s + acc_ref[pl.ds(k * r2 + colk, 1), :]
                pooled_ref[pl.ds(i, 1), :] = s
                return carry
            jax.lax.fori_loop(0, valid, gbody, 0)

            x_net = net_ref[0]                                          # (Tt, H)
            pooled = pooled_ref[...]                                    # (Tt, H)
            # ResnetBlockFC on x = [net, pooled] (concat fused in VMEM)
            a = jnp.concatenate([jnp.maximum(x_net, 0.0),
                                 jnp.maximum(pooled, 0.0)], axis=1)     # (Tt, 2H)
            hid = jnp.dot(a, w0_ref[...],
                          preferred_element_type=jnp.float32) + b0_ref[...]
            big = jnp.concatenate([jnp.maximum(hid, 0.0), x_net, pooled], axis=1)  # (Tt, 3H)
            out = jnp.dot(big, w13_ref[...],
                          preferred_element_type=jnp.float32) + b1_ref[...]
            if has_fc_c:
                out = jnp.dot(out, wc_ref[...],
                              preferred_element_type=jnp.float32) + bc_ref[...]
            o_ref[0] = out.astype(o_ref.dtype)

    return kernel


def pool_block_fused(idx_flat, net, w0, b0, w13, b1, wc=None, bc=None, *,
                     n_keys, r2, t_total, tt):
    b, t_pad, h = net.shape
    has_fc_c = wc is not None
    out_dim = wc.shape[1] if has_fc_c else h
    n_t = t_pad // tt
    kernel = _make_pool_block_kernel(n_keys, r2, t_total, t_pad, tt, has_fc_c)

    pin = lambda bi, ph, ti, idx: (0, 0)
    in_specs = [
        pl.BlockSpec((1, tt, h), lambda bi, ph, ti, idx: (bi, ti, 0)),
        pl.BlockSpec(w0.shape, pin), pl.BlockSpec(b0.shape, pin),
        pl.BlockSpec(w13.shape, pin), pl.BlockSpec(b1.shape, pin),
    ]
    args = [idx_flat, net, w0, b0, w13, b1]
    if has_fc_c:
        in_specs += [pl.BlockSpec(wc.shape, pin), pl.BlockSpec(bc.shape, pin)]
        args += [wc, bc]

    return pl.pallas_call(
        kernel,
        out_shape=jax.ShapeDtypeStruct((b, t_pad, out_dim), jnp.float32),
        grid_spec=pltpu.PrefetchScalarGridSpec(
            num_scalar_prefetch=1,
            grid=(b, 2, n_t),
            in_specs=in_specs,
            out_specs=pl.BlockSpec((1, tt, out_dim),
                                   lambda bi, ph, ti, idx: (bi, ti, 0)),
            scratch_shapes=[pltpu.VMEM((n_keys * r2, h), jnp.float32),   # bucket maxima
                            pltpu.VMEM((tt, h), jnp.float32)],           # pooled tile
        ),
        compiler_params=pltpu.CompilerParams(
            dimension_semantics=("parallel", "arbitrary", "arbitrary"),
            vmem_limit_bytes=_VMEM_LIMIT),
    )(*args)


# ----------------------------------------------------------------------------
# Kernel 3: scatter_mean of c into R2 plane buckets (generate_plane_features).
#   grid = (B, K_planes, T_tiles); plane axis is a second parallel axis.
#   Counts are folded into the one-hot matmul (appended ones column); output is
#   lane-dense (B, K, C, R2).
# ----------------------------------------------------------------------------
def _scatter_mean_kernel(idx_ref, c_ref, out_ref, acc_ref, *, c_dim):
    kk = pl.program_id(1)
    ti = pl.program_id(2)

    @pl.when(ti == 0)
    def _():
        acc_ref[...] = jnp.zeros(acc_ref.shape, acc_ref.dtype)

    c = c_ref[0]                                                        # (Tt, C)
    tt = c.shape[0]
    r2 = acc_ref.shape[0]
    ones = jnp.ones((tt, 1), jnp.float32)
    cpad = jnp.concatenate([c, ones], axis=1)                           # (Tt, C+1)
    idx_row = idx_ref[0, pl.ds(kk, 1), :]                               # (1, Tt)
    row_ids = jax.lax.broadcasted_iota(jnp.int32, (r2, tt), 0)
    oh = (row_ids == idx_row).astype(jnp.float32)                       # (R2, Tt); idx=-1 -> all zero
    acc_ref[...] += jnp.dot(oh, cpad, preferred_element_type=jnp.float32)  # sums | counts

    @pl.when(ti == pl.num_programs(2) - 1)
    def _():
        acc = acc_ref[...]
        mean = acc[:, :c_dim] / jnp.maximum(acc[:, c_dim:c_dim + 1], 1.0)   # (R2, C)
        out_ref[0, 0] = jnp.transpose(mean, (1, 0)).astype(out_ref.dtype)   # (C, R2) lane-dense


def scatter_mean_planes(idx_bkt, c, reso_plane, *, tt_s):
    # idx_bkt: (B, K, T_pad) int32 in [0, reso^2) or -1 for padded tokens; c: (B, T_pad, C)
    b, k, t_pad = idx_bkt.shape
    cdim = c.shape[2]
    r2 = reso_plane * reso_plane
    kernel = functools.partial(_scatter_mean_kernel, c_dim=cdim)
    return pl.pallas_call(
        kernel,
        out_shape=jax.ShapeDtypeStruct((b, k, cdim, r2), jnp.float32),
        grid=(b, k, t_pad // tt_s),
        in_specs=[
            pl.BlockSpec((1, k, tt_s), lambda bi, ki, ti: (bi, 0, ti)),
            pl.BlockSpec((1, tt_s, cdim), lambda bi, ki, ti: (bi, ti, 0)),
        ],
        out_specs=pl.BlockSpec((1, 1, cdim, r2), lambda bi, ki, ti: (bi, ki, 0, 0)),
        scratch_shapes=[pltpu.VMEM((r2, cdim + 1), jnp.float32)],
        compiler_params=pltpu.CompilerParams(
            dimension_semantics=("parallel", "parallel", "arbitrary"),
            vmem_limit_bytes=_VMEM_LIMIT),
    )(idx_bkt, c)


# ----------------------------------------------------------------------------
# Coordinate -> plane-bucket index (JAX glue; matches normalize_coordinate +
# coordinate2index of the PyTorch module)
# ----------------------------------------------------------------------------
def _normalize_coordinate(p, padding, plane):
    if plane == "xz":
        xy = jnp.stack([p[..., 0], p[..., 2]], axis=-1)
    elif plane == "xy":
        xy = jnp.stack([p[..., 0], p[..., 1]], axis=-1)
    else:  # 'yz'
        xy = jnp.stack([p[..., 1], p[..., 2]], axis=-1)
    xy = xy / (1.0 + padding + 1e-5) + 0.5
    return jnp.clip(xy, 0.0, 1.0 - 1e-6)


def _coordinate2index(xy, reso):
    x = jnp.clip(jnp.floor(xy * reso).astype(jnp.int32), 0, reso - 1)
    return x[..., 0] + reso * x[..., 1]                                  # (B, T)


# ----------------------------------------------------------------------------
# Parameters (deterministic synthetic init; shapes follow the module __init__,
# with the merged fc_1+shortcut weight [w1; ws] precomputed per block)
# ----------------------------------------------------------------------------
def _init_linear(key, fan_in, fan_out, scale=0.1):
    kw, kb = jax.random.split(key)
    w = scale * jax.random.normal(kw, (fan_in, fan_out), jnp.float32)
    b = scale * jax.random.normal(kb, (1, fan_out), jnp.float32)
    return w, b


def init_params(key, dim, hidden_dim, c_dim, n_blocks):
    assert n_blocks >= 2
    keys = jax.random.split(key, 2 + 3 * n_blocks)
    params = {}
    params["fc_pos"] = _init_linear(keys[0], dim, 2 * hidden_dim)
    params["fc_c"] = _init_linear(keys[1], hidden_dim, c_dim)
    blocks = []
    for i in range(n_blocks):
        k0, k1, ks = keys[2 + 3 * i], keys[3 + 3 * i], keys[4 + 3 * i]
        w0, b0 = _init_linear(k0, 2 * hidden_dim, hidden_dim)            # fc_0
        w1, b1 = _init_linear(k1, hidden_dim, hidden_dim)                # fc_1
        ws = 0.1 * jax.random.normal(ks, (2 * hidden_dim, hidden_dim), jnp.float32)  # shortcut
        w13 = jnp.concatenate([w1, ws], axis=0)              # merged fc_1 + shortcut weights
        blocks.append((w0, b0, w13, b1))
    params["blocks"] = blocks
    return params


# ----------------------------------------------------------------------------
# Forward pass (mirrors VNNLocalPoolPointnet.forward, default config)
# ----------------------------------------------------------------------------
@functools.partial(jax.jit, static_argnames=("hidden_dim", "c_dim", "reso_plane",
                                             "plane_type", "padding", "scale"))
def vnn_local_pool_pointnet(params, points, *, hidden_dim, c_dim, reso_plane,
                            plane_type=("xz", "xy", "yz"), padding=0.1, scale=8.0):
    B, T, D = points.shape
    H = hidden_dim
    K = len(plane_type)
    R2 = reso_plane * reso_plane

    # Token tiling plan: pad T so every kernel tiles cleanly (no full-axis fallback).
    tt = 1024 if T >= 1024 else _round_up(T, 8)
    t_pad = _round_up(T, tt)
    tt_s = 256 if t_pad % 256 == 0 else t_pad                 # lane-aligned tile for scatter_mean

    # coord/index construction (glue); idx layout is (B, K, T) everywhere
    idx_list = [_coordinate2index(_normalize_coordinate(points / scale, padding, pk),
                                  reso_plane) for pk in plane_type]
    idx_bkt = jnp.stack(idx_list, axis=1).astype(jnp.int32)              # (B, K, T)
    if t_pad > T:
        pad_idx = jnp.full((B, K, t_pad - T), -1, jnp.int32)             # -1 => contributes nothing
        idx_bkt = jnp.concatenate([idx_bkt, pad_idx], axis=2)
        points_p = jnp.concatenate(
            [points, jnp.zeros((B, t_pad - T, D), points.dtype)], axis=1)
    else:
        points_p = points
    idx_flat = idx_bkt.reshape(B * K * t_pad)                            # SMEM-prefetched

    # TODO(synk): get_graph_feature_cross + VN conv_pos (kNN graph features, cross
    # products, VN leaky-relu, neighbor mean-pool) and the VN 3-vector channel
    # structure are simplified to a scalar-channel linear position encoding.
    wp, bp = params["fc_pos"]
    w0, b0, w13, b1 = params["blocks"][0]
    net = pos_block0(points_p, wp, bp, w0, b0, w13, b1,
                     hidden_dim=H, tt=tt)                                # (B, t_pad, H)

    # remaining blocks: fused scatter_max + gather + ResnetBlockFC per block
    n_blocks = len(params["blocks"])
    c = None
    for bi in range(1, n_blocks):
        w0, b0, w13, b1 = params["blocks"][bi]
        if bi == n_blocks - 1:
            wc, bc = params["fc_c"]                                      # fc_c fused in-kernel
            c = pool_block_fused(idx_flat, net, w0, b0, w13, b1, wc, bc,
                                 n_keys=K, r2=R2, t_total=T, tt=tt)      # (B, t_pad, c_dim)
        else:
            net = pool_block_fused(idx_flat, net, w0, b0, w13, b1,
                                   n_keys=K, r2=R2, t_total=T, tt=tt)    # (B, t_pad, H)

    # plane features: scatter_mean of c into reso^2 buckets, lane-dense (B, K, C, R2)
    planes = scatter_mean_planes(idx_bkt, c, reso_plane, tt_s=tt_s)
    fea = {}
    for ki, pk in enumerate(plane_type):
        fea[pk] = planes[:, ki].reshape(B, c_dim, reso_plane, reso_plane)
    # TODO(synk): 'grid' plane_type / UNet / UNet3D branches (disabled in the default
    # config) are not implemented; VN c_dim_flattened = 3*c_dim reduces to c_dim here.
    return fea


# ----------------------------------------------------------------------------
if __name__ == "__main__":
    B, T, D = 2, 16, 3
    hidden_dim, c_dim, n_blocks, reso_plane = 32, 32, 3, 4
    plane_type = ("xz", "xy", "yz")

    key = jax.random.PRNGKey(0)
    k_param, k_pts = jax.random.split(key, 2)

    params = init_params(k_param, D, hidden_dim, c_dim, n_blocks)
    points = jax.random.uniform(k_pts, (B, T, D), jnp.float32, minval=-4.0, maxval=4.0)

    fea = vnn_local_pool_pointnet(
        params, points,
        hidden_dim=hidden_dim, c_dim=c_dim,
        reso_plane=reso_plane, plane_type=plane_type,
    )
    fea = jax.tree_util.tree_map(lambda x: x.block_until_ready(), fea)

    for k in plane_type:
        assert fea[k].shape == (B, c_dim, reso_plane, reso_plane), fea[k].shape
        assert bool(jnp.all(jnp.isfinite(fea[k])))
    print("KERNEL_OK")
</pallas_src>

<mosaic_0001>
module attributes {stable_mosaic.version = 11 : i64} {
  func.func @_pos_block0_kernel(%arg0: i32, %arg1: i32, %arg2: memref<1x16x3xf32, #tpu.memory_space<vmem>>, %arg3: memref<3x64xf32, #tpu.memory_space<vmem>>, %arg4: memref<1x64xf32, #tpu.memory_space<vmem>>, %arg5: memref<64x32xf32, #tpu.memory_space<vmem>>, %arg6: memref<1x32xf32, #tpu.memory_space<vmem>>, %arg7: memref<96x32xf32, #tpu.memory_space<vmem>>, %arg8: memref<1x32xf32, #tpu.memory_space<vmem>>, %arg9: memref<1x16x32xf32, #tpu.memory_space<vmem>>) attributes {dimension_semantics = [#tpu.dimension_semantics<parallel>, #tpu.dimension_semantics<parallel>], iteration_bounds = array<i64: 2, 1>, scalar_prefetch = 0 : i64, scratch_operands = 0 : i64, tpu.core_type = #tpu.core_type<tc>, window_params = [{transform_indices = @transform_0, window_bounds = array<i64: 1, 16, 3>}, {pipeline_mode = #tpu.pipeline_mode<synchronous>, transform_indices = @transform_1, window_bounds = array<i64: 3, 64>}, {pipeline_mode = #tpu.pipeline_mode<synchronous>, transform_indices = @transform_2, window_bounds = array<i64: 1, 64>}, {pipeline_mode = #tpu.pipeline_mode<synchronous>, transform_indices = @transform_3, window_bounds = array<i64: 64, 32>}, {pipeline_mode = #tpu.pipeline_mode<synchronous>, transform_indices = @transform_4, window_bounds = array<i64: 1, 32>}, {pipeline_mode = #tpu.pipeline_mode<synchronous>, transform_indices = @transform_5, window_bounds = array<i64: 96, 32>}, {pipeline_mode = #tpu.pipeline_mode<synchronous>, transform_indices = @transform_6, window_bounds = array<i64: 1, 32>}, {transform_indices = @transform_7, window_bounds = array<i64: 1, 16, 32>}]} {
    %c0 = arith.constant 0 : index
    %c0_0 = arith.constant 0 : index
    %c0_1 = arith.constant 0 : index
    %0 = vector.load %arg2[%c0, %c0_0, %c0_1] : memref<1x16x3xf32, #tpu.memory_space<vmem>>, vector<1x16x3xf32>
    %1 = vector.shape_cast %0 : vector<1x16x3xf32> to vector<16x3xf32>
    %c0_2 = arith.constant 0 : index
    %c0_3 = arith.constant 0 : index
    %2 = vector.load %arg3[%c0_2, %c0_3] : memref<3x64xf32, #tpu.memory_space<vmem>>, vector<3x64xf32>
    %cst = arith.constant dense<0.000000e+00> : vector<16x64xf32>
    %3 = tpu.matmul %1, %2, %cst {dimension_numbers = #tpu.dot_dimension_numbers<[1], [0], [0], [1], [0, 0, 1, 1], [], []>} : vector<16x3xf32>, vector<3x64xf32>, vector<16x64xf32> -> vector<16x64xf32>
    %c0_4 = arith.constant 0 : index
    %c0_5 = arith.constant 0 : index
    %4 = vector.load %arg4[%c0_4, %c0_5] : memref<1x64xf32, #tpu.memory_space<vmem>>, vector<1x64xf32>
    %5 = vector.broadcast %4 : vector<1x64xf32> to vector<16x64xf32>
    %6 = arith.addf %3, %5 : vector<16x64xf32>
    %cst_6 = arith.constant 0.000000e+00 : f32
    %7 = vector.broadcast %cst_6 : f32 to vector<16x64xf32>
    %8 = arith.maximumf %6, %7 : vector<16x64xf32>
    %c0_7 = arith.constant 0 : index
    %c0_8 = arith.constant 0 : index
    %9 = vector.load %arg5[%c0_7, %c0_8] : memref<64x32xf32, #tpu.memory_space<vmem>>, vector<64x32xf32>
    %cst_9 = arith.constant dense<0.000000e+00> : vector<16x32xf32>
    %10 = tpu.matmul %8, %9, %cst_9 {dimension_numbers = #tpu.dot_dimension_numbers<[1], [0], [0], [1], [0, 0, 1, 1], [], []>} : vector<16x64xf32>, vector<64x32xf32>, vector<16x32xf32> -> vector<16x32xf32>
    %c0_10 = arith.constant 0 : index
    %c0_11 = arith.constant 0 : index
    %11 = vector.load %arg6[%c0_10, %c0_11] : memref<1x32xf32, #tpu.memory_space<vmem>>, vector<1x32xf32>
    %12 = vector.broadcast %11 : vector<1x32xf32> to vector<16x32xf32>
    %13 = arith.addf %10, %12 : vector<16x32xf32>
    %cst_12 = arith.constant 0.000000e+00 : f32
    %14 = vector.broadcast %cst_12 : f32 to vector<16x32xf32>
    %15 = arith.maximumf %13, %14 : vector<16x32xf32>
    %16 = tpu.concatenate %15, %6 in 1 : vector<16x32xf32>, vector<16x64xf32> -> vector<16x96xf32>
    %c0_13 = arith.constant 0 : index
    %c0_14 = arith.constant 0 : index
    %17 = vector.load %arg7[%c0_13, %c0_14] : memref<96x32xf32, #tpu.memory_space<vmem>>, vector<96x32xf32>
    %cst_15 = arith.constant dense<0.000000e+00> : vector<16x32xf32>
    %18 = tpu.matmul %16, %17, %cst_15 {dimension_numbers = #tpu.dot_dimension_numbers<[1], [0], [0], [1], [0, 0, 1, 1], [], []>} : vector<16x96xf32>, vector<96x32xf32>, vector<16x32xf32> -> vector<16x32xf32>
    %c0_16 = arith.constant 0 : index
    %c0_17 = arith.constant 0 : index
    %19 = vector.load %arg8[%c0_16, %c0_17] : memref<1x32xf32, #tpu.memory_space<vmem>>, vector<1x32xf32>
    %20 = vector.broadcast %19 : vector<1x32xf32> to vector<16x32xf32>
    %21 = arith.addf %18, %20 : vector<16x32xf32>
    %c0_18 = arith.constant 0 : index
    %c0_19 = arith.constant 0 : index
    %c0_20 = arith.constant 0 : index
    %22 = vector.load %arg9[%c0_18, %c0_19, %c0_20] : memref<1x16x32xf32, #tpu.memory_space<vmem>>, vector<1x16x32xf32>
    %23 = vector.shape_cast %22 : vector<1x16x32xf32> to vector<16x32xf32>
    %24 = vector.shape_cast %21 : vector<16x32xf32> to vector<1x16x32xf32>
    tpu.vector_store %arg9[%c0_18, %c0_19, %c0_20], %24 {strides = array<i32>} : memref<1x16x32xf32, #tpu.memory_space<vmem>>, vector<1x16x32xf32>,
    return
  }
  func.func @transform_0(%arg0: i32, %arg1: i32) -> (i32, i32, i32) {
    %c0_i32 = arith.constant 0 : i32
    %c0_i32_0 = arith.constant 0 : i32
    return %arg0, %arg1, %c0_i32 : i32, i32, i32
  }
  func.func @transform_1(%arg0: i32, %arg1: i32) -> (i32, i32) {
    %c0_i32 = arith.constant 0 : i32
    %c0_i32_0 = arith.constant 0 : i32
    %c0_i32_1 = arith.constant 0 : i32
    return %c0_i32, %c0_i32_0 : i32, i32
  }
  func.func @transform_2(%arg0: i32, %arg1: i32) -> (i32, i32) {
    %c0_i32 = arith.constant 0 : i32
    %c0_i32_0 = arith.constant 0 : i32
    %c0_i32_1 = arith.constant 0 : i32
    return %c0_i32, %c0_i32_0 : i32, i32
  }
  func.func @transform_3(%arg0: i32, %arg1: i32) -> (i32, i32) {
    %c0_i32 = arith.constant 0 : i32
    %c0_i32_0 = arith.constant 0 : i32
    %c0_i32_1 = arith.constant 0 : i32
    return %c0_i32, %c0_i32_0 : i32, i32
  }
  func.func @transform_4(%arg0: i32, %arg1: i32) -> (i32, i32) {
    %c0_i32 = arith.constant 0 : i32
    %c0_i32_0 = arith.constant 0 : i32
    %c0_i32_1 = arith.constant 0 : i32
    return %c0_i32, %c0_i32_0 : i32, i32
  }
  func.func @transform_5(%arg0: i32, %arg1: i32) -> (i32, i32) {
    %c0_i32 = arith.constant 0 : i32
    %c0_i32_0 = arith.constant 0 : i32
    %c0_i32_1 = arith.constant 0 : i32
    return %c0_i32, %c0_i32_0 : i32, i32
  }
  func.func @transform_6(%arg0: i32, %arg1: i32) -> (i32, i32) {
    %c0_i32 = arith.constant 0 : i32
    %c0_i32_0 = arith.constant 0 : i32
    %c0_i32_1 = arith.constant 0 : i32
    return %c0_i32, %c0_i32_0 : i32, i32
  }
  func.func @transform_7(%arg0: i32, %arg1: i32) -> (i32, i32, i32) {
    %c0_i32 = arith.constant 0 : i32
    %c0_i32_0 = arith.constant 0 : i32
    return %arg0, %arg1, %c0_i32 : i32, i32, i32
  }
}

module attributes {stable_mosaic.version = 11 : i64} {
  func.func @kernel(%arg0: i32, %arg1: i32, %arg2: i32, %arg3: memref<96xi32, #tpu.memory_space<smem>>, %arg4: memref<1x16x32xf32, #tpu.memory_space<vmem>>, %arg5: memref<64x32xf32, #tpu.memory_space<vmem>>, %arg6: memref<1x32xf32, #tpu.memory_space<vmem>>, %arg7: memref<96x32xf32, #tpu.memory_space<vmem>>, %arg8: memref<1x32xf32, #tpu.memory_space<vmem>>, %arg9: memref<1x16x32xf32, #tpu.memory_space<vmem>>, %arg10: memref<48x32xf32, #tpu.memory_space<vmem>>, %arg11: memref<16x32xf32, #tpu.memory_space<vmem>>) attributes {dimension_semantics = [#tpu.dimension_semantics<parallel>, #tpu.dimension_semantics<arbitrary>, #tpu.dimension_semantics<arbitrary>], iteration_bounds = array<i64: 2, 2, 1>, scalar_prefetch = 1 : i64, scratch_operands = 2 : i64, tpu.core_type = #tpu.core_type<tc>, window_params = [{transform_indices = @transform_0, window_bounds = array<i64: 1, 16, 32>}, {pipeline_mode = #tpu.pipeline_mode<synchronous>, transform_indices = @transform_1, window_bounds = array<i64: 64, 32>}, {pipeline_mode = #tpu.pipeline_mode<synchronous>, transform_indices = @transform_2, window_bounds = array<i64: 1, 32>}, {pipeline_mode = #tpu.pipeline_mode<synchronous>, transform_indices = @transform_3, window_bounds = array<i64: 96, 32>}, {pipeline_mode = #tpu.pipeline_mode<synchronous>, transform_indices = @transform_4, window_bounds = array<i64: 1, 32>}, {transform_indices = @transform_5, window_bounds = array<i64: 1, 16, 32>}]} {
    %c16_i32 = arith.constant 16 : i32
    %0 = arith.muli %arg2, %c16_i32 : i32
    %c16_i32_0 = arith.constant 16 : i32
    %1 = arith.subi %c16_i32_0, %0 : i32
    %c16_i32_1 = arith.constant 16 : i32
    %2 = arith.minsi %c16_i32_1, %1 : i32
    %c48_i32 = arith.constant 48 : i32
    %3 = arith.muli %arg0, %c48_i32 : i32
    %4 = arith.addi %3, %0 : i32
    %c0_i32 = arith.constant 0 : i32
    %5 = arith.cmpi eq, %arg1, %c0_i32 : i32
    %c0_i32_2 = arith.constant 0 : i32
    %6 = arith.cmpi eq, %arg2, %c0_i32_2 : i32
    %7 = arith.andi %5, %6 : i1
    %8 = arith.extui %7 : i1 to i32
    %c0_i32_3 = arith.constant 0 : i32
    %9 = arith.cmpi ne, %8, %c0_i32_3 : i32
    scf.if %9 {
      %cst = arith.constant -1.000000e+30 : f32
      %16 = vector.broadcast %cst : f32 to vector<48x32xf32>
      %c0 = arith.constant 0 : index
      %c0_7 = arith.constant 0 : index
      %17 = vector.load %arg10[%c0, %c0_7] : memref<48x32xf32, #tpu.memory_space<vmem>>, vector<48x32xf32>
      tpu.vector_store %arg10[%c0, %c0_7], %16 {strides = array<i32>} : memref<48x32xf32, #tpu.memory_space<vmem>>, vector<48x32xf32>,
    } else {
    }
    %c0_i32_4 = arith.constant 0 : i32
    %10 = arith.cmpi eq, %arg1, %c0_i32_4 : i32
    %11 = arith.extui %10 : i1 to i32
    %c0_i32_5 = arith.constant 0 : i32
    %12 = arith.cmpi ne, %11, %c0_i32_5 : i32
    scf.if %12 {
      %c0_i32_7 = arith.constant 0 : i32
      %c0_i32_8 = arith.constant 0 : i32
      %16 = arith.subi %2, %c0_i32_8 : i32
      %17 = arith.addi %c0_i32_8, %16 : i32
      %c1_i32_9 = arith.constant 1 : i32
      scf.for %arg12 = %c0_i32_8 to %17 step %c1_i32_9  : i32 {
        %c0 = arith.constant 0 : index
        %18 = arith.index_cast %arg12 : i32 to index
        %c0_10 = arith.constant 0 : index
        %19 = vector.load %arg4[%c0, %18, %c0_10] : memref<1x16x32xf32, #tpu.memory_space<vmem>>, vector<1x1x32xf32>
        %20 = vector.shape_cast %19 : vector<1x1x32xf32> to vector<1x32xf32>
        %c0_i32_11 = arith.constant 0 : i32
        %21 = arith.addi %4, %c0_i32_11 : i32
        %22 = arith.addi %21, %arg12 : i32
        %23 = arith.index_cast %22 : i32 to index
        %24 = memref.load %arg3[%23] : memref<96xi32, #tpu.memory_space<smem>>
        %c0_i32_12 = arith.constant 0 : i32
        %25 = arith.addi %c0_i32_12, %24 : i32
        %26 = arith.index_cast %25 : i32 to index
        %c0_13 = arith.constant 0 : index
        %27 = vector.load %arg10[%26, %c0_13] : memref<48x32xf32, #tpu.memory_space<vmem>>, vector<1x32xf32>
        %28 = arith.maximumf %27, %20 : vector<1x32xf32>
        %29 = arith.index_cast %25 : i32 to index
        %c0_14 = arith.constant 0 : index
        %30 = vector.load %arg10[%29, %c0_14] : memref<48x32xf32, #tpu.memory_space<vmem>>, vector<1x32xf32>
        tpu.vector_store %arg10[%29, %c0_14], %28 {strides = array<i32>} : memref<48x32xf32, #tpu.memory_space<vmem>>, vector<1x32xf32>,
        %c16_i32_15 = arith.constant 16 : i32
        %31 = arith.addi %4, %c16_i32_15 : i32
        %32 = arith.addi %31, %arg12 : i32
        %33 = arith.index_cast %32 : i32 to index
        %34 = memref.load %arg3[%33] : memref<96xi32, #tpu.memory_space<smem>>
        %c16_i32_16 = arith.constant 16 : i32
        %35 = arith.addi %c16_i32_16, %34 : i32
        %36 = arith.index_cast %35 : i32 to index
        %c0_17 = arith.constant 0 : index
        %37 = vector.load %arg10[%36, %c0_17] : memref<48x32xf32, #tpu.memory_space<vmem>>, vector<1x32xf32>
        %38 = arith.maximumf %37, %20 : vector<1x32xf32>
        %39 = arith.index_cast %35 : i32 to index
        %c0_18 = arith.constant 0 : index
        %40 = vector.load %arg10[%39, %c0_18] : memref<48x32xf32, #tpu.memory_space<vmem>>, vector<1x32xf32>
        tpu.vector_store %arg10[%39, %c0_18], %38 {strides = array<i32>} : memref<48x32xf32, #tpu.memory_space<vmem>>, vector<1x32xf32>,
        %c32_i32 = arith.constant 32 : i32
        %41 = arith.addi %4, %c32_i32 : i32
        %42 = arith.addi %41, %arg12 : i32
        %43 = arith.index_cast %42 : i32 to index
        %44 = memref.load %arg3[%43] : memref<96xi32, #tpu.memory_space<smem>>
        %c32_i32_19 = arith.constant 32 : i32
        %45 = arith.addi %c32_i32_19, %44 : i32
        %46 = arith.index_cast %45 : i32 to index
        %c0_20 = arith.constant 0 : index
        %47 = vector.load %arg10[%46, %c0_20] : memref<48x32xf32, #tpu.memory_space<vmem>>, vector<1x32xf32>
        %48 = arith.maximumf %47, %20 : vector<1x32xf32>
        %49 = arith.index_cast %45 : i32 to index
        %c0_21 = arith.constant 0 : index
        %50 = vector.load %arg10[%49, %c0_21] : memref<48x32xf32, #tpu.memory_space<vmem>>, vector<1x32xf32>
        tpu.vector_store %arg10[%49, %c0_21], %48 {strides = array<i32>} : memref<48x32xf32, #tpu.memory_space<vmem>>, vector<1x32xf32>,
      }
    } else {
    }
    %c1_i32 = arith.constant 1 : i32
    %13 = arith.cmpi eq, %arg1, %c1_i32 : i32
    %14 = arith.extui %13 : i1 to i32
    %c0_i32_6 = arith.constant 0 : i32
    %15 = arith.cmpi ne, %14, %c0_i32_6 : i32
    scf.if %15 {
      %c0_i32_7 = arith.constant 0 : i32
      %c0_i32_8 = arith.constant 0 : i32
      %16 = arith.subi %2, %c0_i32_8 : i32
      %17 = arith.addi %c0_i32_8, %16 : i32
      %c1_i32_9 = arith.constant 1 : i32
      scf.for %arg12 = %c0_i32_8 to %17 step %c1_i32_9  : i32 {
        %42 = arith.addi %4, %arg12 : i32
        %43 = arith.index_cast %42 : i32 to index
        %44 = memref.load %arg3[%43] : memref<96xi32, #tpu.memory_space<smem>>
        %45 = arith.index_cast %44 : i32 to index
        %c0_29 = arith.constant 0 : index
        %46 = vector.load %arg10[%45, %c0_29] : memref<48x32xf32, #tpu.memory_space<vmem>>, vector<1x32xf32>
        %c16_i32_30 = arith.constant 16 : i32
        %47 = arith.addi %4, %c16_i32_30 : i32
        %48 = arith.addi %47, %arg12 : i32
        %49 = arith.index_cast %48 : i32 to index
        %50 = memref.load %arg3[%49] : memref<96xi32, #tpu.memory_space<smem>>
        %c16_i32_31 = arith.constant 16 : i32
        %51 = arith.addi %c16_i32_31, %50 : i32
        %52 = arith.index_cast %51 : i32 to index
        %c0_32 = arith.constant 0 : index
        %53 = vector.load %arg10[%52, %c0_32] : memref<48x32xf32, #tpu.memory_space<vmem>>, vector<1x32xf32>
        %54 = arith.addf %46, %53 : vector<1x32xf32>
        %c32_i32 = arith.constant 32 : i32
        %55 = arith.addi %4, %c32_i32 : i32
        %56 = arith.addi %55, %arg12 : i32
        %57 = arith.index_cast %56 : i32 to index
        %58 = memref.load %arg3[%57] : memref<96xi32, #tpu.memory_space<smem>>
        %c32_i32_33 = arith.constant 32 : i32
        %59 = arith.addi %c32_i32_33, %58 : i32
        %60 = arith.index_cast %59 : i32 to index
        %c0_34 = arith.constant 0 : index
        %61 = vector.load %arg10[%60, %c0_34] : memref<48x32xf32, #tpu.memory_space<vmem>>, vector<1x32xf32>
        %62 = arith.addf %54, %61 : vector<1x32xf32>
        %63 = arith.index_cast %arg12 : i32 to index
        %c0_35 = arith.constant 0 : index
        %64 = vector.load %arg11[%63, %c0_35] : memref<16x32xf32, #tpu.memory_space<vmem>>, vector<1x32xf32>
        tpu.vector_store %arg11[%63, %c0_35], %62 {strides = array<i32>} : memref<16x32xf32, #tpu.memory_space<vmem>>, vector<1x32xf32>,
      }
      %c0 = arith.constant 0 : index
      %c0_10 = arith.constant 0 : index
      %c0_11 = arith.constant 0 : index
      %18 = vector.load %arg4[%c0, %c0_10, %c0_11] : memref<1x16x32xf32, #tpu.memory_space<vmem>>, vector<1x16x32xf32>
      %19 = vector.shape_cast %18 : vector<1x16x32xf32> to vector<16x32xf32>
      %c0_12 = arith.constant 0 : index
      %c0_13 = arith.constant 0 : index
      %20 = vector.load %arg11[%c0_12, %c0_13] : memref<16x32xf32, #tpu.memory_space<vmem>>, vector<16x32xf32>
      %cst = arith.constant 0.000000e+00 : f32
      %21 = vector.broadcast %cst : f32 to vector<16x32xf32>
      %22 = arith.maximumf %19, %21 : vector<16x32xf32>
      %cst_14 = arith.constant 0.000000e+00 : f32
      %23 = vector.broadcast %cst_14 : f32 to vector<16x32xf32>
      %24 = arith.maximumf %20, %23 : vector<16x32xf32>
      %25 = tpu.concatenate %22, %24 in 1 : vector<16x32xf32>, vector<16x32xf32> -> vector<16x64xf32>
      %c0_15 = arith.constant 0 : index
      %c0_16 = arith.constant 0 : index
      %26 = vector.load %arg5[%c0_15, %c0_16] : memref<64x32xf32, #tpu.memory_space<vmem>>, vector<64x32xf32>
      %cst_17 = arith.constant dense<0.000000e+00> : vector<16x32xf32>
      %27 = tpu.matmul %25, %26, %cst_17 {dimension_numbers = #tpu.dot_dimension_numbers<[1], [0], [0], [1], [0, 0, 1, 1], [], []>} : vector<16x64xf32>, vector<64x32xf32>, vector<16x32xf32> -> vector<16x32xf32>
      %c0_18 = arith.constant 0 : index
      %c0_19 = arith.constant 0 : index
      %28 = vector.load %arg6[%c0_18, %c0_19] : memref<1x32xf32, #tpu.memory_space<vmem>>, vector<1x32xf32>
      %29 = vector.broadcast %28 : vector<1x32xf32> to vector<16x32xf32>
      %30 = arith.addf %27, %29 : vector<16x32xf32>
      %cst_20 = arith.constant 0.000000e+00 : f32
      %31 = vector.broadcast %cst_20 : f32 to vector<16x32xf32>
      %32 = arith.maximumf %30, %31 : vector<16x32xf32>
      %33 = tpu.concatenate %32, %19, %20 in 1 : vector<16x32xf32>, vector<16x32xf32>, vector<16x32xf32> -> vector<16x96xf32>
      %c0_21 = arith.constant 0 : index
      %c0_22 = arith.constant 0 : index
      %34 = vector.load %arg7[%c0_21, %c0_22] : memref<96x32xf32, #tpu.memory_space<vmem>>, vector<96x32xf32>
      %cst_23 = arith.constant dense<0.000000e+00> : vector<16x32xf32>
      %35 = tpu.matmul %33, %34, %cst_23 {dimension_numbers = #tpu.dot_dimension_numbers<[1], [0], [0], [1], [0, 0, 1, 1], [], []>} : vector<16x96xf32>, vector<96x32xf32>, vector<16x32xf32> -> vector<16x32xf32>
      %c0_24 = arith.constant 0 : index
      %c0_25 = arith.constant 0 : index
      %36 = vector.load %arg8[%c0_24, %c0_25] : memref<1x32xf32, #tpu.memory_space<vmem>>, vector<1x32xf32>
      %37 = vector.broadcast %36 : vector<1x32xf32> to vector<16x32xf32>
      %38 = arith.addf %35, %37 : vector<16x32xf32>
      %c0_26 = arith.constant 0 : index
      %c0_27 = arith.constant 0 : index
      %c0_28 = arith.constant 0 : index
      %39 = vector.load %arg9[%c0_26, %c0_27, %c0_28] : memref<1x16x32xf32, #tpu.memory_space<vmem>>, vector<1x16x32xf32>
      %40 = vector.shape_cast %39 : vector<1x16x32xf32> to vector<16x32xf32>
      %41 = vector.shape_cast %38 : vector<16x32xf32> to vector<1x16x32xf32>
      tpu.vector_store %arg9[%c0_26, %c0_27, %c0_28], %41 {strides = array<i32>} : memref<1x16x32xf32, #tpu.memory_space<vmem>>, vector<1x16x32xf32>,
    } else {
    }
    return
  }
  func.func @transform_0(%arg0: i32, %arg1: i32, %arg2: i32, %arg3: memref<96xi32, #tpu.memory_space<smem>>) -> (i32, i32, i32) {
    %c0_i32 = arith.constant 0 : i32
    %c0_i32_0 = arith.constant 0 : i32
    return %arg0, %arg2, %c0_i32 : i32, i32, i32
  }
  func.func @transform_1(%arg0: i32, %arg1: i32, %arg2: i32, %arg3: memref<96xi32, #tpu.memory_space<smem>>) -> (i32, i32) {
    %c0_i32 = arith.constant 0 : i32
    %c0_i32_0 = arith.constant 0 : i32
    %c0_i32_1 = arith.constant 0 : i32
    return %c0_i32, %c0_i32_0 : i32, i32
  }
  func.func @transform_2(%arg0: i32, %arg1: i32, %arg2: i32, %arg3: memref<96xi32, #tpu.memory_space<smem>>) -> (i32, i32) {
    %c0_i32 = arith.constant 0 : i32
    %c0_i32_0 = arith.constant 0 : i32
    %c0_i32_1 = arith.constant 0 : i32
    return %c0_i32, %c0_i32_0 : i32, i32
  }
  func.func @transform_3(%arg0: i32, %arg1: i32, %arg2: i32, %arg3: memref<96xi32, #tpu.memory_space<smem>>) -> (i32, i32) {
    %c0_i32 = arith.constant 0 : i32
    %c0_i32_0 = arith.constant 0 : i32
    %c0_i32_1 = arith.constant 0 : i32
    return %c0_i32, %c0_i32_0 : i32, i32
  }
  func.func @transform_4(%arg0: i32, %arg1: i32, %arg2: i32, %arg3: memref<96xi32, #tpu.memory_space<smem>>) -> (i32, i32) {
    %c0_i32 = arith.constant 0 : i32
    %c0_i32_0 = arith.constant 0 : i32
    %c0_i32_1 = arith.constant 0 : i32
    return %c0_i32, %c0_i32_0 : i32, i32
  }
  func.func @transform_5(%arg0: i32, %arg1: i32, %arg2: i32, %arg3: memref<96xi32, #tpu.memory_space<smem>>) -> (i32, i32, i32) {
    %c0_i32 = arith.constant 0 : i32
    %c0_i32_0 = arith.constant 0 : i32
    return %arg0, %arg2, %c0_i32 : i32, i32, i32
  }
}

module attributes {stable_mosaic.version = 11 : i64} {
  func.func @kernel(%arg0: i32, %arg1: i32, %arg2: i32, %arg3: memref<96xi32, #tpu.memory_space<smem>>, %arg4: memref<1x16x32xf32, #tpu.memory_space<vmem>>, %arg5: memref<64x32xf32, #tpu.memory_space<vmem>>, %arg6: memref<1x32xf32, #tpu.memory_space<vmem>>, %arg7: memref<96x32xf32, #tpu.memory_space<vmem>>, %arg8: memref<1x32xf32, #tpu.memory_space<vmem>>, %arg9: memref<32x32xf32, #tpu.memory_space<vmem>>, %arg10: memref<1x32xf32, #tpu.memory_space<vmem>>, %arg11: memref<1x16x32xf32, #tpu.memory_space<vmem>>, %arg12: memref<48x32xf32, #tpu.memory_space<vmem>>, %arg13: memref<16x32xf32, #tpu.memory_space<vmem>>) attributes {dimension_semantics = [#tpu.dimension_semantics<parallel>, #tpu.dimension_semantics<arbitrary>, #tpu.dimension_semantics<arbitrary>], iteration_bounds = array<i64: 2, 2, 1>, scalar_prefetch = 1 : i64, scratch_operands = 2 : i64, tpu.core_type = #tpu.core_type<tc>, window_params = [{transform_indices = @transform_0, window_bounds = array<i64: 1, 16, 32>}, {pipeline_mode = #tpu.pipeline_mode<synchronous>, transform_indices = @transform_1, window_bounds = array<i64: 64, 32>}, {pipeline_mode = #tpu.pipeline_mode<synchronous>, transform_indices = @transform_2, window_bounds = array<i64: 1, 32>}, {pipeline_mode = #tpu.pipeline_mode<synchronous>, transform_indices = @transform_3, window_bounds = array<i64: 96, 32>}, {pipeline_mode = #tpu.pipeline_mode<synchronous>, transform_indices = @transform_4, window_bounds = array<i64: 1, 32>}, {pipeline_mode = #tpu.pipeline_mode<synchronous>, transform_indices = @transform_5, window_bounds = array<i64: 32, 32>}, {pipeline_mode = #tpu.pipeline_mode<synchronous>, transform_indices = @transform_6, window_bounds = array<i64: 1, 32>}, {transform_indices = @transform_7, window_bounds = array<i64: 1, 16, 32>}]} {
    %c16_i32 = arith.constant 16 : i32
    %0 = arith.muli %arg2, %c16_i32 : i32
    %c16_i32_0 = arith.constant 16 : i32
    %1 = arith.subi %c16_i32_0, %0 : i32
    %c16_i32_1 = arith.constant 16 : i32
    %2 = arith.minsi %c16_i32_1, %1 : i32
    %c48_i32 = arith.constant 48 : i32
    %3 = arith.muli %arg0, %c48_i32 : i32
    %4 = arith.addi %3, %0 : i32
    %c0_i32 = arith.constant 0 : i32
    %5 = arith.cmpi eq, %arg1, %c0_i32 : i32
    %c0_i32_2 = arith.constant 0 : i32
    %6 = arith.cmpi eq, %arg2, %c0_i32_2 : i32
    %7 = arith.andi %5, %6 : i1
    %8 = arith.extui %7 : i1 to i32
    %c0_i32_3 = arith.constant 0 : i32
    %9 = arith.cmpi ne, %8, %c0_i32_3 : i32
    scf.if %9 {
      %cst = arith.constant -1.000000e+30 : f32
      %16 = vector.broadcast %cst : f32 to vector<48x32xf32>
      %c0 = arith.constant 0 : index
      %c0_7 = arith.constant 0 : index
      %17 = vector.load %arg12[%c0, %c0_7] : memref<48x32xf32, #tpu.memory_space<vmem>>, vector<48x32xf32>
      tpu.vector_store %arg12[%c0, %c0_7], %16 {strides = array<i32>} : memref<48x32xf32, #tpu.memory_space<vmem>>, vector<48x32xf32>,
    } else {
    }
    %c0_i32_4 = arith.constant 0 : i32
    %10 = arith.cmpi eq, %arg1, %c0_i32_4 : i32
    %11 = arith.extui %10 : i1 to i32
    %c0_i32_5 = arith.constant 0 : i32
    %12 = arith.cmpi ne, %11, %c0_i32_5 : i32
    scf.if %12 {
      %c0_i32_7 = arith.constant 0 : i32
      %c0_i32_8 = arith.constant 0 : i32
      %16 = arith.subi %2, %c0_i32_8 : i32
      %17 = arith.addi %c0_i32_8, %16 : i32
      %c1_i32_9 = arith.constant 1 : i32
      scf.for %arg14 = %c0_i32_8 to %17 step %c1_i32_9  : i32 {
        %c0 = arith.constant 0 : index
        %18 = arith.index_cast %arg14 : i32 to index
        %c0_10 = arith.constant 0 : index
        %19 = vector.load %arg4[%c0, %18, %c0_10] : memref<1x16x32xf32, #tpu.memory_space<vmem>>, vector<1x1x32xf32>
        %20 = vector.shape_cast %19 : vector<1x1x32xf32> to vector<1x32xf32>
        %c0_i32_11 = arith.constant 0 : i32
        %21 = arith.addi %4, %c0_i32_11 : i32
        %22 = arith.addi %21, %arg14 : i32
        %23 = arith.index_cast %22 : i32 to index
        %24 = memref.load %arg3[%23] : memref<96xi32, #tpu.memory_space<smem>>
        %c0_i32_12 = arith.constant 0 : i32
        %25 = arith.addi %c0_i32_12, %24 : i32
        %26 = arith.index_cast %25 : i32 to index
        %c0_13 = arith.constant 0 : index
        %27 = vector.load %arg12[%26, %c0_13] : memref<48x32xf32, #tpu.memory_space<vmem>>, vector<1x32xf32>
        %28 = arith.maximumf %27, %20 : vector<1x32xf32>
        %29 = arith.index_cast %25 : i32 to index
        %c0_14 = arith.constant 0 : index
        %30 = vector.load %arg12[%29, %c0_14] : memref<48x32xf32, #tpu.memory_space<vmem>>, vector<1x32xf32>
        tpu.vector_store %arg12[%29, %c0_14], %28 {strides = array<i32>} : memref<48x32xf32, #tpu.memory_space<vmem>>, vector<1x32xf32>,
        %c16_i32_15 = arith.constant 16 : i32
        %31 = arith.addi %4, %c16_i32_15 : i32
        %32 = arith.addi %31, %arg14 : i32
        %33 = arith.index_cast %32 : i32 to index
        %34 = memref.load %arg3[%33] : memref<96xi32, #tpu.memory_space<smem>>
        %c16_i32_16 = arith.constant 16 : i32
        %35 = arith.addi %c16_i32_16, %34 : i32
        %36 = arith.index_cast %35 : i32 to index
        %c0_17 = arith.constant 0 : index
        %37 = vector.load %arg12[%36, %c0_17] : memref<48x32xf32, #tpu.memory_space<vmem>>, vector<1x32xf32>
        %38 = arith.maximumf %37, %20 : vector<1x32xf32>
        %39 = arith.index_cast %35 : i32 to index
        %c0_18 = arith.constant 0 : index
        %40 = vector.load %arg12[%39, %c0_18] : memref<48x32xf32, #tpu.memory_space<vmem>>, vector<1x32xf32>
        tpu.vector_store %arg12[%39, %c0_18], %38 {strides = array<i32>} : memref<48x32xf32, #tpu.memory_space<vmem>>, vector<1x32xf32>,
        %c32_i32 = arith.constant 32 : i32
        %41 = arith.addi %4, %c32_i32 : i32
        %42 = arith.addi %41, %arg14 : i32
        %43 = arith.index_cast %42 : i32 to index
        %44 = memref.load %arg3[%43] : memref<96xi32, #tpu.memory_space<smem>>
        %c32_i32_19 = arith.constant 32 : i32
        %45 = arith.addi %c32_i32_19, %44 : i32
        %46 = arith.index_cast %45 : i32 to index
        %c0_20 = arith.constant 0 : index
        %47 = vector.load %arg12[%46, %c0_20] : memref<48x32xf32, #tpu.memory_space<vmem>>, vector<1x32xf32>
        %48 = arith.maximumf %47, %20 : vector<1x32xf32>
        %49 = arith.index_cast %45 : i32 to index
        %c0_21 = arith.constant 0 : index
        %50 = vector.load %arg12[%49, %c0_21] : memref<48x32xf32, #tpu.memory_space<vmem>>, vector<1x32xf32>
        tpu.vector_store %arg12[%49, %c0_21], %48 {strides = array<i32>} : memref<48x32xf32, #tpu.memory_space<vmem>>, vector<1x32xf32>,
      }
    } else {
    }
    %c1_i32 = arith.constant 1 : i32
    %13 = arith.cmpi eq, %arg1, %c1_i32 : i32
    %14 = arith.extui %13 : i1 to i32
    %c0_i32_6 = arith.constant 0 : i32
    %15 = arith.cmpi ne, %14, %c0_i32_6 : i32
    scf.if %15 {
      %c0_i32_7 = arith.constant 0 : i32
      %c0_i32_8 = arith.constant 0 : i32
      %16 = arith.subi %2, %c0_i32_8 : i32
      %17 = arith.addi %c0_i32_8, %16 : i32
      %c1_i32_9 = arith.constant 1 : i32
      scf.for %arg14 = %c0_i32_8 to %17 step %c1_i32_9  : i32 {
        %47 = arith.addi %4, %arg14 : i32
        %48 = arith.index_cast %47 : i32 to index
        %49 = memref.load %arg3[%48] : memref<96xi32, #tpu.memory_space<smem>>
        %50 = arith.index_cast %49 : i32 to index
        %c0_34 = arith.constant 0 : index
        %51 = vector.load %arg12[%50, %c0_34] : memref<48x32xf32, #tpu.memory_space<vmem>>, vector<1x32xf32>
        %c16_i32_35 = arith.constant 16 : i32
        %52 = arith.addi %4, %c16_i32_35 : i32
        %53 = arith.addi %52, %arg14 : i32
        %54 = arith.index_cast %53 : i32 to index
        %55 = memref.load %arg3[%54] : memref<96xi32, #tpu.memory_space<smem>>
        %c16_i32_36 = arith.constant 16 : i32
        %56 = arith.addi %c16_i32_36, %55 : i32
        %57 = arith.index_cast %56 : i32 to index
        %c0_37 = arith.constant 0 : index
        %58 = vector.load %arg12[%57, %c0_37] : memref<48x32xf32, #tpu.memory_space<vmem>>, vector<1x32xf32>
        %59 = arith.addf %51, %58 : vector<1x32xf32>
        %c32_i32 = arith.constant 32 : i32
        %60 = arith.addi %4, %c32_i32 : i32
        %61 = arith.addi %60, %arg14 : i32
        %62 = arith.index_cast %61 : i32 to index
        %63 = memref.load %arg3[%62] : memref<96xi32, #tpu.memory_space<smem>>
        %c32_i32_38 = arith.constant 32 : i32
        %64 = arith.addi %c32_i32_38, %63 : i32
        %65 = arith.index_cast %64 : i32 to index
        %c0_39 = arith.constant 0 : index
        %66 = vector.load %arg12[%65, %c0_39] : memref<48x32xf32, #tpu.memory_space<vmem>>, vector<1x32xf32>
        %67 = arith.addf %59, %66 : vector<1x32xf32>
        %68 = arith.index_cast %arg14 : i32 to index
        %c0_40 = arith.constant 0 : index
        %69 = vector.load %arg13[%68, %c0_40] : memref<16x32xf32, #tpu.memory_space<vmem>>, vector<1x32xf32>
        tpu.vector_store %arg13[%68, %c0_40], %67 {strides = array<i32>} : memref<16x32xf32, #tpu.memory_space<vmem>>, vector<1x32xf32>,
      }
      %c0 = arith.constant 0 : index
      %c0_10 = arith.constant 0 : index
      %c0_11 = arith.constant 0 : index
      %18 = vector.load %arg4[%c0, %c0_10, %c0_11] : memref<1x16x32xf32, #tpu.memory_space<vmem>>, vector<1x16x32xf32>
      %19 = vector.shape_cast %18 : vector<1x16x32xf32> to vector<16x32xf32>
      %c0_12 = arith.constant 0 : index
      %c0_13 = arith.constant 0 : index
      %20 = vector.load %arg13[%c0_12, %c0_13] : memref<16x32xf32, #tpu.memory_space<vmem>>, vector<16x32xf32>
      %cst = arith.constant 0.000000e+00 : f32
      %21 = vector.broadcast %cst : f32 to vector<16x32xf32>
      %22 = arith.maximumf %19, %21 : vector<16x32xf32>
      %cst_14 = arith.constant 0.000000e+00 : f32
      %23 = vector.broadcast %cst_14 : f32 to vector<16x32xf32>
      %24 = arith.maximumf %20, %23 : vector<16x32xf32>
      %25 = tpu.concatenate %22, %24 in 1 : vector<16x32xf32>, vector<16x32xf32> -> vector<16x64xf32>
      %c0_15 = arith.constant 0 : index
      %c0_16 = arith.constant 0 : index
      %26 = vector.load %arg5[%c0_15, %c0_16] : memref<64x32xf32, #tpu.memory_space<vmem>>, vector<64x32xf32>
      %cst_17 = arith.constant dense<0.000000e+00> : vector<16x32xf32>
      %27 = tpu.matmul %25, %26, %cst_17 {dimension_numbers = #tpu.dot_dimension_numbers<[1], [0], [0], [1], [0, 0, 1, 1], [], []>} : vector<16x64xf32>, vector<64x32xf32>, vector<16x32xf32> -> vector<16x32xf32>
      %c0_18 = arith.constant 0 : index
      %c0_19 = arith.constant 0 : index
      %28 = vector.load %arg6[%c0_18, %c0_19] : memref<1x32xf32, #tpu.memory_space<vmem>>, vector<1x32xf32>
      %29 = vector.broadcast %28 : vector<1x32xf32> to vector<16x32xf32>
      %30 = arith.addf %27, %29 : vector<16x32xf32>
      %cst_20 = arith.constant 0.000000e+00 : f32
      %31 = vector.broadcast %cst_20 : f32 to vector<16x32xf32>
      %32 = arith.maximumf %30, %31 : vector<16x32xf32>
      %33 = tpu.concatenate %32, %19, %20 in 1 : vector<16x32xf32>, vector<16x32xf32>, vector<16x32xf32> -> vector<16x96xf32>
      %c0_21 = arith.constant 0 : index
      %c0_22 = arith.constant 0 : index
      %34 = vector.load %arg7[%c0_21, %c0_22] : memref<96x32xf32, #tpu.memory_space<vmem>>, vector<96x32xf32>
      %cst_23 = arith.constant dense<0.000000e+00> : vector<16x32xf32>
      %35 = tpu.matmul %33, %34, %cst_23 {dimension_numbers = #tpu.dot_dimension_numbers<[1], [0], [0], [1], [0, 0, 1, 1], [], []>} : vector<16x96xf32>, vector<96x32xf32>, vector<16x32xf32> -> vector<16x32xf32>
      %c0_24 = arith.constant 0 : index
      %c0_25 = arith.constant 0 : index
      %36 = vector.load %arg8[%c0_24, %c0_25] : memref<1x32xf32, #tpu.memory_space<vmem>>, vector<1x32xf32>
      %37 = vector.broadcast %36 : vector<1x32xf32> to vector<16x32xf32>
      %38 = arith.addf %35, %37 : vector<16x32xf32>
      %c0_26 = arith.constant 0 : index
      %c0_27 = arith.constant 0 : index
      %39 = vector.load %arg9[%c0_26, %c0_27] : memref<32x32xf32, #tpu.memory_space<vmem>>, vector<32x32xf32>
      %cst_28 = arith.constant dense<0.000000e+00> : vector<16x32xf32>
      %40 = tpu.matmul %38, %39, %cst_28 {dimension_numbers = #tpu.dot_dimension_numbers<[1], [0], [0], [1], [0, 0, 1, 1], [], []>} : vector<16x32xf32>, vector<32x32xf32>, vector<16x32xf32> -> vector<16x32xf32>
      %c0_29 = arith.constant 0 : index
      %c0_30 = arith.constant 0 : index
      %41 = vector.load %arg10[%c0_29, %c0_30] : memref<1x32xf32, #tpu.memory_space<vmem>>, vector<1x32xf32>
      %42 = vector.broadcast %41 : vector<1x32xf32> to vector<16x32xf32>
      %43 = arith.addf %40, %42 : vector<16x32xf32>
      %c0_31 = arith.constant 0 : index
      %c0_32 = arith.constant 0 : index
      %c0_33 = arith.constant 0 : index
      %44 = vector.load %arg11[%c0_31, %c0_32, %c0_33] : memref<1x16x32xf32, #tpu.memory_space<vmem>>, vector<1x16x32xf32>
      %45 = vector.shape_cast %44 : vector<1x16x32xf32> to vector<16x32xf32>
      %46 = vector.shape_cast %43 : vector<16x32xf32> to vector<1x16x32xf32>
      tpu.vector_store %arg11[%c0_31, %c0_32, %c0_33], %46 {strides = array<i32>} : memref<1x16x32xf32, #tpu.memory_space<vmem>>, vector<1x16x32xf32>,
    } else {
    }
    return
  }
  func.func @transform_0(%arg0: i32, %arg1: i32, %arg2: i32, %arg3: memref<96xi32, #tpu.memory_space<smem>>) -> (i32, i32, i32) {
    %c0_i32 = arith.constant 0 : i32
    %c0_i32_0 = arith.constant 0 : i32
    return %arg0, %arg2, %c0_i32 : i32, i32, i32
  }
  func.func @transform_1(%arg0: i32, %arg1: i32, %arg2: i32, %arg3: memref<96xi32, #tpu.memory_space<smem>>) -> (i32, i32) {
    %c0_i32 = arith.constant 0 : i32
    %c0_i32_0 = arith.constant 0 : i32
    %c0_i32_1 = arith.constant 0 : i32
    return %c0_i32, %c0_i32_0 : i32, i32
  }
  func.func @transform_2(%arg0: i32, %arg1: i32, %arg2: i32, %arg3: memref<96xi32, #tpu.memory_space<smem>>) -> (i32, i32) {
    %c0_i32 = arith.constant 0 : i32
    %c0_i32_0 = arith.constant 0 : i32
    %c0_i32_1 = arith.constant 0 : i32
    return %c0_i32, %c0_i32_0 : i32, i32
  }
  func.func @transform_3(%arg0: i32, %arg1: i32, %arg2: i32, %arg3: memref<96xi32, #tpu.memory_space<smem>>) -> (i32, i32) {
    %c0_i32 = arith.constant 0 : i32
    %c0_i32_0 = arith.constant 0 : i32
    %c0_i32_1 = arith.constant 0 : i32
    return %c0_i32, %c0_i32_0 : i32, i32
  }
  func.func @transform_4(%arg0: i32, %arg1: i32, %arg2: i32, %arg3: memref<96xi32, #tpu.memory_space<smem>>) -> (i32, i32) {
    %c0_i32 = arith.constant 0 : i32
    %c0_i32_0 = arith.constant 0 : i32
    %c0_i32_1 = arith.constant 0 : i32
    return %c0_i32, %c0_i32_0 : i32, i32
  }
  func.func @transform_5(%arg0: i32, %arg1: i32, %arg2: i32, %arg3: memref<96xi32, #tpu.memory_space<smem>>) -> (i32, i32) {
    %c0_i32 = arith.constant 0 : i32
    %c0_i32_0 = arith.constant 0 : i32
    %c0_i32_1 = arith.constant 0 : i32
    return %c0_i32, %c0_i32_0 : i32, i32
  }
  func.func @transform_6(%arg0: i32, %arg1: i32, %arg2: i32, %arg3: memref<96xi32, #tpu.memory_space<smem>>) -> (i32, i32) {
    %c0_i32 = arith.constant 0 : i32
    %c0_i32_0 = arith.constant 0 : i32
    %c0_i32_1 = arith.constant 0 : i32
    return %c0_i32, %c0_i32_0 : i32, i32
  }
  func.func @transform_7(%arg0: i32, %arg1: i32, %arg2: i32, %arg3: memref<96xi32, #tpu.memory_space<smem>>) -> (i32, i32, i32) {
    %c0_i32 = arith.constant 0 : i32
    %c0_i32_0 = arith.constant 0 : i32
    return %arg0, %arg2, %c0_i32 : i32, i32, i32
  }
}

module attributes {stable_mosaic.version = 11 : i64} {
  func.func @_scatter_mean_kernel(%arg0: i32, %arg1: i32, %arg2: i32, %arg3: memref<1x3x16xi32, #tpu.memory_space<vmem>>, %arg4: memref<1x16x32xf32, #tpu.memory_space<vmem>>, %arg5: memref<1x1x32x16xf32, #tpu.memory_space<vmem>>, %arg6: memref<16x33xf32, #tpu.memory_space<vmem>>) attributes {dimension_semantics = [#tpu.dimension_semantics<parallel>, #tpu.dimension_semantics<parallel>, #tpu.dimension_semantics<arbitrary>], iteration_bounds = array<i64: 2, 3, 1>, scalar_prefetch = 0 : i64, scratch_operands = 1 : i64, tpu.core_type = #tpu.core_type<tc>, window_params = [{transform_indices = @transform_0, window_bounds = array<i64: 1, 3, 16>}, {transform_indices = @transform_1, window_bounds = array<i64: 1, 16, 32>}, {transform_indices = @transform_2, window_bounds = array<i64: 1, 1, 32, 16>}]} {
    %c0_i32 = arith.constant 0 : i32
    %0 = arith.cmpi eq, %arg2, %c0_i32 : i32
    %1 = arith.extui %0 : i1 to i32
    %c0_i32_0 = arith.constant 0 : i32
    %2 = arith.cmpi ne, %1, %c0_i32_0 : i32
    scf.if %2 {
      %cst_12 = arith.constant 0.000000e+00 : f32
      %22 = vector.broadcast %cst_12 : f32 to vector<16x33xf32>
      %c0_13 = arith.constant 0 : index
      %c0_14 = arith.constant 0 : index
      %23 = vector.load %arg6[%c0_13, %c0_14] : memref<16x33xf32, #tpu.memory_space<vmem>>, vector<16x33xf32>
      tpu.vector_store %arg6[%c0_13, %c0_14], %22 {strides = array<i32>} : memref<16x33xf32, #tpu.memory_space<vmem>>, vector<16x33xf32>,
    } else {
    }
    %c0 = arith.constant 0 : index
    %c0_1 = arith.constant 0 : index
    %c0_2 = arith.constant 0 : index
    %3 = vector.load %arg4[%c0, %c0_1, %c0_2] : memref<1x16x32xf32, #tpu.memory_space<vmem>>, vector<1x16x32xf32>
    %4 = vector.shape_cast %3 : vector<1x16x32xf32> to vector<16x32xf32>
    %cst = arith.constant 1.000000e+00 : f32
    %5 = vector.broadcast %cst : f32 to vector<16x1xf32>
    %6 = tpu.concatenate %4, %5 in 1 : vector<16x32xf32>, vector<16x1xf32> -> vector<16x33xf32>
    %c0_3 = arith.constant 0 : index
    %7 = arith.index_cast %arg1 : i32 to index
    %c0_4 = arith.constant 0 : index
    %8 = vector.load %arg3[%c0_3, %7, %c0_4] : memref<1x3x16xi32, #tpu.memory_space<vmem>>, vector<1x1x16xi32>
    %9 = vector.shape_cast %8 : vector<1x1x16xi32> to vector<1x16xi32>
    %10 = tpu.iota {dimensions = array<i32: 0>} : vector<16x16xi32>
    %11 = vector.broadcast %9 : vector<1x16xi32> to vector<16x16xi32>
    %12 = arith.cmpi eq, %10, %11 : vector<16x16xi32>
    %13 = arith.extui %12 : vector<16x16xi1> to vector<16x16xi32>
    %14 = arith.sitofp %13 : vector<16x16xi32> to vector<16x16xf32>
    %c0_5 = arith.constant 0 : index
    %c0_6 = arith.constant 0 : index
    %15 = vector.load %arg6[%c0_5, %c0_6] : memref<16x33xf32, #tpu.memory_space<vmem>>, vector<16x33xf32>
    %cst_7 = arith.constant dense<0.000000e+00> : vector<16x33xf32>
    %16 = tpu.matmul %14, %6, %cst_7 {dimension_numbers = #tpu.dot_dimension_numbers<[1], [0], [0], [1], [0, 0, 1, 1], [], []>} : vector<16x16xf32>, vector<16x33xf32>, vector<16x33xf32> -> vector<16x33xf32>
    %17 = arith.addf %15, %16 : vector<16x33xf32>
    %c0_8 = arith.constant 0 : index
    %c0_9 = arith.constant 0 : index
    %18 = vector.load %arg6[%c0_8, %c0_9] : memref<16x33xf32, #tpu.memory_space<vmem>>, vector<16x33xf32>
    tpu.vector_store %arg6[%c0_8, %c0_9], %17 {strides = array<i32>} : memref<16x33xf32, #tpu.memory_space<vmem>>, vector<16x33xf32>,
    %c0_i32_10 = arith.constant 0 : i32
    %19 = arith.cmpi eq, %arg2, %c0_i32_10 : i32
    %20 = arith.extui %19 : i1 to i32
    %c0_i32_11 = arith.constant 0 : i32
    %21 = arith.cmpi ne, %20, %c0_i32_11 : i32
    scf.if %21 {
      %c0_12 = arith.constant 0 : index
      %c0_13 = arith.constant 0 : index
      %22 = vector.load %arg6[%c0_12, %c0_13] : memref<16x33xf32, #tpu.memory_space<vmem>>, vector<16x33xf32>
      %23 = vector.extract_strided_slice %22 {offsets = [0, 0], sizes = [16, 32], strides = [1, 1]} : vector<16x33xf32> to vector<16x32xf32>
      %24 = vector.extract_strided_slice %22 {offsets = [0, 32], sizes = [16, 1], strides = [1, 1]} : vector<16x33xf32> to vector<16x1xf32>
      %cst_14 = arith.constant 1.000000e+00 : f32
      %25 = vector.broadcast %cst_14 : f32 to vector<16x1xf32>
      %26 = arith.maximumf %24, %25 : vector<16x1xf32>
      %27 = vector.broadcast %26 : vector<16x1xf32> to vector<16x32xf32>
      %28 = arith.divf %23, %27 : vector<16x32xf32>
      %29 = tpu.transpose %28, [1, 0] : vector<16x32xf32> -> vector<32x16xf32>
      %c0_15 = arith.constant 0 : index
      %c0_16 = arith.constant 0 : index
      %c0_17 = arith.constant 0 : index
      %c0_18 = arith.constant 0 : index
      %30 = vector.load %arg5[%c0_15, %c0_16, %c0_17, %c0_18] : memref<1x1x32x16xf32, #tpu.memory_space<vmem>>, vector<1x1x32x16xf32>
      %31 = vector.shape_cast %30 : vector<1x1x32x16xf32> to vector<32x16xf32>
      %32 = vector.shape_cast %29 : vector<32x16xf32> to vector<1x1x32x16xf32>
      tpu.vector_store %arg5[%c0_15, %c0_16, %c0_17, %c0_18], %32 {strides = array<i32>} : memref<1x1x32x16xf32, #tpu.memory_space<vmem>>, vector<1x1x32x16xf32>,
    } else {
    }
    return
  }
  func.func @transform_0(%arg0: i32, %arg1: i32, %arg2: i32) -> (i32, i32, i32) {
    %c0_i32 = arith.constant 0 : i32
    %c0_i32_0 = arith.constant 0 : i32
    return %arg0, %c0_i32, %arg2 : i32, i32, i32
  }
  func.func @transform_1(%arg0: i32, %arg1: i32, %arg2: i32) -> (i32, i32, i32) {
    %c0_i32 = arith.constant 0 : i32
    %c0_i32_0 = arith.constant 0 : i32
    return %arg0, %arg2, %c0_i32 : i32, i32, i32
  }
  func.func @transform_2(%arg0: i32, %arg1: i32, %arg2: i32) -> (i32, i32, i32, i32) {
    %c0_i32 = arith.constant 0 : i32
    %c0_i32_0 = arith.constant 0 : i32
    %c0_i32_1 = arith.constant 0 : i32
    return %arg0, %arg1, %c0_i32, %c0_i32_0 : i32, i32, i32, i32
  }
}

</mosaic_0001>

<llo_original>
// kernel: vnn_local_pool_pointnet.7
$region0: #{vnn_local_pool_pointnet.7}
  #allocation0 [shape = 'u32[]', space=smem, size = 0x4, offset = 0x4, fixed_abs, tag = 'smem constant byte address 0x4 - core index']
  #allocation1 [shape = 'u32[144,128]{1,0:T(1,128)}', space=vmem, size = 0x12000, scoped, tag = 'internal scratch']
  #allocation2 [shape = 'f32[16,33]{1,0:T(8,128)}', space=vmem, size = 0x2000, scoped, tag = 'scratch operand']
  %s0 = inlined_call_operand.hbm [shape: s32[2,3,16], index: 0, kind: input, shape index: {}]
  %s1 = inlined_call_operand.hbm [shape: f32[2,16,32], index: 1, kind: input, shape index: {}]
  %s2 = inlined_call_operand.hbm [shape: f32[2,3,32,16], index: 2, kind: output, shape index: {}]
  %s3 = sld [smem:[#allocation0]]
  $region57: #{vnn_local_pool_pointnet.7} parent=0
    _
  %s5 = ssub.s32 1, %s3
  %s6 = scalar_select 0, %s5, %s3
  $region1: #{vnn_local_pool_pointnet.7} parent=0
    #allocation3 [shape = 'u8[4096]{0}', space=vmem, size = 0x1000, scoped, tag = 'input window, operand 0']
    #allocation4 [shape = 's32[2]{0}', space=sflag, size = 0x8, scoped, tag = 'scoped memory for vnn_local_pool_pointnet.7']
    #allocation5 [shape = 's32[2]{0}', space=sflag, size = 0x8, scoped, tag = 'scoped memory for vnn_local_pool_pointnet.7']
    #allocation6 [shape = 'u8[16384]{0}', space=vmem, size = 0x4000, scoped, tag = 'input window, operand 1']
    #allocation7 [shape = 's32[2]{0}', space=sflag, size = 0x8, scoped, tag = 'scoped memory for vnn_local_pool_pointnet.7']
    #allocation8 [shape = 'u8[32768]{0}', space=vmem, size = 0x8000, scoped, tag = 'output window, operand 0']
    %7 = vsyncpa [#allocation4], 0
    %s8 = scalar_lea.sflag [#allocation4], 1
    %9 = vsyncpa %s8, 0
    %10 = vsyncpa [#allocation7], 0
    %s11 = scalar_lea.sflag [#allocation7], 1
    %12 = vsyncpa %s11, 0
    %13 = vsyncpa [#allocation5], 0
    %s14 = scalar_lea.sflag [#allocation5], 1
    %15 = vsyncpa %s14, 0
    loop: start=0, step=1, limit=8
    $region2: #{vnn_local_pool_pointnet.7} parent=1 // loop_pre_header
      _
    $region3: #{vnn_local_pool_pointnet.7} parent=1 // loop_header
      %s17 = sphi 0, %s21
      %p18 = scmp.ge.s32.totalorder %s17, 8
      %s24 = sphi 0, %s43
      %s25 = sphi 0, %s39
      %s26 = sphi 0, %s35
      %s27 = sphi 0, %s24
      %s28 = sphi 0, %s25
      %s29 = sphi 0, %s26
      %s30 = sphi 0, %s27
      %s31 = sphi 0, %s28
      %s32 = sphi 0, %s29
      %s48 = sphi 0, %s50
      %s51 = sphi 0, %s48
      %s52 = sphi 0, %s51
      %s68 = sphi 0, %s52
      %s76 = sphi 0, %s78
      %s79 = sphi 0, %s76
      %s80 = sphi 0, %s79
      %s96 = sphi 0, %s80
      %s104 = sphi 0, %s106
      %s107 = sphi 0, %s104
      %s108 = sphi 0, %s107
      %s124 = sphi 0, %s108
    $region4: #{vnn_local_pool_pointnet.7} parent=1 // loop_header_branch
      %20 = sbr.rel (%p18) target = $region8
    $region5: #{vnn_local_pool_pointnet.7} parent=1 // loop_body
      %s22 = ssub.s32 %s17, 1
      %s23 = ssub.s32 %s17, 2
      %s33 = sadd.s32 1, %s26
      %p34 = scmp.ge.s32.totalorder %s33, 1
      %s35 = scalar_select %p34, 0, %s33
      %s36 = sadd.s32 1, %s25
      %s37 = scalar_select %p34, %s36, %s25
      %p38 = scmp.ge.s32.totalorder %s37, 3
      %s39 = scalar_select %p38, 0, %s37
      %s40 = sadd.s32 1, %s24
      %s41 = scalar_select %p38, %s40, %s24
      %p42 = scmp.ge.s32.totalorder %s41, 2
      %s43 = scalar_select %p42, 0, %s41
      %s44 = ssub.s32 %s24, %s43
      %s45 = ssub.s32 %s26, %s35
      %s46 = sor.u32 %s44, %s45
      %p47 = scmp.eq.s32.totalorder %s46, 0
      %s49 = sadd.s32 %s48, 1
      %s50 = scalar_select %p47, %s48, %s49
      %p53 = pneg %p47
      %p54 = scmp.eq.s32.totalorder %s17, 5
      %p55 = por %p53, %p54
      %p56 = scmp.ne.s32.totalorder %s48, %s51
      %p57 = scmp.eq.s32.totalorder %s17, 0
      %p58 = por %p56, %p57
      %p59 = scmp.ne.s32.totalorder %s48, %s51
      %p60 = scmp.eq.s32.totalorder %s22, 5
      %p61 = por %p59, %p60
      %p62 = scmp.ne.s32.totalorder %s51, %s52
      %p63 = scmp.eq.s32.totalorder %s22, 0
      %p64 = por %p62, %p63
      %p65 = scmp.ne.s32.totalorder %s51, %s52
      %p66 = scmp.eq.s32.totalorder %s23, 5
      %p67 = por %p65, %p66
      %p69 = scmp.ne.s32.totalorder %s52, %s68
      %p70 = scmp.eq.s32.totalorder %s23, 0
      %p71 = por %p69, %p70
      %s72 = ssub.s32 %s24, %s43
      %s73 = ssub.s32 %s26, %s35
      %s74 = sor.u32 %s72, %s73
      %p75 = scmp.eq.s32.totalorder %s74, 0
      %s77 = sadd.s32 %s76, 1
      %s78 = scalar_select %p75, %s76, %s77
      %p81 = pneg %p75
      %p82 = scmp.eq.s32.totalorder %s17, 5
      %p83 = por %p81, %p82
      %p84 = scmp.ne.s32.totalorder %s76, %s79
      %p85 = scmp.eq.s32.totalorder %s17, 0
      %p86 = por %p84, %p85
      %p87 = scmp.ne.s32.totalorder %s76, %s79
      %p88 = scmp.eq.s32.totalorder %s22, 5
      %p89 = por %p87, %p88
      %p90 = scmp.ne.s32.totalorder %s79, %s80
      %p91 = scmp.eq.s32.totalorder %s22, 0
      %p92 = por %p90, %p91
      %p93 = scmp.ne.s32.totalorder %s79, %s80
      %p94 = scmp.eq.s32.totalorder %s23, 5
      %p95 = por %p93, %p94
      %p97 = scmp.ne.s32.totalorder %s80, %s96
      %p98 = scmp.eq.s32.totalorder %s23, 0
      %p99 = por %p97, %p98
      %s100 = ssub.s32 %s24, %s43
      %s101 = ssub.s32 %s25, %s39
      %s102 = sor.u32 %s100, %s101
      %p103 = scmp.eq.s32.totalorder %s102, 0
      %s105 = sadd.s32 %s104, 1
      %s106 = scalar_select %p103, %s104, %s105
      %p109 = pneg %p103
      %p110 = scmp.eq.s32.totalorder %s17, 5
      %p111 = por %p109, %p110
      %p112 = scmp.ne.s32.totalorder %s104, %s107
      %p113 = scmp.eq.s32.totalorder %s17, 0
      %p114 = por %p112, %p113
      %p115 = scmp.ne.s32.totalorder %s104, %s107
      %p116 = scmp.eq.s32.totalorder %s22, 5
      %p117 = por %p115, %p116
      %p118 = scmp.ne.s32.totalorder %s107, %s108
      %p119 = scmp.eq.s32.totalorder %s22, 0
      %p120 = por %p118, %p119
      %p121 = scmp.ne.s32.totalorder %s107, %s108
      %p122 = scmp.eq.s32.totalorder %s23, 5
      %p123 = por %p121, %p122
      %p125 = scmp.ne.s32.totalorder %s108, %s124
      %p126 = scmp.eq.s32.totalorder %s23, 0
      %p127 = por %p125, %p126
      %p128 = scmp.le.s32.totalorder 1, %s17
      %p129 = scmp.lt.s32.totalorder %s17, 7
      %p130 = pnand %p128, %p129
      %p131 = pneg %p130
      // Predicated region
      $region9: #{vnn_local_pool_pointnet.7} parent=5 // pred_check
        _
      $region10: #{vnn_local_pool_pointnet.7} parent=5 // pred_check_branch
        %133 = sbr.rel (%p130) target = $region12
      $region11: #{vnn_local_pool_pointnet.7} parent=5 // pred_region
        %s134 = ssub.s32 %s17, 1
      $region12: #{vnn_local_pool_pointnet.7} parent=5 // pred_fallthru
        _
      %p135 = scmp.lt.s32.totalorder %s17, 6
      // Predicated region
      $region13: #{vnn_local_pool_pointnet.7} parent=5 // pred_check
        %p136 = pneg %p135
      $region14: #{vnn_local_pool_pointnet.7} parent=5 // pred_check_branch
        %138 = sbr.rel (%p136) target = $region16
      $region15: #{vnn_local_pool_pointnet.7} parent=5 // pred_region
        // Predicated region
        $region17: #{vnn_local_pool_pointnet.7} parent=15 // pred_check
          %p139 = pneg %p58
        $region18: #{vnn_local_pool_pointnet.7} parent=15 // pred_check_branch
          %141 = sbr.rel (%p139) target = $region20
        $region19: #{vnn_local_pool_pointnet.7} parent=15 // pred_region
          %s142 = sand.u32 %s48, 1
          %s143 = scalar_lea.sflag [#allocation4], %s142
          %s144 = sand.u32 %s48, 1
          %s145 = smul.addr %s144, 4
          %s146 = scalar_lea.vmem [#allocation3], %s145
          %s148 = ssub.s32 64, 64
          %149 = vsyncadd %s143, %s148
          %s150 = sadd.s32 %s26, %s24
          %s151 = smul.addr %s150, 64
          %s152 = scalar_lea.hbm %s0, %s151
          %s154 = sshll.u32 %s146, 4
          %s155 = int_to_ptr.vmem [resolvable:$true] %s154
          %157 = dma.hbm_to_vmem [thread:$0]  %s152, 64, %s155, %s143
        $region20: #{vnn_local_pool_pointnet.7} parent=15 // pred_fallthru
          _
        // Predicated region
        $region21: #{vnn_local_pool_pointnet.7} parent=15 // pred_check
          %p158 = pneg %p86
        $region22: #{vnn_local_pool_pointnet.7} parent=15 // pred_check_branch
          %160 = sbr.rel (%p158) target = $region24
        $region23: #{vnn_local_pool_pointnet.7} parent=15 // pred_region
          %s161 = sand.u32 %s76, 1
          %s162 = scalar_lea.sflag [#allocation7], %s161
          %s163 = sand.u32 %s76, 1
          %s164 = smul.addr %s163, 16
          %s165 = scalar_lea.vmem [#allocation6], %s164
          %s166 = smul.u32 2, %s26
          %s168 = ssub.s32 256, 256
          %169 = vsyncadd %s162, %s168
          %s170 = smul.addr %s24, 2
          %s171 = sadd.s32 %s166, %s170
          %s172 = smul.addr %s171, 128
          %s173 = scalar_lea.hbm %s1, %s172
          %s174 = sshll.u32 %s165, 4
          %s175 = int_to_ptr.vmem [resolvable:$true] %s174
          %180 = dma.hbm_to_vmem [thread:$0]  %s173, 256, %s175, %s162, 128, 128, 8
        $region24: #{vnn_local_pool_pointnet.7} parent=15 // pred_fallthru
          _
      $region16: #{vnn_local_pool_pointnet.7} parent=5 // pred_fallthru
        _
      %p181 = scmp.le.s32.totalorder 1, %s17
      %p182 = scmp.lt.s32.totalorder %s17, 7
      %p183 = pnand %p181, %p182
      %p184 = pneg %p183
      // Predicated region
      $region25: #{vnn_local_pool_pointnet.7} parent=5 // pred_check
        _
      $region26: #{vnn_local_pool_pointnet.7} parent=5 // pred_check_branch
        %186 = sbr.rel (%p183) target = $region28
      $region27: #{vnn_local_pool_pointnet.7} parent=5 // pred_region
        %s187 = ssub.s32 %s17, 1
        %s188 = sand.u32 %s51, 1
        %s189 = scalar_lea.sflag [#allocation4], %s188
        %s190 = sand.u32 %s51, 1
        %s191 = smul.addr %s190, 4
        %s192 = scalar_lea.vmem [#allocation3], %s191
        // Predicated region
        $region29: #{vnn_local_pool_pointnet.7} parent=27 // pred_check
          %p193 = pneg %p64
        $region30: #{vnn_local_pool_pointnet.7} parent=27 // pred_check_branch
          %195 = sbr.rel (%p193) target = $region32
        $region31: #{vnn_local_pool_pointnet.7} parent=27 // pred_region
          %196 = dma.done %s189, 64
        $region32: #{vnn_local_pool_pointnet.7} parent=27 // pred_fallthru
          _
        %s197 = sand.u32 %s79, 1
        %s198 = scalar_lea.sflag [#allocation7], %s197
        %s199 = sand.u32 %s79, 1
        %s200 = smul.addr %s199, 16
        %s201 = scalar_lea.vmem [#allocation6], %s200
        // Predicated region
        $region33: #{vnn_local_pool_pointnet.7} parent=27 // pred_check
          %p202 = pneg %p92
        $region34: #{vnn_local_pool_pointnet.7} parent=27 // pred_check_branch
          %204 = sbr.rel (%p202) target = $region36
        $region35: #{vnn_local_pool_pointnet.7} parent=27 // pred_region
          %205 = dma.done %s198, 256
        $region36: #{vnn_local_pool_pointnet.7} parent=27 // pred_fallthru
          _
        %s206 = sand.u32 %s51, 1
        %s207 = scalar_lea.sflag [#allocation4], %s206
        %s208 = sand.u32 %s51, 1
        %s209 = smul.addr %s208, 4
        %s210 = scalar_lea.vmem [#allocation3], %s209
        %p211 = pneg %p64
        %p212 = pneg %p61
        %s213 = sand.u32 %s79, 1
        %s214 = scalar_lea.sflag [#allocation7], %s213
        %s215 = sand.u32 %s79, 1
        %s216 = smul.addr %s215, 16
        %s217 = scalar_lea.vmem [#allocation6], %s216
        %p218 = pneg %p92
        %p219 = pneg %p89
        %p220 = pneg %p120
        %p221 = pneg %p117
        %s222 = sand.u32 %s107, 1
        %s223 = scalar_lea.sflag [#allocation5], %s222
        %s224 = sand.u32 %s107, 1
        %s225 = smul.addr %s224, 32
        %s226 = scalar_lea.vmem [#allocation8], %s225
        %s227 = smul.u32 2, %s29
        %p228 = scmp.eq.s32.totalorder %s29, 0
        // Predicated region
        $region37: #{vnn_local_pool_pointnet.7} parent=27 // pred_check
          %p229 = pneg %p228
        $region38: #{vnn_local_pool_pointnet.7} parent=27 // pred_check_branch
          %231 = sbr.rel (%p229) target = $region40
        $region39: #{vnn_local_pool_pointnet.7} parent=27 // pred_region
          %vm232 = vcmask 269312
          %233 = vst.msk [vmem:[#allocation2] sm:$0xff] %vm232, 0.0
          %234 = vst.msk [vmem:[#allocation2 + $0x8] sm:$0xff] %vm232, 0.0
        $region40: #{vnn_local_pool_pointnet.7} parent=27 // pred_fallthru
          _
        %v235 = vld [vmem:[%s201] sm:$0xff]
        %v236 = vld [vmem:[%s201 + $0x8] sm:$0xff]
        %vm237 = vcmask 261120
        %v238 = vsel %vm237, %v235, 1.0
        %v239 = vsel %vm237, %v236, 1.0
        %s240 = scalar_lea.vmem %s192, %s28 [#allocation3]
        %v241 = vld [vmem:[%s240] sm:$0x1]
        %v242 = vlaneseq
        %v243 = vshrl.u32 %v242, 7
        %v244 = vadd.s32 %v243, 8
        %v245 = vlaneseq
        %v246 = vshrl.u32 %v245, 7
        %v247 = vsub.s32 0, %v246
        %v248 = vrot.slane %v241, %v247
        %vm249 = vcmp.eq.s32.totalorder %v243, %v248
        %vm250 = vcmp.eq.s32.totalorder %v244, %v248
        %v251 = vsel %vm249, 1, 0
        %v252 = vsel %vm250, 1, 0
        %v253 = vcvt.s32.f32 %v251
        %v254 = vcvt.s32.f32 %v252
        %v255 = vld [vmem:[#allocation2] sm:$0xff]
        %v256 = vld [vmem:[#allocation2 + $0x8] sm:$0xff]
        %vm257 = vcmask 130048
        %v259 = vsel %vm257, %v253, 0
        %v262 = vsel %vm257, %v254, 0
        %264 = vmatprep.subr.mxu0 0.0
        %265 = vmatpush1.msra.mxu0 %v238
        %266 = vmatprep.subr.mxu0 0.0
        %267 = vmatpush1.msra.mxu0 %v239
        %268 = vmatprep.subr.mxu0 0.0
        %269 = vmatpush1.msra.mxu0 0.0
        %270 = vmatprep.subr.mxu0 0.0
        %271 = vmatpush1.msra.mxu0 0.0
        %272 = vmatprep.subr.mxu0 0.0
        %273 = vmatpush1.msra.mxu0 0.0
        %274 = vmatprep.subr.mxu0 0.0
        %275 = vmatpush1.msra.mxu0 0.0
        %276 = vmatprep.subr.mxu0 0.0
        %277 = vmatpush1.msra.mxu0 0.0
        %278 = vmatprep.subr.mxu0 0.0
        %279 = vmatpush1.msra.mxu0 0.0
        %280 = vmatprep.subr.mxu0 0.0
        %281 = vmatpush1.msra.mxu0 0.0
        %282 = vmatprep.subr.mxu0 0.0
        %283 = vmatpush1.msra.mxu0 0.0
        %284 = vmatprep.subr.mxu0 0.0
        %285 = vmatpush1.msra.mxu0 0.0
        %286 = vmatprep.subr.mxu0 0.0
        %287 = vmatpush1.msra.mxu0 0.0
        %288 = vmatprep.subr.mxu0 0.0
        %289 = vmatpush1.msra.mxu0 0.0
        %290 = vmatprep.subr.mxu0 0.0
        %291 = vmatpush1.msra.mxu0 0.0
        %292 = vmatprep.subr.mxu0 0.0
        %293 = vmatpush1.msra.mxu0 0.0
        %294 = vmatprep.subr.mxu0 0.0
        %295 = vmatpush1.msra.mxu0 0.0
        %296 = vmatprep.subr.mxu0 0.0
        %297 = vmatpush1.msra.mxu0 0.0
        %298 = vmatprep.subr.mxu0 0.0
        %299 = vmatpush1.msra.mxu0 0.0
        %300 = vmatprep.subr.mxu0 0.0
        %301 = vmatpush1.msra.mxu0 0.0
        %302 = vmatprep.subr.mxu0 0.0
        %303 = vmatpush1.msra.mxu0 0.0
        %304 = vmatprep.subr.mxu0 0.0
        %305 = vmatpush1.msra.mxu0 0.0
        %306 = vmatprep.subr.mxu0 0.0
        %307 = vmatpush1.msra.mxu0 0.0
        %308 = vmatprep.subr.mxu0 0.0
        %309 = vmatpush1.msra.mxu0 0.0
        %310 = vmatprep.subr.mxu0 0.0
        %311 = vmatpush1.msra.mxu0 0.0
        %312 = vmatprep.subr.mxu0 0.0
        %313 = vmatpush1.msra.mxu0 0.0
        %314 = vmatprep.subr.mxu0 0.0
        %315 = vmatpush1.msra.mxu0 0.0
        %316 = vmatprep.subr.mxu0 0.0
        %317 = vmatpush1.msra.mxu0 0.0
        %318 = vmatprep.subr.mxu0 0.0
        %319 = vmatpush1.msra.mxu0 0.0
        %320 = vmatprep.subr.mxu0 0.0
        %321 = vmatpush1.msra.mxu0 0.0
        %322 = vmatprep.subr.mxu0 0.0
        %323 = vmatpush1.msra.mxu0 0.0
        %324 = vmatprep.subr.mxu0 0.0
        %325 = vmatpush1.msra.mxu0 0.0
        %326 = vmatprep.subr.mxu0 0.0
        %327 = vmatpush1.msra.mxu0 0.0
        %328 = vmatprep.mubr.f32.mxu0 0.0
        %329 = vmatmul.mubr.f32.gmra.mrb[0].mxu0 %v259
        %v330 = vpop.f32.mrb[0].mxu0
        %v331 = vadd.f32 0.0, %v330
        %v332 = vpop.f32.mrb[0].mxu0
        %333 = vmatprep.mubr.f32.mxu0 0.0
        %334 = vmatmul.mubr.f32.gmra.mrb[0].mxu0 %v262
        %v335 = vpop.f32.mrb[0].mxu0
        %v336 = vadd.f32 0.0, %v335
        %v337 = vpop.f32.mrb[0].mxu0
        %338 = vdwg.mxu0
        %v339 = vadd.f32 %v255, %v331
        %v340 = vadd.f32 %v256, %v336
        %vm341 = vcmask 269312
        %342 = vst.msk [vmem:[#allocation2] sm:$0xff] %vm341, %v339
        %343 = vst.msk [vmem:[#allocation2 + $0x8] sm:$0xff] %vm341, %v340
        // Predicated region
        $region41: #{vnn_local_pool_pointnet.7} parent=27 // pred_check
          %p344 = pneg %p228
        $region42: #{vnn_local_pool_pointnet.7} parent=27 // pred_check_branch
          %346 = sbr.rel (%p344) target = $region44
        $region43: #{vnn_local_pool_pointnet.7} parent=27 // pred_region
          %v347 = vld [vmem:[#allocation2] sm:$0xff]
          %v348 = vld [vmem:[#allocation2 + $0x8] sm:$0xff]
          %v349 = vmax.f32 %v347, 1.0
          %v350 = vmax.f32 %v348, 1.0
          %352 = vset.pattern.permute.xlu0 32
          %353 = vperm.xlu0 %352, %v349
          %v354 = vpop.permute.xlu0 %353
          %357 = vset.pattern.permute.xlu0 32
          %358 = vperm.xlu0 %357, %v350
          %v359 = vpop.permute.xlu0 %358
          %v361 = vrcp.pop %v354
          %v362 = vmul.f32 %v347, %v361
          %v363 = vrcp.pop %v359
          %v364 = vmul.f32 %v348, %v363
          %365 = vxpose.xlu0.b32.start [1/16] %v362, 128
          %366 = vxpose.xlu0.b32.cont [2/16] %v364, 128
          %367 = vxpose.xlu0.b32.cont [3/16] 0.0, 128
          %368 = vxpose.xlu0.b32.cont [4/16] 0.0, 128
          %369 = vxpose.xlu0.b32.cont [5/16] 0.0, 128
          %370 = vxpose.xlu0.b32.cont [6/16] 0.0, 128
          %371 = vxpose.xlu0.b32.cont [7/16] 0.0, 128
          %372 = vxpose.xlu0.b32.cont [8/16] 0.0, 128
          %373 = vxpose.xlu0.b32.cont [9/16] 0.0, 128
          %374 = vxpose.xlu0.b32.cont [10/16] 0.0, 128
          %375 = vxpose.xlu0.b32.cont [11/16] 0.0, 128
          %376 = vxpose.xlu0.b32.cont [12/16] 0.0, 128
          %377 = vxpose.xlu0.b32.cont [13/16] 0.0, 128
          %378 = vxpose.xlu0.b32.cont [14/16] 0.0, 128
          %379 = vxpose.xlu0.b32.cont [15/16] 0.0, 128
          %380 = vxpose.xlu0.b32.end [16/16] 0.0, 128
          %v381 = vpop.trf.xlu0
          %v382 = vpop.trf.xlu0
          %v383 = vpop.trf.xlu0
          %v384 = vpop.trf.xlu0
          %v385 = vpop.trf.xlu0
          %v386 = vpop.trf.xlu0
          %v387 = vpop.trf.xlu0
          %v388 = vpop.trf.xlu0
          %v389 = vpop.trf.xlu0
          %v390 = vpop.trf.xlu0
          %v391 = vpop.trf.xlu0
          %v392 = vpop.trf.xlu0
          %v393 = vpop.trf.xlu0
          %v394 = vpop.trf.xlu0
          %v395 = vpop.trf.xlu0
          %v396 = vpop.trf.xlu0
          %397 = vst.msk [vmem:[%s226] sm:$0xff] %vm257, %v381
          %398 = vst.msk [vmem:[%s226 + $0x8] sm:$0xff] %vm257, %v382
          %399 = vst.msk [vmem:[%s226 + $0x10] sm:$0xff] %vm257, %v383
          %400 = vst.msk [vmem:[%s226 + $0x18] sm:$0xff] %vm257, %v384
        $region44: #{vnn_local_pool_pointnet.7} parent=27 // pred_fallthru
          _
        %s401 = sand.u32 %s107, 1
        %s402 = scalar_lea.sflag [#allocation5], %s401
        %s403 = sand.u32 %s107, 1
        %s404 = smul.addr %s403, 32
        %s405 = scalar_lea.vmem [#allocation8], %s404
        // Predicated region
        $region45: #{vnn_local_pool_pointnet.7} parent=27 // pred_check
          %p406 = pneg %p117
        $region46: #{vnn_local_pool_pointnet.7} parent=27 // pred_check_branch
          %408 = sbr.rel (%p406) target = $region48
        $region47: #{vnn_local_pool_pointnet.7} parent=27 // pred_region
          %s410 = ssub.s32 512, 512
          %411 = vsyncadd %s402, %s410
          %s412 = smul.addr %s28, 4
          %s413 = smul.addr %s27, 12
          %s414 = sadd.s32 %s412, %s413
          %s415 = smul.addr %s414, 128
          %s416 = scalar_lea.hbm %s2, %s415
          %s417 = sshll.u32 %s405, 4
          %s418 = int_to_ptr.vmem [resolvable:$true] %s417
          %423 = dma.vmem_to_hbm [thread:$0]  %s418, 512, %s416, %s402, 128, 128, 8
        $region48: #{vnn_local_pool_pointnet.7} parent=27 // pred_fallthru
          _
      $region28: #{vnn_local_pool_pointnet.7} parent=5 // pred_fallthru
        _
      %p424 = scmp.le.s32.totalorder 2, %s17
      // Predicated region
      $region49: #{vnn_local_pool_pointnet.7} parent=5 // pred_check
        %p425 = pneg %p424
      $region50: #{vnn_local_pool_pointnet.7} parent=5 // pred_check_branch
        %427 = sbr.rel (%p425) target = $region52
      $region51: #{vnn_local_pool_pointnet.7} parent=5 // pred_region
        %s428 = ssub.s32 %s17, 2
        // Predicated region
        $region53: #{vnn_local_pool_pointnet.7} parent=51 // pred_check
          %p429 = pneg %p123
        $region54: #{vnn_local_pool_pointnet.7} parent=51 // pred_check_branch
          %431 = sbr.rel (%p429) target = $region56
        $region55: #{vnn_local_pool_pointnet.7} parent=51 // pred_region
          %s432 = sand.u32 %s108, 1
          %s433 = scalar_lea.sflag [#allocation5], %s432
          %s434 = sand.u32 %s108, 1
          %s435 = smul.addr %s434, 32
          %s436 = scalar_lea.vmem [#allocation8], %s435
          %437 = dma.done %s433, 512
        $region56: #{vnn_local_pool_pointnet.7} parent=51 // pred_fallthru
          _
      $region52: #{vnn_local_pool_pointnet.7} parent=5 // pred_fallthru
        _
    $region6: #{vnn_local_pool_pointnet.7} parent=1 // loop_footer
      %s21 = sadd.s32 1, %s17
    $region7: #{vnn_local_pool_pointnet.7} parent=1 // loop_footer_branch
      %16 = sbr.rel target = $region3
    $region8: #{vnn_local_pool_pointnet.7} parent=1 // loop_exit
      _
    %438 = vsyncpa [#allocation4], 1
    %s439 = scalar_lea.sflag [#allocation4], 1
    %440 = vsyncpa %s439, 1
    %441 = vsyncpa [#allocation7], 1
    %s442 = scalar_lea.sflag [#allocation7], 1
    %443 = vsyncpa %s442, 1
    %444 = vsyncpa [#allocation5], 1
    %s445 = scalar_lea.sflag [#allocation5], 1
    %446 = vsyncpa %s445, 1

// kernel: vnn_local_pool_pointnet.5
$region0: #{vnn_local_pool_pointnet.5}
  #allocation0 [shape = 'u32[]', space=smem, size = 0x4, offset = 0x4, fixed_abs, tag = 'smem constant byte address 0x4 - core index']
  #allocation1 [shape = 'u32[144,128]{1,0:T(1,128)}', space=vmem, size = 0x12000, scoped, tag = 'internal scratch']
  #allocation2 [shape = 'f32[48,32]{1,0:T(8,128)}', space=vmem, size = 0x6000, scoped, tag = 'scratch operand']
  #allocation3 [shape = 'f32[16,32]{1,0:T(8,128)}', space=vmem, size = 0x2000, scoped, tag = 'scratch operand']
  #allocation4 [shape = 's32[1]{0}', space=sflag, size = 0x4, scoped, tag = 'scoped memory for vnn_local_pool_pointnet.5']
  #allocation5 [shape = 'u8[512]{0}', space=smem, size = 0x200, scoped, tag = 'prefetched SMEM operand 0']
  %s0 = inlined_call_operand.hbm [shape: s32[96], index: 0, kind: input, shape index: {}]
  %s1 = inlined_call_operand.hbm [shape: f32[2,16,32], index: 1, kind: input, shape index: {}]
  %s2 = inlined_call_operand.hbm [shape: f32[64,32], index: 2, kind: input, shape index: {}]
  %s3 = inlined_call_operand.hbm [shape: f32[1,32], index: 3, kind: input, shape index: {}]
  %s4 = inlined_call_operand.hbm [shape: f32[96,32], index: 4, kind: input, shape index: {}]
  %s5 = inlined_call_operand.hbm [shape: f32[1,32], index: 5, kind: input, shape index: {}]
  %s6 = inlined_call_operand.hbm [shape: f32[2,16,32], index: 6, kind: output, shape index: {}]
  %s7 = sld [smem:[#allocation0]]
  $region99: #{vnn_local_pool_pointnet.5} parent=0
    _
  %s9 = ssub.s32 1, %s7
  %s10 = scalar_select 0, %s9, %s7
  %12 = dma.hbm_to_smem %s0, 16, [#allocation5], [#allocation4]
  %13 = dma.done [#allocation4], 16
  %14 = sfence
  $region1: #{vnn_local_pool_pointnet.5} parent=0
    #allocation6 [shape = 'u8[16384]{0}', space=vmem, size = 0x4000, scoped, tag = 'input window, operand 1']
    #allocation7 [shape = 's32[2]{0}', space=sflag, size = 0x8, scoped, tag = 'scoped memory for vnn_local_pool_pointnet.5']
    #allocation8 [shape = 's32[2]{0}', space=sflag, size = 0x8, scoped, tag = 'scoped memory for vnn_local_pool_pointnet.5']
    #allocation9 [shape = 'u8[32768]{0}', space=vmem, size = 0x8000, scoped, tag = 'input window, operand 2, single buffered']
    #allocation10 [shape = 's32[1]{0}', space=sflag, size = 0x4, scoped, tag = 'scoped memory for vnn_local_pool_pointnet.5']
    #allocation11 [shape = 'u8[512]{0}', space=vmem, size = 0x400, scoped, tag = 'input window, operand 3, single buffered']
    #allocation12 [shape = 'u8[49152]{0}', space=vmem, size = 0xc000, scoped, tag = 'input window, operand 4, single buffered']
    #allocation13 [shape = 's32[1]{0}', space=sflag, size = 0x4, scoped, tag = 'scoped memory for vnn_local_pool_pointnet.5']
    #allocation14 [shape = 'u8[512]{0}', space=vmem, size = 0x400, scoped, tag = 'input window, operand 5, single buffered']
    #allocation15 [shape = 'u8[16384]{0}', space=vmem, size = 0x4000, scoped, tag = 'output window, operand 0']
    %15 = vsyncpa [#allocation7], 0
    %s16 = scalar_lea.sflag [#allocation7], 1
    %17 = vsyncpa %s16, 0
    %18 = vsyncpa [#allocation10], 0
    %19 = vsyncpa [#allocation13], 0
    %20 = vsyncpa [#allocation8], 0
    %s21 = scalar_lea.sflag [#allocation8], 1
    %22 = vsyncpa %s21, 0
    loop: start=0, step=1, limit=6
    $region2: #{vnn_local_pool_pointnet.5} parent=1 // loop_pre_header
      _
    $region3: #{vnn_local_pool_pointnet.5} parent=1 // loop_header
      %s24 = sphi 0, %s28
      %p25 = scmp.ge.s32.totalorder %s24, 6
      %s31 = sphi 0, %s50
      %s32 = sphi 0, %s46
      %s33 = sphi 0, %s42
      %s34 = sphi 0, %s31
      %s35 = sphi 0, %s32
      %s36 = sphi 0, %s33
      %s37 = sphi 0, %s34
      %s38 = sphi 0, %s35
      %s39 = sphi 0, %s36
      %s55 = sphi 0, %s57
      %s58 = sphi 0, %s55
      %s59 = sphi 0, %s58
      %s75 = sphi 0, %s59
      %s79 = sphi 0, %s79
      %s81 = sphi 0, %s79
      %s82 = sphi 0, %s81
      %s96 = sphi 0, %s82
      %s100 = sphi 0, %s100
      %s102 = sphi 0, %s100
      %s103 = sphi 0, %s102
      %s117 = sphi 0, %s103
      %s121 = sphi 0, %s121
      %s123 = sphi 0, %s121
      %s124 = sphi 0, %s123
      %s138 = sphi 0, %s124
      %s142 = sphi 0, %s142
      %s144 = sphi 0, %s142
      %s145 = sphi 0, %s144
      %s159 = sphi 0, %s145
      %s167 = sphi 0, %s169
      %s170 = sphi 0, %s167
      %s171 = sphi 0, %s170
      %s187 = sphi 0, %s171
    $region4: #{vnn_local_pool_pointnet.5} parent=1 // loop_header_branch
      %27 = sbr.rel (%p25) target = $region8
    $region5: #{vnn_local_pool_pointnet.5} parent=1 // loop_body
      %s29 = ssub.s32 %s24, 1
      %s30 = ssub.s32 %s24, 2
      %s40 = sadd.s32 1, %s33
      %p41 = scmp.ge.s32.totalorder %s40, 1
      %s42 = scalar_select %p41, 0, %s40
      %s43 = sadd.s32 1, %s32
      %s44 = scalar_select %p41, %s43, %s32
      %p45 = scmp.ge.s32.totalorder %s44, 2
      %s46 = scalar_select %p45, 0, %s44
      %s47 = sadd.s32 1, %s31
      %s48 = scalar_select %p45, %s47, %s31
      %p49 = scmp.ge.s32.totalorder %s48, 2
      %s50 = scalar_select %p49, 0, %s48
      %s51 = ssub.s32 %s31, %s50
      %s52 = ssub.s32 %s33, %s42
      %s53 = sor.u32 %s51, %s52
      %p54 = scmp.eq.s32.totalorder %s53, 0
      %s56 = sadd.s32 %s55, 1
      %s57 = scalar_select %p54, %s55, %s56
      %p60 = pneg %p54
      %p61 = scmp.eq.s32.totalorder %s24, 3
      %p62 = por %p60, %p61
      %p63 = scmp.ne.s32.totalorder %s55, %s58
      %p64 = scmp.eq.s32.totalorder %s24, 0
      %p65 = por %p63, %p64
      %p66 = scmp.ne.s32.totalorder %s55, %s58
      %p67 = scmp.eq.s32.totalorder %s29, 3
      %p68 = por %p66, %p67
      %p69 = scmp.ne.s32.totalorder %s58, %s59
      %p70 = scmp.eq.s32.totalorder %s29, 0
      %p71 = por %p69, %p70
      %p72 = scmp.ne.s32.totalorder %s58, %s59
      %p73 = scmp.eq.s32.totalorder %s30, 3
      %p74 = por %p72, %p73
      %p76 = scmp.ne.s32.totalorder %s59, %s75
      %p77 = scmp.eq.s32.totalorder %s30, 0
      %p78 = por %p76, %p77
      %s80 = sadd.s32 %s79, 1
      %p83 = scmp.eq.s32.totalorder %s24, 3
      %p84 = scmp.ne.s32.totalorder %s79, %s81
      %p85 = scmp.eq.s32.totalorder %s24, 0
      %p86 = por %p84, %p85
      %p87 = scmp.ne.s32.totalorder %s79, %s81
      %p88 = scmp.eq.s32.totalorder %s29, 3
      %p89 = por %p87, %p88
      %p90 = scmp.ne.s32.totalorder %s81, %s82
      %p91 = scmp.eq.s32.totalorder %s29, 0
      %p92 = por %p90, %p91
      %p93 = scmp.ne.s32.totalorder %s81, %s82
      %p94 = scmp.eq.s32.totalorder %s30, 3
      %p95 = por %p93, %p94
      %p97 = scmp.ne.s32.totalorder %s82, %s96
      %p98 = scmp.eq.s32.totalorder %s30, 0
      %p99 = por %p97, %p98
      %s101 = sadd.s32 %s100, 1
      %p104 = scmp.eq.s32.totalorder %s24, 3
      %p105 = scmp.ne.s32.totalorder %s100, %s102
      %p106 = scmp.eq.s32.totalorder %s24, 0
      %p107 = por %p105, %p106
      %p108 = scmp.ne.s32.totalorder %s100, %s102
      %p109 = scmp.eq.s32.totalorder %s29, 3
      %p110 = por %p108, %p109
      %p111 = scmp.ne.s32.totalorder %s102, %s103
      %p112 = scmp.eq.s32.totalorder %s29, 0
      %p113 = por %p111, %p112
      %p114 = scmp.ne.s32.totalorder %s102, %s103
      %p115 = scmp.eq.s32.totalorder %s30, 3
      %p116 = por %p114, %p115
      %p118 = scmp.ne.s32.totalorder %s103, %s117
      %p119 = scmp.eq.s32.totalorder %s30, 0
      %p120 = por %p118, %p119
      %s122 = sadd.s32 %s121, 1
      %p125 = scmp.eq.s32.totalorder %s24, 3
      %p126 = scmp.ne.s32.totalorder %s121, %s123
      %p127 = scmp.eq.s32.totalorder %s24, 0
      %p128 = por %p126, %p127
      %p129 = scmp.ne.s32.totalorder %s121, %s123
      %p130 = scmp.eq.s32.totalorder %s29, 3
      %p131 = por %p129, %p130
      %p132 = scmp.ne.s32.totalorder %s123, %s124
      %p133 = scmp.eq.s32.totalorder %s29, 0
      %p134 = por %p132, %p133
      %p135 = scmp.ne.s32.totalorder %s123, %s124
      %p136 = scmp.eq.s32.totalorder %s30, 3
      %p137 = por %p135, %p136
      %p139 = scmp.ne.s32.totalorder %s124, %s138
      %p140 = scmp.eq.s32.totalorder %s30, 0
      %p141 = por %p139, %p140
      %s143 = sadd.s32 %s142, 1
      %p146 = scmp.eq.s32.totalorder %s24, 3
      %p147 = scmp.ne.s32.totalorder %s142, %s144
      %p148 = scmp.eq.s32.totalorder %s24, 0
      %p149 = por %p147, %p148
      %p150 = scmp.ne.s32.totalorder %s142, %s144
      %p151 = scmp.eq.s32.totalorder %s29, 3
      %p152 = por %p150, %p151
      %p153 = scmp.ne.s32.totalorder %s144, %s145
      %p154 = scmp.eq.s32.totalorder %s29, 0
      %p155 = por %p153, %p154
      %p156 = scmp.ne.s32.totalorder %s144, %s145
      %p157 = scmp.eq.s32.totalorder %s30, 3
      %p158 = por %p156, %p157
      %p160 = scmp.ne.s32.totalorder %s145, %s159
      %p161 = scmp.eq.s32.totalorder %s30, 0
      %p162 = por %p160, %p161
      %s163 = ssub.s32 %s31, %s50
      %s164 = ssub.s32 %s33, %s42
      %s165 = sor.u32 %s163, %s164
      %p166 = scmp.eq.s32.totalorder %s165, 0
      %s168 = sadd.s32 %s167, 1
      %s169 = scalar_select %p166, %s167, %s168
      %p172 = pneg %p166
      %p173 = scmp.eq.s32.totalorder %s24, 3
      %p174 = por %p172, %p173
      %p175 = scmp.ne.s32.totalorder %s167, %s170
      %p176 = scmp.eq.s32.totalorder %s24, 0
      %p177 = por %p175, %p176
      %p178 = scmp.ne.s32.totalorder %s167, %s170
      %p179 = scmp.eq.s32.totalorder %s29, 3
      %p180 = por %p178, %p179
      %p181 = scmp.ne.s32.totalorder %s170, %s171
      %p182 = scmp.eq.s32.totalorder %s29, 0
      %p183 = por %p181, %p182
      %p184 = scmp.ne.s32.totalorder %s170, %s171
      %p185 = scmp.eq.s32.totalorder %s30, 3
      %p186 = por %p184, %p185
      %p188 = scmp.ne.s32.totalorder %s171, %s187
      %p189 = scmp.eq.s32.totalorder %s30, 0
      %p190 = por %p188, %p189
      %p191 = scmp.le.s32.totalorder 1, %s24
      %p192 = scmp.lt.s32.totalorder %s24, 5
      %p193 = pnand %p191, %p192
      %p194 = pneg %p193
      // Predicated region
      $region9: #{vnn_local_pool_pointnet.5} parent=5 // pred_check
        _
      $region10: #{vnn_local_pool_pointnet.5} parent=5 // pred_check_branch
        %196 = sbr.rel (%p193) target = $region12
      $region11: #{vnn_local_pool_pointnet.5} parent=5 // pred_region
        %s197 = ssub.s32 %s24, 1
        // Predicated region
        $region13: #{vnn_local_pool_pointnet.5} parent=11 // pred_check
          %p198 = pneg %p92
        $region14: #{vnn_local_pool_pointnet.5} parent=11 // pred_check_branch
          %200 = sbr.rel (%p198) target = $region16
        $region15: #{vnn_local_pool_pointnet.5} parent=11 // pred_region
          %s202 = ssub.s32 1024, 1024
          %203 = vsyncadd [#allocation10], %s202
          %s204 = sshll.u32 [#allocation9], 4
          %s205 = int_to_ptr.vmem [resolvable:$true] %s204
          %210 = dma.hbm_to_vmem [thread:$0]  %s2, 1024, %s205, [#allocation10], 128, 128, 8
        $region16: #{vnn_local_pool_pointnet.5} parent=11 // pred_fallthru
          _
        // Predicated region
        $region17: #{vnn_local_pool_pointnet.5} parent=11 // pred_check
          %p211 = pneg %p113
        $region18: #{vnn_local_pool_pointnet.5} parent=11 // pred_check_branch
          %213 = sbr.rel (%p211) target = $region20
        $region19: #{vnn_local_pool_pointnet.5} parent=11 // pred_region
          %s215 = ssub.s32 16, 16
          %216 = vsyncadd [#allocation10], %s215
          %s218 = sshll.u32 [#allocation11], 4
          %s219 = int_to_ptr.vmem [resolvable:$true] %s218
          %221 = dma.hbm_to_vmem [thread:$0]  %s3, 16, %s219, [#allocation10]
        $region20: #{vnn_local_pool_pointnet.5} parent=11 // pred_fallthru
          _
        // Predicated region
        $region21: #{vnn_local_pool_pointnet.5} parent=11 // pred_check
          %p222 = pneg %p134
        $region22: #{vnn_local_pool_pointnet.5} parent=11 // pred_check_branch
          %224 = sbr.rel (%p222) target = $region24
        $region23: #{vnn_local_pool_pointnet.5} parent=11 // pred_region
          %s226 = ssub.s32 1536, 1536
          %227 = vsyncadd [#allocation13], %s226
          %s228 = sshll.u32 [#allocation12], 4
          %s229 = int_to_ptr.vmem [resolvable:$true] %s228
          %234 = dma.hbm_to_vmem [thread:$0]  %s4, 1536, %s229, [#allocation13], 128, 128, 8
        $region24: #{vnn_local_pool_pointnet.5} parent=11 // pred_fallthru
          _
        // Predicated region
        $region25: #{vnn_local_pool_pointnet.5} parent=11 // pred_check
          %p235 = pneg %p155
        $region26: #{vnn_local_pool_pointnet.5} parent=11 // pred_check_branch
          %237 = sbr.rel (%p235) target = $region28
        $region27: #{vnn_local_pool_pointnet.5} parent=11 // pred_region
          %s239 = ssub.s32 16, 16
          %240 = vsyncadd [#allocation13], %s239
          %s242 = sshll.u32 [#allocation14], 4
          %s243 = int_to_ptr.vmem [resolvable:$true] %s242
          %245 = dma.hbm_to_vmem [thread:$0]  %s5, 16, %s243, [#allocation13]
        $region28: #{vnn_local_pool_pointnet.5} parent=11 // pred_fallthru
          _
      $region12: #{vnn_local_pool_pointnet.5} parent=5 // pred_fallthru
        _
      %p246 = scmp.lt.s32.totalorder %s24, 4
      // Predicated region
      $region29: #{vnn_local_pool_pointnet.5} parent=5 // pred_check
        %p247 = pneg %p246
      $region30: #{vnn_local_pool_pointnet.5} parent=5 // pred_check_branch
        %249 = sbr.rel (%p247) target = $region32
      $region31: #{vnn_local_pool_pointnet.5} parent=5 // pred_region
        // Predicated region
        $region33: #{vnn_local_pool_pointnet.5} parent=31 // pred_check
          %p250 = pneg %p65
        $region34: #{vnn_local_pool_pointnet.5} parent=31 // pred_check_branch
          %252 = sbr.rel (%p250) target = $region36
        $region35: #{vnn_local_pool_pointnet.5} parent=31 // pred_region
          %s253 = sand.u32 %s55, 1
          %s254 = scalar_lea.sflag [#allocation7], %s253
          %s255 = sand.u32 %s55, 1
          %s256 = smul.addr %s255, 16
          %s257 = scalar_lea.vmem [#allocation6], %s256
          %s258 = smul.u32 2, %s33
          %s260 = ssub.s32 256, 256
          %261 = vsyncadd %s254, %s260
          %s262 = smul.addr %s31, 2
          %s263 = sadd.s32 %s258, %s262
          %s264 = smul.addr %s263, 128
          %s265 = scalar_lea.hbm %s1, %s264
          %s266 = sshll.u32 %s257, 4
          %s267 = int_to_ptr.vmem [resolvable:$true] %s266
          %272 = dma.hbm_to_vmem [thread:$0]  %s265, 256, %s267, %s254, 128, 128, 8
        $region36: #{vnn_local_pool_pointnet.5} parent=31 // pred_fallthru
          _
      $region32: #{vnn_local_pool_pointnet.5} parent=5 // pred_fallthru
        _
      %p273 = scmp.le.s32.totalorder 1, %s24
      %p274 = scmp.lt.s32.totalorder %s24, 5
      %p275 = pnand %p273, %p274
      %p276 = pneg %p275
      // Predicated region
      $region37: #{vnn_local_pool_pointnet.5} parent=5 // pred_check
        _
      $region38: #{vnn_local_pool_pointnet.5} parent=5 // pred_check_branch
        %278 = sbr.rel (%p275) target = $region40
      $region39: #{vnn_local_pool_pointnet.5} parent=5 // pred_region
        %s279 = ssub.s32 %s24, 1
        %s280 = sand.u32 %s58, 1
        %s281 = scalar_lea.sflag [#allocation7], %s280
        %s282 = sand.u32 %s58, 1
        %s283 = smul.addr %s282, 16
        %s284 = scalar_lea.vmem [#allocation6], %s283
        // Predicated region
        $region41: #{vnn_local_pool_pointnet.5} parent=39 // pred_check
          %p285 = pneg %p71
        $region42: #{vnn_local_pool_pointnet.5} parent=39 // pred_check_branch
          %287 = sbr.rel (%p285) target = $region44
        $region43: #{vnn_local_pool_pointnet.5} parent=39 // pred_region
          %288 = dma.done %s281, 256
        $region44: #{vnn_local_pool_pointnet.5} parent=39 // pred_fallthru
          _
        // Predicated region
        $region45: #{vnn_local_pool_pointnet.5} parent=39 // pred_check
          %p289 = pneg %p92
        $region46: #{vnn_local_pool_pointnet.5} parent=39 // pred_check_branch
          %291 = sbr.rel (%p289) target = $region48
        $region47: #{vnn_local_pool_pointnet.5} parent=39 // pred_region
          %292 = dma.done [#allocation10], 1024
        $region48: #{vnn_local_pool_pointnet.5} parent=39 // pred_fallthru
          _
        // Predicated region
        $region49: #{vnn_local_pool_pointnet.5} parent=39 // pred_check
          %p293 = pneg %p113
        $region50: #{vnn_local_pool_pointnet.5} parent=39 // pred_check_branch
          %295 = sbr.rel (%p293) target = $region52
        $region51: #{vnn_local_pool_pointnet.5} parent=39 // pred_region
          %296 = dma.done [#allocation10], 16
        $region52: #{vnn_local_pool_pointnet.5} parent=39 // pred_fallthru
          _
        // Predicated region
        $region53: #{vnn_local_pool_pointnet.5} parent=39 // pred_check
          %p297 = pneg %p134
        $region54: #{vnn_local_pool_pointnet.5} parent=39 // pred_check_branch
          %299 = sbr.rel (%p297) target = $region56
        $region55: #{vnn_local_pool_pointnet.5} parent=39 // pred_region
          %300 = dma.done [#allocation13], 1536
        $region56: #{vnn_local_pool_pointnet.5} parent=39 // pred_fallthru
          _
        // Predicated region
        $region57: #{vnn_local_pool_pointnet.5} parent=39 // pred_check
          %p301 = pneg %p155
        $region58: #{vnn_local_pool_pointnet.5} parent=39 // pred_check_branch
          %303 = sbr.rel (%p301) target = $region60
        $region59: #{vnn_local_pool_pointnet.5} parent=39 // pred_region
          %304 = dma.done [#allocation13], 16
        $region60: #{vnn_local_pool_pointnet.5} parent=39 // pred_fallthru
          _
        %s305 = sand.u32 %s58, 1
        %s306 = scalar_lea.sflag [#allocation7], %s305
        %s307 = sand.u32 %s58, 1
        %s308 = smul.addr %s307, 16
        %s309 = scalar_lea.vmem [#allocation6], %s308
        %p310 = pneg %p71
        %p311 = pneg %p68
        %p312 = pneg %p92
        %p313 = pneg %p89
        %p314 = pneg %p113
        %p315 = pneg %p110
        %p316 = pneg %p134
        %p317 = pneg %p131
        %p318 = pneg %p155
        %p319 = pneg %p152
        %p320 = pneg %p183
        %p321 = pneg %p180
        %s322 = sand.u32 %s170, 1
        %s323 = scalar_lea.sflag [#allocation8], %s322
        %s324 = sand.u32 %s170, 1
        %s325 = smul.addr %s324, 16
        %s326 = scalar_lea.vmem [#allocation15], %s325
        %s327 = smul.u32 2, %s36
        %s328 = smul.u32 2, %s36
        %s329 = smul.u32 %s36, 16
        %s330 = ssub.s32 16, %s329
        %p331 = scmp.lt.s32.totalorder %s330, 16
        %s332 = scalar_select %p331, %s330, 16
        %s333 = smul.u32 %s34, 48
        %s334 = sadd.s32 %s333, %s329
        %p335 = scmp.eq.s32.totalorder %s35, 0
        %p336 = scmp.eq.s32.totalorder %s36, 0
        %p337 = pnand %p335, %p336
        %p338 = pneg %p337
        // Predicated region
        $region61: #{vnn_local_pool_pointnet.5} parent=39 // pred_check
          _
        $region62: #{vnn_local_pool_pointnet.5} parent=39 // pred_check_branch
          %340 = sbr.rel (%p337) target = $region64
        $region63: #{vnn_local_pool_pointnet.5} parent=39 // pred_region
          %vm341 = vcmask 261120
          %342 = vst.msk [vmem:[#allocation2] sm:$0xff] %vm341, -1e+30
          %343 = vst.msk [vmem:[#allocation2 + $0x8] sm:$0xff] %vm341, -1e+30
          %344 = vst.msk [vmem:[#allocation2 + $0x10] sm:$0xff] %vm341, -1e+30
          %345 = vst.msk [vmem:[#allocation2 + $0x18] sm:$0xff] %vm341, -1e+30
          %346 = vst.msk [vmem:[#allocation2 + $0x20] sm:$0xff] %vm341, -1e+30
          %347 = vst.msk [vmem:[#allocation2 + $0x28] sm:$0xff] %vm341, -1e+30
        $region64: #{vnn_local_pool_pointnet.5} parent=39 // pred_fallthru
          _
        // Predicated region
        $region65: #{vnn_local_pool_pointnet.5} parent=39 // pred_check
          %p348 = pneg %p335
        $region66: #{vnn_local_pool_pointnet.5} parent=39 // pred_check_branch
          %350 = sbr.rel (%p348) target = $region68
        $region67: #{vnn_local_pool_pointnet.5} parent=39 // pred_region
          // While loop
          $region69: #{vnn_local_pool_pointnet.5} parent=67 // loop_pre_header
            _
          $region70: #{vnn_local_pool_pointnet.5} parent=67 // loop_header
            %s352 = sphi 0, %s354
            %p353 = scmp.ge.s32.totalorder %s352, %s332
          $region71: #{vnn_local_pool_pointnet.5} parent=67 // loop_header_branch
            %356 = sbr.rel (%p353) target = $region75
          $region72: #{vnn_local_pool_pointnet.5} parent=67 // loop_body
            %s357 = scalar_lea.vmem %s284, %s352 [#allocation6]
            %v358 = vld [vmem:[%s357] sm:$0x1]
            %s359 = sadd.s32 %s334, %s352
            %s360 = sld [smem:[#allocation5 + %s359]]
            %s361 = scalar_lea.vmem [#allocation2], %s360
            %v362 = vld [vmem:[%s361] sm:$0x1]
            %v363 = vmax.f32 %v362, %v358
            %vm364 = vcmask 253952
            %365 = vst.msk [vmem:[%s361] sm:$0x1] %vm364, %v363
            %s366 = sadd.s32 %s334, 16
            %s367 = sadd.s32 %s366, %s352
            %s368 = sld [smem:[#allocation5 + %s367]]
            %s369 = sadd.s32 %s368, 16
            %s370 = scalar_lea.vmem [#allocation2], %s369
            %v371 = vld [vmem:[%s370] sm:$0x1]
            %v372 = vmax.f32 %v371, %v358
            %373 = vst.msk [vmem:[%s370] sm:$0x1] %vm364, %v372
            %s374 = sadd.s32 %s334, 32
            %s375 = sadd.s32 %s374, %s352
            %s376 = sld [smem:[#allocation5 + %s375]]
            %s377 = sadd.s32 %s376, 32
            %s378 = scalar_lea.vmem [#allocation2], %s377
            %v379 = vld [vmem:[%s378] sm:$0x1]
            %v380 = vmax.f32 %v379, %v358
            %381 = vst.msk [vmem:[%s378] sm:$0x1] %vm364, %v380
          $region73: #{vnn_local_pool_pointnet.5} parent=67 // loop_footer
            %s354 = sadd.s32 %s352, 1
          $region74: #{vnn_local_pool_pointnet.5} parent=67 // loop_footer_branch
            %351 = sbr.rel target = $region70
          $region75: #{vnn_local_pool_pointnet.5} parent=67 // loop_exit
            _
        $region68: #{vnn_local_pool_pointnet.5} parent=39 // pred_fallthru
          _
        %p382 = scmp.eq.s32.totalorder %s35, 1
        // Predicated region
        $region76: #{vnn_local_pool_pointnet.5} parent=39 // pred_check
          %p383 = pneg %p382
        $region77: #{vnn_local_pool_pointnet.5} parent=39 // pred_check_branch
          %385 = sbr.rel (%p383) target = $region79
        $region78: #{vnn_local_pool_pointnet.5} parent=39 // pred_region
          // While loop
          $region80: #{vnn_local_pool_pointnet.5} parent=78 // loop_pre_header
            _
          $region81: #{vnn_local_pool_pointnet.5} parent=78 // loop_header
            %s387 = sphi 0, %s389
            %p388 = scmp.ge.s32.totalorder %s387, %s332
          $region82: #{vnn_local_pool_pointnet.5} parent=78 // loop_header_branch
            %391 = sbr.rel (%p388) target = $region86
          $region83: #{vnn_local_pool_pointnet.5} parent=78 // loop_body
            %s392 = sadd.s32 %s334, %s387
            %s393 = sld [smem:[#allocation5 + %s392]]
            %s394 = scalar_lea.vmem [#allocation2], %s393
            %v395 = vld [vmem:[%s394] sm:$0x1]
            %s396 = sadd.s32 %s334, 16
            %s397 = sadd.s32 %s396, %s387
            %s398 = sld [smem:[#allocation5 + %s397]]
            %s399 = sadd.s32 %s398, 16
            %s400 = scalar_lea.vmem [#allocation2], %s399
            %v401 = vld [vmem:[%s400] sm:$0x1]
            %v402 = vadd.f32 %v395, %v401
            %s403 = sadd.s32 %s334, 32
            %s404 = sadd.s32 %s403, %s387
            %s405 = sld [smem:[#allocation5 + %s404]]
            %s406 = sadd.s32 %s405, 32
            %s407 = scalar_lea.vmem [#allocation2], %s406
            %v408 = vld [vmem:[%s407] sm:$0x1]
            %v409 = vadd.f32 %v402, %v408
            %s410 = scalar_lea.vmem [#allocation3], %s387
            %vm411 = vcmask 253952
            %412 = vst.msk [vmem:[%s410] sm:$0x1] %vm411, %v409
          $region84: #{vnn_local_pool_pointnet.5} parent=78 // loop_footer
            %s389 = sadd.s32 %s387, 1
          $region85: #{vnn_local_pool_pointnet.5} parent=78 // loop_footer_branch
            %386 = sbr.rel target = $region81
          $region86: #{vnn_local_pool_pointnet.5} parent=78 // loop_exit
            _
          %v413 = vld [vmem:[%s284] sm:$0xff]
          %v414 = vld [vmem:[%s284 + $0x8] sm:$0xff]
          %v415 = vld [vmem:[#allocation3] sm:$0xff]
          %v416 = vld [vmem:[#allocation3 + $0x8] sm:$0xff]
          %v417 = vmax.f32 %v413, 0.0
          %v418 = vmax.f32 %v414, 0.0
          %v419 = vmax.f32 %v415, 0.0
          %v420 = vmax.f32 %v416, 0.0
          %423 = vrot.lane.b32.xlu0 %v419, 32
          %v424 = vpop.permute.xlu0 %423
          %425 = vrot.lane.b32.xlu0 %v420, 32
          %v426 = vpop.permute.xlu0 %425
          %vm429 = vcmask 261120
          %v430 = vsel %vm429, %v417, %v424
          %v431 = vsel %vm429, %v418, %v426
          %v432 = vld [vmem:[#allocation9] sm:$0xff]
          %v433 = vld [vmem:[#allocation9 + $0x8] sm:$0xff]
          %v434 = vld [vmem:[#allocation9 + $0x10] sm:$0xff]
          %v435 = vld [vmem:[#allocation9 + $0x18] sm:$0xff]
          %v436 = vld [vmem:[#allocation9 + $0x20] sm:$0xff]
          %v437 = vld [vmem:[#allocation9 + $0x28] sm:$0xff]
          %v438 = vld [vmem:[#allocation9 + $0x30] sm:$0xff]
          %v439 = vld [vmem:[#allocation9 + $0x38] sm:$0xff]
          %v440 = vld [vmem:[#allocation11] sm:$0x1]
          %v442 = vlaneseq
          %v443 = vshrl.u32 %v442, 7
          %v444 = vsub.s32 0, %v443
          %v445 = vrot.slane %v440, %v444
          %vm447 = vcmask 523264
          %v449 = vsel %vm447, %v430, 0
          %v452 = vsel %vm447, %v431, 0
          %454 = vmatprep.subr.mxu0 0.0
          %455 = vmatpush1.msra.mxu0 %v432
          %456 = vmatprep.subr.mxu0 0.0
          %457 = vmatpush1.msra.mxu0 %v433
          %458 = vmatprep.subr.mxu0 0.0
          %459 = vmatpush1.msra.mxu0 %v434
          %460 = vmatprep.subr.mxu0 0.0
          %461 = vmatpush1.msra.mxu0 %v435
          %462 = vmatprep.subr.mxu0 0.0
          %463 = vmatpush1.msra.mxu0 %v436
          %464 = vmatprep.subr.mxu0 0.0
          %465 = vmatpush1.msra.mxu0 %v437
          %466 = vmatprep.subr.mxu0 0.0
          %467 = vmatpush1.msra.mxu0 %v438
          %468 = vmatprep.subr.mxu0 0.0
          %469 = vmatpush1.msra.mxu0 %v439
          %470 = vmatprep.subr.mxu0 0.0
          %471 = vmatpush1.msra.mxu0 0.0
          %472 = vmatprep.subr.mxu0 0.0
          %473 = vmatpush1.msra.mxu0 0.0
          %474 = vmatprep.subr.mxu0 0.0
          %475 = vmatpush1.msra.mxu0 0.0
          %476 = vmatprep.subr.mxu0 0.0
          %477 = vmatpush1.msra.mxu0 0.0
          %478 = vmatprep.subr.mxu0 0.0
          %479 = vmatpush1.msra.mxu0 0.0
          %480 = vmatprep.subr.mxu0 0.0
          %481 = vmatpush1.msra.mxu0 0.0
          %482 = vmatprep.subr.mxu0 0.0
          %483 = vmatpush1.msra.mxu0 0.0
          %484 = vmatprep.subr.mxu0 0.0
          %485 = vmatpush1.msra.mxu0 0.0
          %486 = vmatprep.subr.mxu0 0.0
          %487 = vmatpush1.msra.mxu0 0.0
          %488 = vmatprep.subr.mxu0 0.0
          %489 = vmatpush1.msra.mxu0 0.0
          %490 = vmatprep.subr.mxu0 0.0
          %491 = vmatpush1.msra.mxu0 0.0
          %492 = vmatprep.subr.mxu0 0.0
          %493 = vmatpush1.msra.mxu0 0.0
          %494 = vmatprep.subr.mxu0 0.0
          %495 = vmatpush1.msra.mxu0 0.0
          %496 = vmatprep.subr.mxu0 0.0
          %497 = vmatpush1.msra.mxu0 0.0
          %498 = vmatprep.subr.mxu0 0.0
          %499 = vmatpush1.msra.mxu0 0.0
          %500 = vmatprep.subr.mxu0 0.0
          %501 = vmatpush1.msra.mxu0 0.0
          %502 = vmatprep.subr.mxu0 0.0
          %503 = vmatpush1.msra.mxu0 0.0
          %504 = vmatprep.subr.mxu0 0.0
          %505 = vmatpush1.msra.mxu0 0.0
          %506 = vmatprep.subr.mxu0 0.0
          %507 = vmatpush1.msra.mxu0 0.0
          %508 = vmatprep.subr.mxu0 0.0
          %509 = vmatpush1.msra.mxu0 0.0
          %510 = vmatprep.subr.mxu0 0.0
          %511 = vmatpush1.msra.mxu0 0.0
          %512 = vmatprep.subr.mxu0 0.0
          %513 = vmatpush1.msra.mxu0 0.0
          %514 = vmatprep.subr.mxu0 0.0
          %515 = vmatpush1.msra.mxu0 0.0
          %516 = vmatprep.subr.mxu0 0.0
          %517 = vmatpush1.msra.mxu0 0.0
          %518 = vmatprep.mubr.f32.mxu0 0.0
          %519 = vmatmul.mubr.f32.gmra.mrb[0].mxu0 %v449
          %v520 = vpop.f32.mrb[0].mxu0
          %v521 = vadd.f32 %v445, %v520
          %v522 = vpop.f32.mrb[0].mxu0
          %523 = vmatprep.mubr.f32.mxu0 0.0
          %524 = vmatmul.mubr.f32.gmra.mrb[0].mxu0 %v452
          %v525 = vpop.f32.mrb[0].mxu0
          %v526 = vadd.f32 %v445, %v525
          %v527 = vpop.f32.mrb[0].mxu0
          %528 = vdwg.mxu0
          %v529 = vmax.f32 %v521, 0.0
          %v530 = vmax.f32 %v526, 0.0
          %533 = vrot.lane.b32.xlu0 %v413, 32
          %v534 = vpop.permute.xlu0 %533
          %535 = vrot.lane.b32.xlu0 %v414, 32
          %v536 = vpop.permute.xlu0 %535
          %541 = vrot.lane.b32.xlu0 %v415, 64
          %v542 = vpop.permute.xlu0 %541
          %543 = vrot.lane.b32.xlu0 %v416, 64
          %v544 = vpop.permute.xlu0 %543
          %v547 = vsel %vm429, %v529, %v534
          %v548 = vsel %vm429, %v530, %v536
          %v549 = vsel %vm447, %v547, %v542
          %v550 = vsel %vm447, %v548, %v544
          %v551 = vld [vmem:[#allocation12] sm:$0xff]
          %v552 = vld [vmem:[#allocation12 + $0x8] sm:$0xff]
          %v553 = vld [vmem:[#allocation12 + $0x10] sm:$0xff]
          %v554 = vld [vmem:[#allocation12 + $0x18] sm:$0xff]
          %v555 = vld [vmem:[#allocation12 + $0x20] sm:$0xff]
          %v556 = vld [vmem:[#allocation12 + $0x28] sm:$0xff]
          %v557 = vld [vmem:[#allocation12 + $0x30] sm:$0xff]
          %v558 = vld [vmem:[#allocation12 + $0x38] sm:$0xff]
          %v559 = vld [vmem:[#allocation12 + $0x40] sm:$0xff]
          %v560 = vld [vmem:[#allocation12 + $0x48] sm:$0xff]
          %v561 = vld [vmem:[#allocation12 + $0x50] sm:$0xff]
          %v562 = vld [vmem:[#allocation12 + $0x58] sm:$0xff]
          %v563 = vld [vmem:[#allocation14] sm:$0x1]
          %v565 = vlaneseq
          %v566 = vshrl.u32 %v565, 7
          %v567 = vsub.s32 0, %v566
          %v568 = vrot.slane %v563, %v567
          %vm570 = vcmask 785408
          %v572 = vsel %vm570, %v549, 0
          %v575 = vsel %vm570, %v550, 0
          %577 = vmatprep.subr.mxu0 0.0
          %578 = vmatpush1.msra.mxu0 %v551
          %579 = vmatprep.subr.mxu0 0.0
          %580 = vmatpush1.msra.mxu0 %v552
          %581 = vmatprep.subr.mxu0 0.0
          %582 = vmatpush1.msra.mxu0 %v553
          %583 = vmatprep.subr.mxu0 0.0
          %584 = vmatpush1.msra.mxu0 %v554
          %585 = vmatprep.subr.mxu0 0.0
          %586 = vmatpush1.msra.mxu0 %v555
          %587 = vmatprep.subr.mxu0 0.0
          %588 = vmatpush1.msra.mxu0 %v556
          %589 = vmatprep.subr.mxu0 0.0
          %590 = vmatpush1.msra.mxu0 %v557
          %591 = vmatprep.subr.mxu0 0.0
          %592 = vmatpush1.msra.mxu0 %v558
          %593 = vmatprep.subr.mxu0 0.0
          %594 = vmatpush1.msra.mxu0 %v559
          %595 = vmatprep.subr.mxu0 0.0
          %596 = vmatpush1.msra.mxu0 %v560
          %597 = vmatprep.subr.mxu0 0.0
          %598 = vmatpush1.msra.mxu0 %v561
          %599 = vmatprep.subr.mxu0 0.0
          %600 = vmatpush1.msra.mxu0 %v562
          %601 = vmatprep.subr.mxu0 0.0
          %602 = vmatpush1.msra.mxu0 0.0
          %603 = vmatprep.subr.mxu0 0.0
          %604 = vmatpush1.msra.mxu0 0.0
          %605 = vmatprep.subr.mxu0 0.0
          %606 = vmatpush1.msra.mxu0 0.0
          %607 = vmatprep.subr.mxu0 0.0
          %608 = vmatpush1.msra.mxu0 0.0
          %609 = vmatprep.subr.mxu0 0.0
          %610 = vmatpush1.msra.mxu0 0.0
          %611 = vmatprep.subr.mxu0 0.0
          %612 = vmatpush1.msra.mxu0 0.0
          %613 = vmatprep.subr.mxu0 0.0
          %614 = vmatpush1.msra.mxu0 0.0
          %615 = vmatprep.subr.mxu0 0.0
          %616 = vmatpush1.msra.mxu0 0.0
          %617 = vmatprep.subr.mxu0 0.0
          %618 = vmatpush1.msra.mxu0 0.0
          %619 = vmatprep.subr.mxu0 0.0
          %620 = vmatpush1.msra.mxu0 0.0
          %621 = vmatprep.subr.mxu0 0.0
          %622 = vmatpush1.msra.mxu0 0.0
          %623 = vmatprep.subr.mxu0 0.0
          %624 = vmatpush1.msra.mxu0 0.0
          %625 = vmatprep.subr.mxu0 0.0
          %626 = vmatpush1.msra.mxu0 0.0
          %627 = vmatprep.subr.mxu0 0.0
          %628 = vmatpush1.msra.mxu0 0.0
          %629 = vmatprep.subr.mxu0 0.0
          %630 = vmatpush1.msra.mxu0 0.0
          %631 = vmatprep.subr.mxu0 0.0
          %632 = vmatpush1.msra.mxu0 0.0
          %633 = vmatprep.subr.mxu0 0.0
          %634 = vmatpush1.msra.mxu0 0.0
          %635 = vmatprep.subr.mxu0 0.0
          %636 = vmatpush1.msra.mxu0 0.0
          %637 = vmatprep.subr.mxu0 0.0
          %638 = vmatpush1.msra.mxu0 0.0
          %639 = vmatprep.subr.mxu0 0.0
          %640 = vmatpush1.msra.mxu0 0.0
          %641 = vmatprep.mubr.f32.mxu0 0.0
          %642 = vmatmul.mubr.f32.gmra.mrb[0].mxu0 %v572
          %v643 = vpop.f32.mrb[0].mxu0
          %v644 = vadd.f32 %v568, %v643
          %v645 = vpop.f32.mrb[0].mxu0
          %646 = vmatprep.mubr.f32.mxu0 0.0
          %647 = vmatmul.mubr.f32.gmra.mrb[0].mxu0 %v575
          %v648 = vpop.f32.mrb[0].mxu0
          %v649 = vadd.f32 %v568, %v648
          %v650 = vpop.f32.mrb[0].mxu0
          %651 = vdwg.mxu0
          %652 = vst.msk [vmem:[%s326] sm:$0xff] %vm429, %v644
          %653 = vst.msk [vmem:[%s326 + $0x8] sm:$0xff] %vm429, %v649
        $region79: #{vnn_local_pool_pointnet.5} parent=39 // pred_fallthru
          _
        %s654 = sand.u32 %s170, 1
        %s655 = scalar_lea.sflag [#allocation8], %s654
        %s656 = sand.u32 %s170, 1
        %s657 = smul.addr %s656, 16
        %s658 = scalar_lea.vmem [#allocation15], %s657
        // Predicated region
        $region87: #{vnn_local_pool_pointnet.5} parent=39 // pred_check
          %p659 = pneg %p180
        $region88: #{vnn_local_pool_pointnet.5} parent=39 // pred_check_branch
          %661 = sbr.rel (%p659) target = $region90
        $region89: #{vnn_local_pool_pointnet.5} parent=39 // pred_region
          %s662 = smul.u32 2, %s36
          %s664 = ssub.s32 256, 256
          %665 = vsyncadd %s655, %s664
          %s666 = smul.addr %s34, 2
          %s667 = sadd.s32 %s662, %s666
          %s668 = smul.addr %s667, 128
          %s669 = scalar_lea.hbm %s6, %s668
          %s670 = sshll.u32 %s658, 4
          %s671 = int_to_ptr.vmem [resolvable:$true] %s670
          %676 = dma.vmem_to_hbm [thread:$0]  %s671, 256, %s669, %s655, 128, 128, 8
        $region90: #{vnn_local_pool_pointnet.5} parent=39 // pred_fallthru
          _
      $region40: #{vnn_local_pool_pointnet.5} parent=5 // pred_fallthru
        _
      %p677 = scmp.le.s32.totalorder 2, %s24
      // Predicated region
      $region91: #{vnn_local_pool_pointnet.5} parent=5 // pred_check
        %p678 = pneg %p677
      $region92: #{vnn_local_pool_pointnet.5} parent=5 // pred_check_branch
        %680 = sbr.rel (%p678) target = $region94
      $region93: #{vnn_local_pool_pointnet.5} parent=5 // pred_region
        %s681 = ssub.s32 %s24, 2
        // Predicated region
        $region95: #{vnn_local_pool_pointnet.5} parent=93 // pred_check
          %p682 = pneg %p186
        $region96: #{vnn_local_pool_pointnet.5} parent=93 // pred_check_branch
          %684 = sbr.rel (%p682) target = $region98
        $region97: #{vnn_local_pool_pointnet.5} parent=93 // pred_region
          %s685 = sand.u32 %s171, 1
          %s686 = scalar_lea.sflag [#allocation8], %s685
          %s687 = sand.u32 %s171, 1
          %s688 = smul.addr %s687, 16
          %s689 = scalar_lea.vmem [#allocation15], %s688
          %690 = dma.done %s686, 256
        $region98: #{vnn_local_pool_pointnet.5} parent=93 // pred_fallthru
          _
      $region94: #{vnn_local_pool_pointnet.5} parent=5 // pred_fallthru
        _
    $region6: #{vnn_local_pool_pointnet.5} parent=1 // loop_footer
      %s28 = sadd.s32 1, %s24
    $region7: #{vnn_local_pool_pointnet.5} parent=1 // loop_footer_branch
      %23 = sbr.rel target = $region3
    $region8: #{vnn_local_pool_pointnet.5} parent=1 // loop_exit
      _
    %691 = vsyncpa [#allocation7], 1
    %s692 = scalar_lea.sflag [#allocation7], 1
    %693 = vsyncpa %s692, 1
    %694 = vsyncpa [#allocation10], 1
    %695 = vsyncpa [#allocation13], 1
    %696 = vsyncpa [#allocation8], 1
    %s697 = scalar_lea.sflag [#allocation8], 1
    %698 = vsyncpa %s697, 1

// kernel: vnn_local_pool_pointnet.4
$region0: #{vnn_local_pool_pointnet.4}
  #allocation0 [shape = 'u32[]', space=smem, size = 0x4, offset = 0x4, fixed_abs, tag = 'smem constant byte address 0x4 - core index']
  #allocation1 [shape = 'u32[144,128]{1,0:T(1,128)}', space=vmem, size = 0x12000, scoped, tag = 'internal scratch']
  %s0 = inlined_call_operand.hbm [shape: f32[2,16,3], index: 0, kind: input, shape index: {}]
  %s1 = inlined_call_operand.hbm [shape: f32[3,64], index: 1, kind: input, shape index: {}]
  %s2 = inlined_call_operand.hbm [shape: f32[1,64], index: 2, kind: input, shape index: {}]
  %s3 = inlined_call_operand.hbm [shape: f32[64,32], index: 3, kind: input, shape index: {}]
  %s4 = inlined_call_operand.hbm [shape: f32[1,32], index: 4, kind: input, shape index: {}]
  %s5 = inlined_call_operand.hbm [shape: f32[96,32], index: 5, kind: input, shape index: {}]
  %s6 = inlined_call_operand.hbm [shape: f32[1,32], index: 6, kind: input, shape index: {}]
  %s7 = inlined_call_operand.hbm [shape: f32[2,16,32], index: 7, kind: output, shape index: {}]
  %s8 = sld [smem:[#allocation0]]
  $region89: #{vnn_local_pool_pointnet.4} parent=0
    _
  %s10 = ssub.s32 1, %s8
  %s11 = scalar_select 0, %s10, %s8
  $region1: #{vnn_local_pool_pointnet.4} parent=0
    #allocation2 [shape = 'u8[16384]{0}', space=vmem, size = 0x4000, scoped, tag = 'input window, operand 0']
    #allocation3 [shape = 's32[2]{0}', space=sflag, size = 0x8, scoped, tag = 'scoped memory for vnn_local_pool_pointnet.4']
    #allocation4 [shape = 's32[2]{0}', space=sflag, size = 0x8, scoped, tag = 'scoped memory for vnn_local_pool_pointnet.4']
    #allocation5 [shape = 'u8[2048]{0}', space=vmem, size = 0x800, scoped, tag = 'input window, operand 1, single buffered']
    #allocation6 [shape = 's32[1]{0}', space=sflag, size = 0x4, scoped, tag = 'scoped memory for vnn_local_pool_pointnet.4']
    #allocation7 [shape = 'u8[512]{0}', space=vmem, size = 0x400, scoped, tag = 'input window, operand 2, single buffered']
    #allocation8 [shape = 'u8[32768]{0}', space=vmem, size = 0x8000, scoped, tag = 'input window, operand 3, single buffered']
    #allocation9 [shape = 's32[1]{0}', space=sflag, size = 0x4, scoped, tag = 'scoped memory for vnn_local_pool_pointnet.4']
    #allocation10 [shape = 'u8[512]{0}', space=vmem, size = 0x400, scoped, tag = 'input window, operand 4, single buffered']
    #allocation11 [shape = 'u8[49152]{0}', space=vmem, size = 0xc000, scoped, tag = 'input window, operand 5, single buffered']
    #allocation12 [shape = 's32[1]{0}', space=sflag, size = 0x4, scoped, tag = 'scoped memory for vnn_local_pool_pointnet.4']
    #allocation13 [shape = 'u8[512]{0}', space=vmem, size = 0x400, scoped, tag = 'input window, operand 6, single buffered']
    #allocation14 [shape = 'u8[16384]{0}', space=vmem, size = 0x4000, scoped, tag = 'output window, operand 0']
    %12 = vsyncpa [#allocation3], 0
    %s13 = scalar_lea.sflag [#allocation3], 1
    %14 = vsyncpa %s13, 0
    %15 = vsyncpa [#allocation6], 0
    %16 = vsyncpa [#allocation9], 0
    %17 = vsyncpa [#allocation12], 0
    %18 = vsyncpa [#allocation4], 0
    %s19 = scalar_lea.sflag [#allocation4], 1
    %20 = vsyncpa %s19, 0
    loop: start=0, step=1, limit=4
    $region2: #{vnn_local_pool_pointnet.4} parent=1 // loop_pre_header
      _
    $region3: #{vnn_local_pool_pointnet.4} parent=1 // loop_header
      %s22 = sphi 0, %s26
      %p23 = scmp.ge.s32.totalorder %s22, 4
      %s29 = sphi 0, %s41
      %s30 = sphi 0, %s37
      %s31 = sphi 0, %s29
      %s32 = sphi 0, %s30
      %s33 = sphi 0, %s31
      %s34 = sphi 0, %s32
      %s46 = sphi 0, %s48
      %s49 = sphi 0, %s46
      %s50 = sphi 0, %s49
      %s66 = sphi 0, %s50
      %s70 = sphi 0, %s70
      %s72 = sphi 0, %s70
      %s73 = sphi 0, %s72
      %s87 = sphi 0, %s73
      %s91 = sphi 0, %s91
      %s93 = sphi 0, %s91
      %s94 = sphi 0, %s93
      %s108 = sphi 0, %s94
      %s112 = sphi 0, %s112
      %s114 = sphi 0, %s112
      %s115 = sphi 0, %s114
      %s129 = sphi 0, %s115
      %s133 = sphi 0, %s133
      %s135 = sphi 0, %s133
      %s136 = sphi 0, %s135
      %s150 = sphi 0, %s136
      %s154 = sphi 0, %s154
      %s156 = sphi 0, %s154
      %s157 = sphi 0, %s156
      %s171 = sphi 0, %s157
      %s175 = sphi 0, %s175
      %s177 = sphi 0, %s175
      %s178 = sphi 0, %s177
      %s192 = sphi 0, %s178
      %s200 = sphi 0, %s202
      %s203 = sphi 0, %s200
      %s204 = sphi 0, %s203
      %s220 = sphi 0, %s204
    $region4: #{vnn_local_pool_pointnet.4} parent=1 // loop_header_branch
      %25 = sbr.rel (%p23) target = $region8
    $region5: #{vnn_local_pool_pointnet.4} parent=1 // loop_body
      %s27 = ssub.s32 %s22, 1
      %s28 = ssub.s32 %s22, 2
      %s35 = sadd.s32 1, %s30
      %p36 = scmp.ge.s32.totalorder %s35, 1
      %s37 = scalar_select %p36, 0, %s35
      %s38 = sadd.s32 1, %s29
      %s39 = scalar_select %p36, %s38, %s29
      %p40 = scmp.ge.s32.totalorder %s39, 2
      %s41 = scalar_select %p40, 0, %s39
      %s42 = ssub.s32 %s29, %s41
      %s43 = ssub.s32 %s30, %s37
      %s44 = sor.u32 %s42, %s43
      %p45 = scmp.eq.s32.totalorder %s44, 0
      %s47 = sadd.s32 %s46, 1
      %s48 = scalar_select %p45, %s46, %s47
      %p51 = pneg %p45
      %p52 = scmp.eq.s32.totalorder %s22, 1
      %p53 = por %p51, %p52
      %p54 = scmp.ne.s32.totalorder %s46, %s49
      %p55 = scmp.eq.s32.totalorder %s22, 0
      %p56 = por %p54, %p55
      %p57 = scmp.ne.s32.totalorder %s46, %s49
      %p58 = scmp.eq.s32.totalorder %s27, 1
      %p59 = por %p57, %p58
      %p60 = scmp.ne.s32.totalorder %s49, %s50
      %p61 = scmp.eq.s32.totalorder %s27, 0
      %p62 = por %p60, %p61
      %p63 = scmp.ne.s32.totalorder %s49, %s50
      %p64 = scmp.eq.s32.totalorder %s28, 1
      %p65 = por %p63, %p64
      %p67 = scmp.ne.s32.totalorder %s50, %s66
      %p68 = scmp.eq.s32.totalorder %s28, 0
      %p69 = por %p67, %p68
      %s71 = sadd.s32 %s70, 1
      %p74 = scmp.eq.s32.totalorder %s22, 1
      %p75 = scmp.ne.s32.totalorder %s70, %s72
      %p76 = scmp.eq.s32.totalorder %s22, 0
      %p77 = por %p75, %p76
      %p78 = scmp.ne.s32.totalorder %s70, %s72
      %p79 = scmp.eq.s32.totalorder %s27, 1
      %p80 = por %p78, %p79
      %p81 = scmp.ne.s32.totalorder %s72, %s73
      %p82 = scmp.eq.s32.totalorder %s27, 0
      %p83 = por %p81, %p82
      %p84 = scmp.ne.s32.totalorder %s72, %s73
      %p85 = scmp.eq.s32.totalorder %s28, 1
      %p86 = por %p84, %p85
      %p88 = scmp.ne.s32.totalorder %s73, %s87
      %p89 = scmp.eq.s32.totalorder %s28, 0
      %p90 = por %p88, %p89
      %s92 = sadd.s32 %s91, 1
      %p95 = scmp.eq.s32.totalorder %s22, 1
      %p96 = scmp.ne.s32.totalorder %s91, %s93
      %p97 = scmp.eq.s32.totalorder %s22, 0
      %p98 = por %p96, %p97
      %p99 = scmp.ne.s32.totalorder %s91, %s93
      %p100 = scmp.eq.s32.totalorder %s27, 1
      %p101 = por %p99, %p100
      %p102 = scmp.ne.s32.totalorder %s93, %s94
      %p103 = scmp.eq.s32.totalorder %s27, 0
      %p104 = por %p102, %p103
      %p105 = scmp.ne.s32.totalorder %s93, %s94
      %p106 = scmp.eq.s32.totalorder %s28, 1
      %p107 = por %p105, %p106
      %p109 = scmp.ne.s32.totalorder %s94, %s108
      %p110 = scmp.eq.s32.totalorder %s28, 0
      %p111 = por %p109, %p110
      %s113 = sadd.s32 %s112, 1
      %p116 = scmp.eq.s32.totalorder %s22, 1
      %p117 = scmp.ne.s32.totalorder %s112, %s114
      %p118 = scmp.eq.s32.totalorder %s22, 0
      %p119 = por %p117, %p118
      %p120 = scmp.ne.s32.totalorder %s112, %s114
      %p121 = scmp.eq.s32.totalorder %s27, 1
      %p122 = por %p120, %p121
      %p123 = scmp.ne.s32.totalorder %s114, %s115
      %p124 = scmp.eq.s32.totalorder %s27, 0
      %p125 = por %p123, %p124
      %p126 = scmp.ne.s32.totalorder %s114, %s115
      %p127 = scmp.eq.s32.totalorder %s28, 1
      %p128 = por %p126, %p127
      %p130 = scmp.ne.s32.totalorder %s115, %s129
      %p131 = scmp.eq.s32.totalorder %s28, 0
      %p132 = por %p130, %p131
      %s134 = sadd.s32 %s133, 1
      %p137 = scmp.eq.s32.totalorder %s22, 1
      %p138 = scmp.ne.s32.totalorder %s133, %s135
      %p139 = scmp.eq.s32.totalorder %s22, 0
      %p140 = por %p138, %p139
      %p141 = scmp.ne.s32.totalorder %s133, %s135
      %p142 = scmp.eq.s32.totalorder %s27, 1
      %p143 = por %p141, %p142
      %p144 = scmp.ne.s32.totalorder %s135, %s136
      %p145 = scmp.eq.s32.totalorder %s27, 0
      %p146 = por %p144, %p145
      %p147 = scmp.ne.s32.totalorder %s135, %s136
      %p148 = scmp.eq.s32.totalorder %s28, 1
      %p149 = por %p147, %p148
      %p151 = scmp.ne.s32.totalorder %s136, %s150
      %p152 = scmp.eq.s32.totalorder %s28, 0
      %p153 = por %p151, %p152
      %s155 = sadd.s32 %s154, 1
      %p158 = scmp.eq.s32.totalorder %s22, 1
      %p159 = scmp.ne.s32.totalorder %s154, %s156
      %p160 = scmp.eq.s32.totalorder %s22, 0
      %p161 = por %p159, %p160
      %p162 = scmp.ne.s32.totalorder %s154, %s156
      %p163 = scmp.eq.s32.totalorder %s27, 1
      %p164 = por %p162, %p163
      %p165 = scmp.ne.s32.totalorder %s156, %s157
      %p166 = scmp.eq.s32.totalorder %s27, 0
      %p167 = por %p165, %p166
      %p168 = scmp.ne.s32.totalorder %s156, %s157
      %p169 = scmp.eq.s32.totalorder %s28, 1
      %p170 = por %p168, %p169
      %p172 = scmp.ne.s32.totalorder %s157, %s171
      %p173 = scmp.eq.s32.totalorder %s28, 0
      %p174 = por %p172, %p173
      %s176 = sadd.s32 %s175, 1
      %p179 = scmp.eq.s32.totalorder %s22, 1
      %p180 = scmp.ne.s32.totalorder %s175, %s177
      %p181 = scmp.eq.s32.totalorder %s22, 0
      %p182 = por %p180, %p181
      %p183 = scmp.ne.s32.totalorder %s175, %s177
      %p184 = scmp.eq.s32.totalorder %s27, 1
      %p185 = por %p183, %p184
      %p186 = scmp.ne.s32.totalorder %s177, %s178
      %p187 = scmp.eq.s32.totalorder %s27, 0
      %p188 = por %p186, %p187
      %p189 = scmp.ne.s32.totalorder %s177, %s178
      %p190 = scmp.eq.s32.totalorder %s28, 1
      %p191 = por %p189, %p190
      %p193 = scmp.ne.s32.totalorder %s178, %s192
      %p194 = scmp.eq.s32.totalorder %s28, 0
      %p195 = por %p193, %p194
      %s196 = ssub.s32 %s29, %s41
      %s197 = ssub.s32 %s30, %s37
      %s198 = sor.u32 %s196, %s197
      %p199 = scmp.eq.s32.totalorder %s198, 0
      %s201 = sadd.s32 %s200, 1
      %s202 = scalar_select %p199, %s200, %s201
      %p205 = pneg %p199
      %p206 = scmp.eq.s32.totalorder %s22, 1
      %p207 = por %p205, %p206
      %p208 = scmp.ne.s32.totalorder %s200, %s203
      %p209 = scmp.eq.s32.totalorder %s22, 0
      %p210 = por %p208, %p209
      %p211 = scmp.ne.s32.totalorder %s200, %s203
      %p212 = scmp.eq.s32.totalorder %s27, 1
      %p213 = por %p211, %p212
      %p214 = scmp.ne.s32.totalorder %s203, %s204
      %p215 = scmp.eq.s32.totalorder %s27, 0
      %p216 = por %p214, %p215
      %p217 = scmp.ne.s32.totalorder %s203, %s204
      %p218 = scmp.eq.s32.totalorder %s28, 1
      %p219 = por %p217, %p218
      %p221 = scmp.ne.s32.totalorder %s204, %s220
      %p222 = scmp.eq.s32.totalorder %s28, 0
      %p223 = por %p221, %p222
      %p224 = scmp.le.s32.totalorder 1, %s22
      %p225 = scmp.lt.s32.totalorder %s22, 3
      %p226 = pnand %p224, %p225
      %p227 = pneg %p226
      // Predicated region
      $region9: #{vnn_local_pool_pointnet.4} parent=5 // pred_check
        _
      $region10: #{vnn_local_pool_pointnet.4} parent=5 // pred_check_branch
        %229 = sbr.rel (%p226) target = $region12
      $region11: #{vnn_local_pool_pointnet.4} parent=5 // pred_region
        %s230 = ssub.s32 %s22, 1
        // Predicated region
        $region13: #{vnn_local_pool_pointnet.4} parent=11 // pred_check
          %p231 = pneg %p83
        $region14: #{vnn_local_pool_pointnet.4} parent=11 // pred_check_branch
          %233 = sbr.rel (%p231) target = $region16
        $region15: #{vnn_local_pool_pointnet.4} parent=11 // pred_region
          %s235 = ssub.s32 64, 64
          %236 = vsyncadd [#allocation6], %s235
          %s238 = sshll.u32 [#allocation5], 4
          %s239 = int_to_ptr.vmem [resolvable:$true] %s238
          %241 = dma.hbm_to_vmem [thread:$0]  %s1, 64, %s239, [#allocation6]
        $region16: #{vnn_local_pool_pointnet.4} parent=11 // pred_fallthru
          _
        // Predicated region
        $region17: #{vnn_local_pool_pointnet.4} parent=11 // pred_check
          %p242 = pneg %p104
        $region18: #{vnn_local_pool_pointnet.4} parent=11 // pred_check_branch
          %244 = sbr.rel (%p242) target = $region20
        $region19: #{vnn_local_pool_pointnet.4} parent=11 // pred_region
          %s246 = ssub.s32 16, 16
          %247 = vsyncadd [#allocation6], %s246
          %s249 = sshll.u32 [#allocation7], 4
          %s250 = int_to_ptr.vmem [resolvable:$true] %s249
          %252 = dma.hbm_to_vmem [thread:$0]  %s2, 16, %s250, [#allocation6]
        $region20: #{vnn_local_pool_pointnet.4} parent=11 // pred_fallthru
          _
        // Predicated region
        $region21: #{vnn_local_pool_pointnet.4} parent=11 // pred_check
          %p253 = pneg %p125
        $region22: #{vnn_local_pool_pointnet.4} parent=11 // pred_check_branch
          %255 = sbr.rel (%p253) target = $region24
        $region23: #{vnn_local_pool_pointnet.4} parent=11 // pred_region
          %s257 = ssub.s32 1024, 1024
          %258 = vsyncadd [#allocation9], %s257
          %s259 = sshll.u32 [#allocation8], 4
          %s260 = int_to_ptr.vmem [resolvable:$true] %s259
          %265 = dma.hbm_to_vmem [thread:$0]  %s3, 1024, %s260, [#allocation9], 128, 128, 8
        $region24: #{vnn_local_pool_pointnet.4} parent=11 // pred_fallthru
          _
        // Predicated region
        $region25: #{vnn_local_pool_pointnet.4} parent=11 // pred_check
          %p266 = pneg %p146
        $region26: #{vnn_local_pool_pointnet.4} parent=11 // pred_check_branch
          %268 = sbr.rel (%p266) target = $region28
        $region27: #{vnn_local_pool_pointnet.4} parent=11 // pred_region
          %s270 = ssub.s32 16, 16
          %271 = vsyncadd [#allocation9], %s270
          %s273 = sshll.u32 [#allocation10], 4
          %s274 = int_to_ptr.vmem [resolvable:$true] %s273
          %276 = dma.hbm_to_vmem [thread:$0]  %s4, 16, %s274, [#allocation9]
        $region28: #{vnn_local_pool_pointnet.4} parent=11 // pred_fallthru
          _
        // Predicated region
        $region29: #{vnn_local_pool_pointnet.4} parent=11 // pred_check
          %p277 = pneg %p167
        $region30: #{vnn_local_pool_pointnet.4} parent=11 // pred_check_branch
          %279 = sbr.rel (%p277) target = $region32
        $region31: #{vnn_local_pool_pointnet.4} parent=11 // pred_region
          %s281 = ssub.s32 1536, 1536
          %282 = vsyncadd [#allocation12], %s281
          %s283 = sshll.u32 [#allocation11], 4
          %s284 = int_to_ptr.vmem [resolvable:$true] %s283
          %289 = dma.hbm_to_vmem [thread:$0]  %s5, 1536, %s284, [#allocation12], 128, 128, 8
        $region32: #{vnn_local_pool_pointnet.4} parent=11 // pred_fallthru
          _
        // Predicated region
        $region33: #{vnn_local_pool_pointnet.4} parent=11 // pred_check
          %p290 = pneg %p188
        $region34: #{vnn_local_pool_pointnet.4} parent=11 // pred_check_branch
          %292 = sbr.rel (%p290) target = $region36
        $region35: #{vnn_local_pool_pointnet.4} parent=11 // pred_region
          %s294 = ssub.s32 16, 16
          %295 = vsyncadd [#allocation12], %s294
          %s297 = sshll.u32 [#allocation13], 4
          %s298 = int_to_ptr.vmem [resolvable:$true] %s297
          %300 = dma.hbm_to_vmem [thread:$0]  %s6, 16, %s298, [#allocation12]
        $region36: #{vnn_local_pool_pointnet.4} parent=11 // pred_fallthru
          _
      $region12: #{vnn_local_pool_pointnet.4} parent=5 // pred_fallthru
        _
      %p301 = scmp.lt.s32.totalorder %s22, 2
      // Predicated region
      $region37: #{vnn_local_pool_pointnet.4} parent=5 // pred_check
        %p302 = pneg %p301
      $region38: #{vnn_local_pool_pointnet.4} parent=5 // pred_check_branch
        %304 = sbr.rel (%p302) target = $region40
      $region39: #{vnn_local_pool_pointnet.4} parent=5 // pred_region
        // Predicated region
        $region41: #{vnn_local_pool_pointnet.4} parent=39 // pred_check
          %p305 = pneg %p56
        $region42: #{vnn_local_pool_pointnet.4} parent=39 // pred_check_branch
          %307 = sbr.rel (%p305) target = $region44
        $region43: #{vnn_local_pool_pointnet.4} parent=39 // pred_region
          %s308 = sand.u32 %s46, 1
          %s309 = scalar_lea.sflag [#allocation3], %s308
          %s310 = sand.u32 %s46, 1
          %s311 = smul.addr %s310, 16
          %s312 = scalar_lea.vmem [#allocation2], %s311
          %s313 = smul.u32 2, %s30
          %s315 = ssub.s32 256, 256
          %316 = vsyncadd %s309, %s315
          %s317 = smul.addr %s29, 2
          %s318 = sadd.s32 %s313, %s317
          %s319 = smul.addr %s318, 128
          %s320 = scalar_lea.hbm %s0, %s319
          %s321 = sshll.u32 %s312, 4
          %s322 = int_to_ptr.vmem [resolvable:$true] %s321
          %327 = dma.hbm_to_vmem [thread:$0]  %s320, 256, %s322, %s309, 128, 128, 8
        $region44: #{vnn_local_pool_pointnet.4} parent=39 // pred_fallthru
          _
      $region40: #{vnn_local_pool_pointnet.4} parent=5 // pred_fallthru
        _
      %p328 = scmp.le.s32.totalorder 1, %s22
      %p329 = scmp.lt.s32.totalorder %s22, 3
      %p330 = pnand %p328, %p329
      %p331 = pneg %p330
      // Predicated region
      $region45: #{vnn_local_pool_pointnet.4} parent=5 // pred_check
        _
      $region46: #{vnn_local_pool_pointnet.4} parent=5 // pred_check_branch
        %333 = sbr.rel (%p330) target = $region48
      $region47: #{vnn_local_pool_pointnet.4} parent=5 // pred_region
        %s334 = ssub.s32 %s22, 1
        %s335 = sand.u32 %s49, 1
        %s336 = scalar_lea.sflag [#allocation3], %s335
        %s337 = sand.u32 %s49, 1
        %s338 = smul.addr %s337, 16
        %s339 = scalar_lea.vmem [#allocation2], %s338
        // Predicated region
        $region49: #{vnn_local_pool_pointnet.4} parent=47 // pred_check
          %p340 = pneg %p62
        $region50: #{vnn_local_pool_pointnet.4} parent=47 // pred_check_branch
          %342 = sbr.rel (%p340) target = $region52
        $region51: #{vnn_local_pool_pointnet.4} parent=47 // pred_region
          %343 = dma.done %s336, 256
        $region52: #{vnn_local_pool_pointnet.4} parent=47 // pred_fallthru
          _
        // Predicated region
        $region53: #{vnn_local_pool_pointnet.4} parent=47 // pred_check
          %p344 = pneg %p83
        $region54: #{vnn_local_pool_pointnet.4} parent=47 // pred_check_branch
          %346 = sbr.rel (%p344) target = $region56
        $region55: #{vnn_local_pool_pointnet.4} parent=47 // pred_region
          %347 = dma.done [#allocation6], 64
        $region56: #{vnn_local_pool_pointnet.4} parent=47 // pred_fallthru
          _
        // Predicated region
        $region57: #{vnn_local_pool_pointnet.4} parent=47 // pred_check
          %p348 = pneg %p104
        $region58: #{vnn_local_pool_pointnet.4} parent=47 // pred_check_branch
          %350 = sbr.rel (%p348) target = $region60
        $region59: #{vnn_local_pool_pointnet.4} parent=47 // pred_region
          %351 = dma.done [#allocation6], 16
        $region60: #{vnn_local_pool_pointnet.4} parent=47 // pred_fallthru
          _
        // Predicated region
        $region61: #{vnn_local_pool_pointnet.4} parent=47 // pred_check
          %p352 = pneg %p125
        $region62: #{vnn_local_pool_pointnet.4} parent=47 // pred_check_branch
          %354 = sbr.rel (%p352) target = $region64
        $region63: #{vnn_local_pool_pointnet.4} parent=47 // pred_region
          %355 = dma.done [#allocation9], 1024
        $region64: #{vnn_local_pool_pointnet.4} parent=47 // pred_fallthru
          _
        // Predicated region
        $region65: #{vnn_local_pool_pointnet.4} parent=47 // pred_check
          %p356 = pneg %p146
        $region66: #{vnn_local_pool_pointnet.4} parent=47 // pred_check_branch
          %358 = sbr.rel (%p356) target = $region68
        $region67: #{vnn_local_pool_pointnet.4} parent=47 // pred_region
          %359 = dma.done [#allocation9], 16
        $region68: #{vnn_local_pool_pointnet.4} parent=47 // pred_fallthru
          _
        // Predicated region
        $region69: #{vnn_local_pool_pointnet.4} parent=47 // pred_check
          %p360 = pneg %p167
        $region70: #{vnn_local_pool_pointnet.4} parent=47 // pred_check_branch
          %362 = sbr.rel (%p360) target = $region72
        $region71: #{vnn_local_pool_pointnet.4} parent=47 // pred_region
          %363 = dma.done [#allocation12], 1536
        $region72: #{vnn_local_pool_pointnet.4} parent=47 // pred_fallthru
          _
        // Predicated region
        $region73: #{vnn_local_pool_pointnet.4} parent=47 // pred_check
          %p364 = pneg %p188
        $region74: #{vnn_local_pool_pointnet.4} parent=47 // pred_check_branch
          %366 = sbr.rel (%p364) target = $region76
        $region75: #{vnn_local_pool_pointnet.4} parent=47 // pred_region
          %367 = dma.done [#allocation12], 16
        $region76: #{vnn_local_pool_pointnet.4} parent=47 // pred_fallthru
          _
        %s368 = sand.u32 %s49, 1
        %s369 = scalar_lea.sflag [#allocation3], %s368
        %s370 = sand.u32 %s49, 1
        %s371 = smul.addr %s370, 16
        %s372 = scalar_lea.vmem [#allocation2], %s371
        %p373 = pneg %p62
        %p374 = pneg %p59
        %p375 = pneg %p83
        %p376 = pneg %p80
        %p377 = pneg %p104
        %p378 = pneg %p101
        %p379 = pneg %p125
        %p380 = pneg %p122
        %p381 = pneg %p146
        %p382 = pneg %p143
        %p383 = pneg %p167
        %p384 = pneg %p164
        %p385 = pneg %p188
        %p386 = pneg %p185
        %p387 = pneg %p216
        %p388 = pneg %p213
        %s389 = sand.u32 %s203, 1
        %s390 = scalar_lea.sflag [#allocation4], %s389
        %s391 = sand.u32 %s203, 1
        %s392 = smul.addr %s391, 16
        %s393 = scalar_lea.vmem [#allocation14], %s392
        %s394 = smul.u32 2, %s32
        %s395 = smul.u32 2, %s32
        %v396 = vld [vmem:[%s339] sm:$0xff]
        %v397 = vld [vmem:[%s339 + $0x8] sm:$0xff]
        %v398 = vld [vmem:[#allocation5] sm:$0x7]
        %v399 = vld [vmem:[#allocation7] sm:$0x1]
        %v401 = vlaneseq
        %v402 = vshrl.u32 %v401, 7
        %v403 = vsub.s32 0, %v402
        %v404 = vrot.slane %v399, %v403
        %vm406 = vcmask 23552
        %v408 = vsel %vm406, %v396, 0
        %v411 = vsel %vm406, %v397, 0
        %vm413 = vcmask 1042432
        %v415 = vsel %vm413, %v398, 0
        %417 = vmatprep.subr.mxu0 0.0
        %418 = vmatpush1.msra.mxu0 %v415
        %419 = vmatprep.subr.mxu0 0.0
        %420 = vmatpush1.msra.mxu0 0.0
        %421 = vmatprep.subr.mxu0 0.0
        %422 = vmatpush1.msra.mxu0 0.0
        %423 = vmatprep.subr.mxu0 0.0
        %424 = vmatpush1.msra.mxu0 0.0
        %425 = vmatprep.subr.mxu0 0.0
        %426 = vmatpush1.msra.mxu0 0.0
        %427 = vmatprep.subr.mxu0 0.0
        %428 = vmatpush1.msra.mxu0 0.0
        %429 = vmatprep.subr.mxu0 0.0
        %430 = vmatpush1.msra.mxu0 0.0
        %431 = vmatprep.subr.mxu0 0.0
        %432 = vmatpush1.msra.mxu0 0.0
        %433 = vmatprep.subr.mxu0 0.0
        %434 = vmatpush1.msra.mxu0 0.0
        %435 = vmatprep.subr.mxu0 0.0
        %436 = vmatpush1.msra.mxu0 0.0
        %437 = vmatprep.subr.mxu0 0.0
        %438 = vmatpush1.msra.mxu0 0.0
        %439 = vmatprep.subr.mxu0 0.0
        %440 = vmatpush1.msra.mxu0 0.0
        %441 = vmatprep.subr.mxu0 0.0
        %442 = vmatpush1.msra.mxu0 0.0
        %443 = vmatprep.subr.mxu0 0.0
        %444 = vmatpush1.msra.mxu0 0.0
        %445 = vmatprep.subr.mxu0 0.0
        %446 = vmatpush1.msra.mxu0 0.0
        %447 = vmatprep.subr.mxu0 0.0
        %448 = vmatpush1.msra.mxu0 0.0
        %449 = vmatprep.subr.mxu0 0.0
        %450 = vmatpush1.msra.mxu0 0.0
        %451 = vmatprep.subr.mxu0 0.0
        %452 = vmatpush1.msra.mxu0 0.0
        %453 = vmatprep.subr.mxu0 0.0
        %454 = vmatpush1.msra.mxu0 0.0
        %455 = vmatprep.subr.mxu0 0.0
        %456 = vmatpush1.msra.mxu0 0.0
        %457 = vmatprep.subr.mxu0 0.0
        %458 = vmatpush1.msra.mxu0 0.0
        %459 = vmatprep.subr.mxu0 0.0
        %460 = vmatpush1.msra.mxu0 0.0
        %461 = vmatprep.subr.mxu0 0.0
        %462 = vmatpush1.msra.mxu0 0.0
        %463 = vmatprep.subr.mxu0 0.0
        %464 = vmatpush1.msra.mxu0 0.0
        %465 = vmatprep.subr.mxu0 0.0
        %466 = vmatpush1.msra.mxu0 0.0
        %467 = vmatprep.subr.mxu0 0.0
        %468 = vmatpush1.msra.mxu0 0.0
        %469 = vmatprep.subr.mxu0 0.0
        %470 = vmatpush1.msra.mxu0 0.0
        %471 = vmatprep.subr.mxu0 0.0
        %472 = vmatpush1.msra.mxu0 0.0
        %473 = vmatprep.subr.mxu0 0.0
        %474 = vmatpush1.msra.mxu0 0.0
        %475 = vmatprep.subr.mxu0 0.0
        %476 = vmatpush1.msra.mxu0 0.0
        %477 = vmatprep.subr.mxu0 0.0
        %478 = vmatpush1.msra.mxu0 0.0
        %479 = vmatprep.subr.mxu0 0.0
        %480 = vmatpush1.msra.mxu0 0.0
        %481 = vmatprep.mubr.f32.mxu0 0.0
        %482 = vmatmul.mubr.f32.gmra.mrb[0].mxu0 %v408
        %v483 = vpop.f32.mrb[0].mxu0
        %v484 = vadd.f32 %v404, %v483
        %v485 = vpop.f32.mrb[0].mxu0
        %486 = vmatprep.mubr.f32.mxu0 0.0
        %487 = vmatmul.mubr.f32.gmra.mrb[0].mxu0 %v411
        %v488 = vpop.f32.mrb[0].mxu0
        %v489 = vadd.f32 %v404, %v488
        %v490 = vpop.f32.mrb[0].mxu0
        %491 = vdwg.mxu0
        %v492 = vmax.f32 %v484, 0.0
        %v493 = vmax.f32 %v489, 0.0
        %v494 = vld [vmem:[#allocation8] sm:$0xff]
        %v495 = vld [vmem:[#allocation8 + $0x8] sm:$0xff]
        %v496 = vld [vmem:[#allocation8 + $0x10] sm:$0xff]
        %v497 = vld [vmem:[#allocation8 + $0x18] sm:$0xff]
        %v498 = vld [vmem:[#allocation8 + $0x20] sm:$0xff]
        %v499 = vld [vmem:[#allocation8 + $0x28] sm:$0xff]
        %v500 = vld [vmem:[#allocation8 + $0x30] sm:$0xff]
        %v501 = vld [vmem:[#allocation8 + $0x38] sm:$0xff]
        %v502 = vld [vmem:[#allocation10] sm:$0x1]
        %v504 = vlaneseq
        %v505 = vshrl.u32 %v504, 7
        %v506 = vsub.s32 0, %v505
        %v507 = vrot.slane %v502, %v506
        %vm509 = vcmask 523264
        %v511 = vsel %vm509, %v492, 0
        %v514 = vsel %vm509, %v493, 0
        %516 = vmatprep.subr.mxu0 0.0
        %517 = vmatpush1.msra.mxu0 %v494
        %518 = vmatprep.subr.mxu0 0.0
        %519 = vmatpush1.msra.mxu0 %v495
        %520 = vmatprep.subr.mxu0 0.0
        %521 = vmatpush1.msra.mxu0 %v496
        %522 = vmatprep.subr.mxu0 0.0
        %523 = vmatpush1.msra.mxu0 %v497
        %524 = vmatprep.subr.mxu0 0.0
        %525 = vmatpush1.msra.mxu0 %v498
        %526 = vmatprep.subr.mxu0 0.0
        %527 = vmatpush1.msra.mxu0 %v499
        %528 = vmatprep.subr.mxu0 0.0
        %529 = vmatpush1.msra.mxu0 %v500
        %530 = vmatprep.subr.mxu0 0.0
        %531 = vmatpush1.msra.mxu0 %v501
        %532 = vmatprep.subr.mxu0 0.0
        %533 = vmatpush1.msra.mxu0 0.0
        %534 = vmatprep.subr.mxu0 0.0
        %535 = vmatpush1.msra.mxu0 0.0
        %536 = vmatprep.subr.mxu0 0.0
        %537 = vmatpush1.msra.mxu0 0.0
        %538 = vmatprep.subr.mxu0 0.0
        %539 = vmatpush1.msra.mxu0 0.0
        %540 = vmatprep.subr.mxu0 0.0
        %541 = vmatpush1.msra.mxu0 0.0
        %542 = vmatprep.subr.mxu0 0.0
        %543 = vmatpush1.msra.mxu0 0.0
        %544 = vmatprep.subr.mxu0 0.0
        %545 = vmatpush1.msra.mxu0 0.0
        %546 = vmatprep.subr.mxu0 0.0
        %547 = vmatpush1.msra.mxu0 0.0
        %548 = vmatprep.subr.mxu0 0.0
        %549 = vmatpush1.msra.mxu0 0.0
        %550 = vmatprep.subr.mxu0 0.0
        %551 = vmatpush1.msra.mxu0 0.0
        %552 = vmatprep.subr.mxu0 0.0
        %553 = vmatpush1.msra.mxu0 0.0
        %554 = vmatprep.subr.mxu0 0.0
        %555 = vmatpush1.msra.mxu0 0.0
        %556 = vmatprep.subr.mxu0 0.0
        %557 = vmatpush1.msra.mxu0 0.0
        %558 = vmatprep.subr.mxu0 0.0
        %559 = vmatpush1.msra.mxu0 0.0
        %560 = vmatprep.subr.mxu0 0.0
        %561 = vmatpush1.msra.mxu0 0.0
        %562 = vmatprep.subr.mxu0 0.0
        %563 = vmatpush1.msra.mxu0 0.0
        %564 = vmatprep.subr.mxu0 0.0
        %565 = vmatpush1.msra.mxu0 0.0
        %566 = vmatprep.subr.mxu0 0.0
        %567 = vmatpush1.msra.mxu0 0.0
        %568 = vmatprep.subr.mxu0 0.0
        %569 = vmatpush1.msra.mxu0 0.0
        %570 = vmatprep.subr.mxu0 0.0
        %571 = vmatpush1.msra.mxu0 0.0
        %572 = vmatprep.subr.mxu0 0.0
        %573 = vmatpush1.msra.mxu0 0.0
        %574 = vmatprep.subr.mxu0 0.0
        %575 = vmatpush1.msra.mxu0 0.0
        %576 = vmatprep.subr.mxu0 0.0
        %577 = vmatpush1.msra.mxu0 0.0
        %578 = vmatprep.subr.mxu0 0.0
        %579 = vmatpush1.msra.mxu0 0.0
        %580 = vmatprep.mubr.f32.mxu0 0.0
        %581 = vmatmul.mubr.f32.gmra.mrb[0].mxu0 %v511
        %v582 = vpop.f32.mrb[0].mxu0
        %v583 = vadd.f32 %v507, %v582
        %v584 = vpop.f32.mrb[0].mxu0
        %585 = vmatprep.mubr.f32.mxu0 0.0
        %586 = vmatmul.mubr.f32.gmra.mrb[0].mxu0 %v514
        %v587 = vpop.f32.mrb[0].mxu0
        %v588 = vadd.f32 %v507, %v587
        %v589 = vpop.f32.mrb[0].mxu0
        %590 = vdwg.mxu0
        %v591 = vmax.f32 %v583, 0.0
        %v592 = vmax.f32 %v588, 0.0
        %595 = vrot.lane.b32.xlu0 %v484, 32
        %v596 = vpop.permute.xlu0 %595
        %597 = vrot.lane.b32.xlu0 %v489, 32
        %v598 = vpop.permute.xlu0 %597
        %vm601 = vcmask 261120
        %v602 = vsel %vm601, %v591, %v596
        %v603 = vsel %vm601, %v592, %v598
        %v604 = vld [vmem:[#allocation11] sm:$0xff]
        %v605 = vld [vmem:[#allocation11 + $0x8] sm:$0xff]
        %v606 = vld [vmem:[#allocation11 + $0x10] sm:$0xff]
        %v607 = vld [vmem:[#allocation11 + $0x18] sm:$0xff]
        %v608 = vld [vmem:[#allocation11 + $0x20] sm:$0xff]
        %v609 = vld [vmem:[#allocation11 + $0x28] sm:$0xff]
        %v610 = vld [vmem:[#allocation11 + $0x30] sm:$0xff]
        %v611 = vld [vmem:[#allocation11 + $0x38] sm:$0xff]
        %v612 = vld [vmem:[#allocation11 + $0x40] sm:$0xff]
        %v613 = vld [vmem:[#allocation11 + $0x48] sm:$0xff]
        %v614 = vld [vmem:[#allocation11 + $0x50] sm:$0xff]
        %v615 = vld [vmem:[#allocation11 + $0x58] sm:$0xff]
        %v616 = vld [vmem:[#allocation13] sm:$0x1]
        %v618 = vlaneseq
        %v619 = vshrl.u32 %v618, 7
        %v620 = vsub.s32 0, %v619
        %v621 = vrot.slane %v616, %v620
        %vm623 = vcmask 785408
        %v625 = vsel %vm623, %v602, 0
        %v628 = vsel %vm623, %v603, 0
        %630 = vmatprep.subr.mxu0 0.0
        %631 = vmatpush1.msra.mxu0 %v604
        %632 = vmatprep.subr.mxu0 0.0
        %633 = vmatpush1.msra.mxu0 %v605
        %634 = vmatprep.subr.mxu0 0.0
        %635 = vmatpush1.msra.mxu0 %v606
        %636 = vmatprep.subr.mxu0 0.0
        %637 = vmatpush1.msra.mxu0 %v607
        %638 = vmatprep.subr.mxu0 0.0
        %639 = vmatpush1.msra.mxu0 %v608
        %640 = vmatprep.subr.mxu0 0.0
        %641 = vmatpush1.msra.mxu0 %v609
        %642 = vmatprep.subr.mxu0 0.0
        %643 = vmatpush1.msra.mxu0 %v610
        %644 = vmatprep.subr.mxu0 0.0
        %645 = vmatpush1.msra.mxu0 %v611
        %646 = vmatprep.subr.mxu0 0.0
        %647 = vmatpush1.msra.mxu0 %v612
        %648 = vmatprep.subr.mxu0 0.0
        %649 = vmatpush1.msra.mxu0 %v613
        %650 = vmatprep.subr.mxu0 0.0
        %651 = vmatpush1.msra.mxu0 %v614
        %652 = vmatprep.subr.mxu0 0.0
        %653 = vmatpush1.msra.mxu0 %v615
        %654 = vmatprep.subr.mxu0 0.0
        %655 = vmatpush1.msra.mxu0 0.0
        %656 = vmatprep.subr.mxu0 0.0
        %657 = vmatpush1.msra.mxu0 0.0
        %658 = vmatprep.subr.mxu0 0.0
        %659 = vmatpush1.msra.mxu0 0.0
        %660 = vmatprep.subr.mxu0 0.0
        %661 = vmatpush1.msra.mxu0 0.0
        %662 = vmatprep.subr.mxu0 0.0
        %663 = vmatpush1.msra.mxu0 0.0
        %664 = vmatprep.subr.mxu0 0.0
        %665 = vmatpush1.msra.mxu0 0.0
        %666 = vmatprep.subr.mxu0 0.0
        %667 = vmatpush1.msra.mxu0 0.0
        %668 = vmatprep.subr.mxu0 0.0
        %669 = vmatpush1.msra.mxu0 0.0
        %670 = vmatprep.subr.mxu0 0.0
        %671 = vmatpush1.msra.mxu0 0.0
        %672 = vmatprep.subr.mxu0 0.0
        %673 = vmatpush1.msra.mxu0 0.0
        %674 = vmatprep.subr.mxu0 0.0
        %675 = vmatpush1.msra.mxu0 0.0
        %676 = vmatprep.subr.mxu0 0.0
        %677 = vmatpush1.msra.mxu0 0.0
        %678 = vmatprep.subr.mxu0 0.0
        %679 = vmatpush1.msra.mxu0 0.0
        %680 = vmatprep.subr.mxu0 0.0
        %681 = vmatpush1.msra.mxu0 0.0
        %682 = vmatprep.subr.mxu0 0.0
        %683 = vmatpush1.msra.mxu0 0.0
        %684 = vmatprep.subr.mxu0 0.0
        %685 = vmatpush1.msra.mxu0 0.0
        %686 = vmatprep.subr.mxu0 0.0
        %687 = vmatpush1.msra.mxu0 0.0
        %688 = vmatprep.subr.mxu0 0.0
        %689 = vmatpush1.msra.mxu0 0.0
        %690 = vmatprep.subr.mxu0 0.0
        %691 = vmatpush1.msra.mxu0 0.0
        %692 = vmatprep.subr.mxu0 0.0
        %693 = vmatpush1.msra.mxu0 0.0
        %694 = vmatprep.mubr.f32.mxu0 0.0
        %695 = vmatmul.mubr.f32.gmra.mrb[0].mxu0 %v625
        %v696 = vpop.f32.mrb[0].mxu0
        %v697 = vadd.f32 %v621, %v696
        %v698 = vpop.f32.mrb[0].mxu0
        %699 = vmatprep.mubr.f32.mxu0 0.0
        %700 = vmatmul.mubr.f32.gmra.mrb[0].mxu0 %v628
        %v701 = vpop.f32.mrb[0].mxu0
        %v702 = vadd.f32 %v621, %v701
        %v703 = vpop.f32.mrb[0].mxu0
        %704 = vdwg.mxu0
        %705 = vst.msk [vmem:[%s393] sm:$0xff] %vm601, %v697
        %706 = vst.msk [vmem:[%s393 + $0x8] sm:$0xff] %vm601, %v702
        %s707 = sand.u32 %s203, 1
        %s708 = scalar_lea.sflag [#allocation4], %s707
        %s709 = sand.u32 %s203, 1
        %s710 = smul.addr %s709, 16
        %s711 = scalar_lea.vmem [#allocation14], %s710
        // Predicated region
        $region77: #{vnn_local_pool_pointnet.4} parent=47 // pred_check
          %p712 = pneg %p213
        $region78: #{vnn_local_pool_pointnet.4} parent=47 // pred_check_branch
          %714 = sbr.rel (%p712) target = $region80
        $region79: #{vnn_local_pool_pointnet.4} parent=47 // pred_region
          %s715 = smul.u32 2, %s32
          %s717 = ssub.s32 256, 256
          %718 = vsyncadd %s708, %s717
          %s719 = smul.addr %s31, 2
          %s720 = sadd.s32 %s715, %s719
          %s721 = smul.addr %s720, 128
          %s722 = scalar_lea.hbm %s7, %s721
          %s723 = sshll.u32 %s711, 4
          %s724 = int_to_ptr.vmem [resolvable:$true] %s723
          %729 = dma.vmem_to_hbm [thread:$0]  %s724, 256, %s722, %s708, 128, 128, 8
        $region80: #{vnn_local_pool_pointnet.4} parent=47 // pred_fallthru
          _
      $region48: #{vnn_local_pool_pointnet.4} parent=5 // pred_fallthru
        _
      %p730 = scmp.le.s32.totalorder 2, %s22
      // Predicated region
      $region81: #{vnn_local_pool_pointnet.4} parent=5 // pred_check
        %p731 = pneg %p730
      $region82: #{vnn_local_pool_pointnet.4} parent=5 // pred_check_branch
        %733 = sbr.rel (%p731) target = $region84
      $region83: #{vnn_local_pool_pointnet.4} parent=5 // pred_region
        %s734 = ssub.s32 %s22, 2
        // Predicated region
        $region85: #{vnn_local_pool_pointnet.4} parent=83 // pred_check
          %p735 = pneg %p219
        $region86: #{vnn_local_pool_pointnet.4} parent=83 // pred_check_branch
          %737 = sbr.rel (%p735) target = $region88
        $region87: #{vnn_local_pool_pointnet.4} parent=83 // pred_region
          %s738 = sand.u32 %s204, 1
          %s739 = scalar_lea.sflag [#allocation4], %s738
          %s740 = sand.u32 %s204, 1
          %s741 = smul.addr %s740, 16
          %s742 = scalar_lea.vmem [#allocation14], %s741
          %743 = dma.done %s739, 256
        $region88: #{vnn_local_pool_pointnet.4} parent=83 // pred_fallthru
          _
      $region84: #{vnn_local_pool_pointnet.4} parent=5 // pred_fallthru
        _
    $region6: #{vnn_local_pool_pointnet.4} parent=1 // loop_footer
      %s26 = sadd.s32 1, %s22
    $region7: #{vnn_local_pool_pointnet.4} parent=1 // loop_footer_branch
      %21 = sbr.rel target = $region3
    $region8: #{vnn_local_pool_pointnet.4} parent=1 // loop_exit
      _
    %744 = vsyncpa [#allocation3], 1
    %s745 = scalar_lea.sflag [#allocation3], 1
    %746 = vsyncpa %s745, 1
    %747 = vsyncpa [#allocation6], 1
    %748 = vsyncpa [#allocation9], 1
    %749 = vsyncpa [#allocation12], 1
    %750 = vsyncpa [#allocation4], 1
    %s751 = scalar_lea.sflag [#allocation4], 1
    %752 = vsyncpa %s751, 1

// kernel: vnn_local_pool_pointnet.6
$region0: #{vnn_local_pool_pointnet.6}
  #allocation0 [shape = 'u32[]', space=smem, size = 0x4, offset = 0x4, fixed_abs, tag = 'smem constant byte address 0x4 - core index']
  #allocation1 [shape = 'u32[144,128]{1,0:T(1,128)}', space=vmem, size = 0x12000, scoped, tag = 'internal scratch']
  #allocation2 [shape = 'f32[48,32]{1,0:T(8,128)}', space=vmem, size = 0x6000, scoped, tag = 'scratch operand']
  #allocation3 [shape = 'f32[16,32]{1,0:T(8,128)}', space=vmem, size = 0x2000, scoped, tag = 'scratch operand']
  #allocation4 [shape = 's32[1]{0}', space=sflag, size = 0x4, scoped, tag = 'scoped memory for vnn_local_pool_pointnet.6']
  #allocation5 [shape = 'u8[512]{0}', space=smem, size = 0x200, scoped, tag = 'prefetched SMEM operand 0']
  %s0 = inlined_call_operand.hbm [shape: s32[96], index: 0, kind: input, shape index: {}]
  %s1 = inlined_call_operand.hbm [shape: f32[2,16,32], index: 1, kind: input, shape index: {}]
  %s2 = inlined_call_operand.hbm [shape: f32[64,32], index: 2, kind: input, shape index: {}]
  %s3 = inlined_call_operand.hbm [shape: f32[1,32], index: 3, kind: input, shape index: {}]
  %s4 = inlined_call_operand.hbm [shape: f32[96,32], index: 4, kind: input, shape index: {}]
  %s5 = inlined_call_operand.hbm [shape: f32[1,32], index: 5, kind: input, shape index: {}]
  %s6 = inlined_call_operand.hbm [shape: f32[32,32], index: 6, kind: input, shape index: {}]
  %s7 = inlined_call_operand.hbm [shape: f32[1,32], index: 7, kind: input, shape index: {}]
  %s8 = inlined_call_operand.hbm [shape: f32[2,16,32], index: 8, kind: output, shape index: {}]
  %s9 = sld [smem:[#allocation0]]
  $region115: #{vnn_local_pool_pointnet.6} parent=0
    _
  %s11 = ssub.s32 1, %s9
  %s12 = scalar_select 0, %s11, %s9
  %14 = dma.hbm_to_smem %s0, 16, [#allocation5], [#allocation4]
  %15 = dma.done [#allocation4], 16
  %16 = sfence
  $region1: #{vnn_local_pool_pointnet.6} parent=0
    #allocation6 [shape = 'u8[16384]{0}', space=vmem, size = 0x4000, scoped, tag = 'input window, operand 1']
    #allocation7 [shape = 's32[2]{0}', space=sflag, size = 0x8, scoped, tag = 'scoped memory for vnn_local_pool_pointnet.6']
    #allocation8 [shape = 's32[2]{0}', space=sflag, size = 0x8, scoped, tag = 'scoped memory for vnn_local_pool_pointnet.6']
    #allocation9 [shape = 'u8[32768]{0}', space=vmem, size = 0x8000, scoped, tag = 'input window, operand 2, single buffered']
    #allocation10 [shape = 's32[1]{0}', space=sflag, size = 0x4, scoped, tag = 'scoped memory for vnn_local_pool_pointnet.6']
    #allocation11 [shape = 'u8[512]{0}', space=vmem, size = 0x400, scoped, tag = 'input window, operand 3, single buffered']
    #allocation12 [shape = 'u8[49152]{0}', space=vmem, size = 0xc000, scoped, tag = 'input window, operand 4, single buffered']
    #allocation13 [shape = 's32[1]{0}', space=sflag, size = 0x4, scoped, tag = 'scoped memory for vnn_local_pool_pointnet.6']
    #allocation14 [shape = 'u8[512]{0}', space=vmem, size = 0x400, scoped, tag = 'input window, operand 5, single buffered']
    #allocation15 [shape = 'u8[16384]{0}', space=vmem, size = 0x4000, scoped, tag = 'input window, operand 6, single buffered']
    #allocation16 [shape = 's32[1]{0}', space=sflag, size = 0x4, scoped, tag = 'scoped memory for vnn_local_pool_pointnet.6']
    #allocation17 [shape = 'u8[512]{0}', space=vmem, size = 0x400, scoped, tag = 'input window, operand 7, single buffered']
    #allocation18 [shape = 'u8[16384]{0}', space=vmem, size = 0x4000, scoped, tag = 'output window, operand 0']
    %17 = vsyncpa [#allocation7], 0
    %s18 = scalar_lea.sflag [#allocation7], 1
    %19 = vsyncpa %s18, 0
    %20 = vsyncpa [#allocation10], 0
    %21 = vsyncpa [#allocation13], 0
    %22 = vsyncpa [#allocation16], 0
    %23 = vsyncpa [#allocation8], 0
    %s24 = scalar_lea.sflag [#allocation8], 1
    %25 = vsyncpa %s24, 0
    loop: start=0, step=1, limit=6
    $region2: #{vnn_local_pool_pointnet.6} parent=1 // loop_pre_header
      _
    $region3: #{vnn_local_pool_pointnet.6} parent=1 // loop_header
      %s27 = sphi 0, %s31
      %p28 = scmp.ge.s32.totalorder %s27, 6
      %s34 = sphi 0, %s53
      %s35 = sphi 0, %s49
      %s36 = sphi 0, %s45
      %s37 = sphi 0, %s34
      %s38 = sphi 0, %s35
      %s39 = sphi 0, %s36
      %s40 = sphi 0, %s37
      %s41 = sphi 0, %s38
      %s42 = sphi 0, %s39
      %s58 = sphi 0, %s60
      %s61 = sphi 0, %s58
      %s62 = sphi 0, %s61
      %s78 = sphi 0, %s62
      %s82 = sphi 0, %s82
      %s84 = sphi 0, %s82
      %s85 = sphi 0, %s84
      %s99 = sphi 0, %s85
      %s103 = sphi 0, %s103
      %s105 = sphi 0, %s103
      %s106 = sphi 0, %s105
      %s120 = sphi 0, %s106
      %s124 = sphi 0, %s124
      %s126 = sphi 0, %s124
      %s127 = sphi 0, %s126
      %s141 = sphi 0, %s127
      %s145 = sphi 0, %s145
      %s147 = sphi 0, %s145
      %s148 = sphi 0, %s147
      %s162 = sphi 0, %s148
      %s166 = sphi 0, %s166
      %s168 = sphi 0, %s166
      %s169 = sphi 0, %s168
      %s183 = sphi 0, %s169
      %s187 = sphi 0, %s187
      %s189 = sphi 0, %s187
      %s190 = sphi 0, %s189
      %s204 = sphi 0, %s190
      %s212 = sphi 0, %s214
      %s215 = sphi 0, %s212
      %s216 = sphi 0, %s215
      %s232 = sphi 0, %s216
    $region4: #{vnn_local_pool_pointnet.6} parent=1 // loop_header_branch
      %30 = sbr.rel (%p28) target = $region8
    $region5: #{vnn_local_pool_pointnet.6} parent=1 // loop_body
      %s32 = ssub.s32 %s27, 1
      %s33 = ssub.s32 %s27, 2
      %s43 = sadd.s32 1, %s36
      %p44 = scmp.ge.s32.totalorder %s43, 1
      %s45 = scalar_select %p44, 0, %s43
      %s46 = sadd.s32 1, %s35
      %s47 = scalar_select %p44, %s46, %s35
      %p48 = scmp.ge.s32.totalorder %s47, 2
      %s49 = scalar_select %p48, 0, %s47
      %s50 = sadd.s32 1, %s34
      %s51 = scalar_select %p48, %s50, %s34
      %p52 = scmp.ge.s32.totalorder %s51, 2
      %s53 = scalar_select %p52, 0, %s51
      %s54 = ssub.s32 %s34, %s53
      %s55 = ssub.s32 %s36, %s45
      %s56 = sor.u32 %s54, %s55
      %p57 = scmp.eq.s32.totalorder %s56, 0
      %s59 = sadd.s32 %s58, 1
      %s60 = scalar_select %p57, %s58, %s59
      %p63 = pneg %p57
      %p64 = scmp.eq.s32.totalorder %s27, 3
      %p65 = por %p63, %p64
      %p66 = scmp.ne.s32.totalorder %s58, %s61
      %p67 = scmp.eq.s32.totalorder %s27, 0
      %p68 = por %p66, %p67
      %p69 = scmp.ne.s32.totalorder %s58, %s61
      %p70 = scmp.eq.s32.totalorder %s32, 3
      %p71 = por %p69, %p70
      %p72 = scmp.ne.s32.totalorder %s61, %s62
      %p73 = scmp.eq.s32.totalorder %s32, 0
      %p74 = por %p72, %p73
      %p75 = scmp.ne.s32.totalorder %s61, %s62
      %p76 = scmp.eq.s32.totalorder %s33, 3
      %p77 = por %p75, %p76
      %p79 = scmp.ne.s32.totalorder %s62, %s78
      %p80 = scmp.eq.s32.totalorder %s33, 0
      %p81 = por %p79, %p80
      %s83 = sadd.s32 %s82, 1
      %p86 = scmp.eq.s32.totalorder %s27, 3
      %p87 = scmp.ne.s32.totalorder %s82, %s84
      %p88 = scmp.eq.s32.totalorder %s27, 0
      %p89 = por %p87, %p88
      %p90 = scmp.ne.s32.totalorder %s82, %s84
      %p91 = scmp.eq.s32.totalorder %s32, 3
      %p92 = por %p90, %p91
      %p93 = scmp.ne.s32.totalorder %s84, %s85
      %p94 = scmp.eq.s32.totalorder %s32, 0
      %p95 = por %p93, %p94
      %p96 = scmp.ne.s32.totalorder %s84, %s85
      %p97 = scmp.eq.s32.totalorder %s33, 3
      %p98 = por %p96, %p97
      %p100 = scmp.ne.s32.totalorder %s85, %s99
      %p101 = scmp.eq.s32.totalorder %s33, 0
      %p102 = por %p100, %p101
      %s104 = sadd.s32 %s103, 1
      %p107 = scmp.eq.s32.totalorder %s27, 3
      %p108 = scmp.ne.s32.totalorder %s103, %s105
      %p109 = scmp.eq.s32.totalorder %s27, 0
      %p110 = por %p108, %p109
      %p111 = scmp.ne.s32.totalorder %s103, %s105
      %p112 = scmp.eq.s32.totalorder %s32, 3
      %p113 = por %p111, %p112
      %p114 = scmp.ne.s32.totalorder %s105, %s106
      %p115 = scmp.eq.s32.totalorder %s32, 0
      %p116 = por %p114, %p115
      %p117 = scmp.ne.s32.totalorder %s105, %s106
      %p118 = scmp.eq.s32.totalorder %s33, 3
      %p119 = por %p117, %p118
      %p121 = scmp.ne.s32.totalorder %s106, %s120
      %p122 = scmp.eq.s32.totalorder %s33, 0
      %p123 = por %p121, %p122
      %s125 = sadd.s32 %s124, 1
      %p128 = scmp.eq.s32.totalorder %s27, 3
      %p129 = scmp.ne.s32.totalorder %s124, %s126
      %p130 = scmp.eq.s32.totalorder %s27, 0
      %p131 = por %p129, %p130
      %p132 = scmp.ne.s32.totalorder %s124, %s126
      %p133 = scmp.eq.s32.totalorder %s32, 3
      %p134 = por %p132, %p133
      %p135 = scmp.ne.s32.totalorder %s126, %s127
      %p136 = scmp.eq.s32.totalorder %s32, 0
      %p137 = por %p135, %p136
      %p138 = scmp.ne.s32.totalorder %s126, %s127
      %p139 = scmp.eq.s32.totalorder %s33, 3
      %p140 = por %p138, %p139
      %p142 = scmp.ne.s32.totalorder %s127, %s141
      %p143 = scmp.eq.s32.totalorder %s33, 0
      %p144 = por %p142, %p143
      %s146 = sadd.s32 %s145, 1
      %p149 = scmp.eq.s32.totalorder %s27, 3
      %p150 = scmp.ne.s32.totalorder %s145, %s147
      %p151 = scmp.eq.s32.totalorder %s27, 0
      %p152 = por %p150, %p151
      %p153 = scmp.ne.s32.totalorder %s145, %s147
      %p154 = scmp.eq.s32.totalorder %s32, 3
      %p155 = por %p153, %p154
      %p156 = scmp.ne.s32.totalorder %s147, %s148
      %p157 = scmp.eq.s32.totalorder %s32, 0
      %p158 = por %p156, %p157
      %p159 = scmp.ne.s32.totalorder %s147, %s148
      %p160 = scmp.eq.s32.totalorder %s33, 3
      %p161 = por %p159, %p160
      %p163 = scmp.ne.s32.totalorder %s148, %s162
      %p164 = scmp.eq.s32.totalorder %s33, 0
      %p165 = por %p163, %p164
      %s167 = sadd.s32 %s166, 1
      %p170 = scmp.eq.s32.totalorder %s27, 3
      %p171 = scmp.ne.s32.totalorder %s166, %s168
      %p172 = scmp.eq.s32.totalorder %s27, 0
      %p173 = por %p171, %p172
      %p174 = scmp.ne.s32.totalorder %s166, %s168
      %p175 = scmp.eq.s32.totalorder %s32, 3
      %p176 = por %p174, %p175
      %p177 = scmp.ne.s32.totalorder %s168, %s169
      %p178 = scmp.eq.s32.totalorder %s32, 0
      %p179 = por %p177, %p178
      %p180 = scmp.ne.s32.totalorder %s168, %s169
      %p181 = scmp.eq.s32.totalorder %s33, 3
      %p182 = por %p180, %p181
      %p184 = scmp.ne.s32.totalorder %s169, %s183
      %p185 = scmp.eq.s32.totalorder %s33, 0
      %p186 = por %p184, %p185
      %s188 = sadd.s32 %s187, 1
      %p191 = scmp.eq.s32.totalorder %s27, 3
      %p192 = scmp.ne.s32.totalorder %s187, %s189
      %p193 = scmp.eq.s32.totalorder %s27, 0
      %p194 = por %p192, %p193
      %p195 = scmp.ne.s32.totalorder %s187, %s189
      %p196 = scmp.eq.s32.totalorder %s32, 3
      %p197 = por %p195, %p196
      %p198 = scmp.ne.s32.totalorder %s189, %s190
      %p199 = scmp.eq.s32.totalorder %s32, 0
      %p200 = por %p198, %p199
      %p201 = scmp.ne.s32.totalorder %s189, %s190
      %p202 = scmp.eq.s32.totalorder %s33, 3
      %p203 = por %p201, %p202
      %p205 = scmp.ne.s32.totalorder %s190, %s204
      %p206 = scmp.eq.s32.totalorder %s33, 0
      %p207 = por %p205, %p206
      %s208 = ssub.s32 %s34, %s53
      %s209 = ssub.s32 %s36, %s45
      %s210 = sor.u32 %s208, %s209
      %p211 = scmp.eq.s32.totalorder %s210, 0
      %s213 = sadd.s32 %s212, 1
      %s214 = scalar_select %p211, %s212, %s213
      %p217 = pneg %p211
      %p218 = scmp.eq.s32.totalorder %s27, 3
      %p219 = por %p217, %p218
      %p220 = scmp.ne.s32.totalorder %s212, %s215
      %p221 = scmp.eq.s32.totalorder %s27, 0
      %p222 = por %p220, %p221
      %p223 = scmp.ne.s32.totalorder %s212, %s215
      %p224 = scmp.eq.s32.totalorder %s32, 3
      %p225 = por %p223, %p224
      %p226 = scmp.ne.s32.totalorder %s215, %s216
      %p227 = scmp.eq.s32.totalorder %s32, 0
      %p228 = por %p226, %p227
      %p229 = scmp.ne.s32.totalorder %s215, %s216
      %p230 = scmp.eq.s32.totalorder %s33, 3
      %p231 = por %p229, %p230
      %p233 = scmp.ne.s32.totalorder %s216, %s232
      %p234 = scmp.eq.s32.totalorder %s33, 0
      %p235 = por %p233, %p234
      %p236 = scmp.le.s32.totalorder 1, %s27
      %p237 = scmp.lt.s32.totalorder %s27, 5
      %p238 = pnand %p236, %p237
      %p239 = pneg %p238
      // Predicated region
      $region9: #{vnn_local_pool_pointnet.6} parent=5 // pred_check
        _
      $region10: #{vnn_local_pool_pointnet.6} parent=5 // pred_check_branch
        %241 = sbr.rel (%p238) target = $region12
      $region11: #{vnn_local_pool_pointnet.6} parent=5 // pred_region
        %s242 = ssub.s32 %s27, 1
        // Predicated region
        $region13: #{vnn_local_pool_pointnet.6} parent=11 // pred_check
          %p243 = pneg %p95
        $region14: #{vnn_local_pool_pointnet.6} parent=11 // pred_check_branch
          %245 = sbr.rel (%p243) target = $region16
        $region15: #{vnn_local_pool_pointnet.6} parent=11 // pred_region
          %s247 = ssub.s32 1024, 1024
          %248 = vsyncadd [#allocation10], %s247
          %s249 = sshll.u32 [#allocation9], 4
          %s250 = int_to_ptr.vmem [resolvable:$true] %s249
          %255 = dma.hbm_to_vmem [thread:$0]  %s2, 1024, %s250, [#allocation10], 128, 128, 8
        $region16: #{vnn_local_pool_pointnet.6} parent=11 // pred_fallthru
          _
        // Predicated region
        $region17: #{vnn_local_pool_pointnet.6} parent=11 // pred_check
          %p256 = pneg %p116
        $region18: #{vnn_local_pool_pointnet.6} parent=11 // pred_check_branch
          %258 = sbr.rel (%p256) target = $region20
        $region19: #{vnn_local_pool_pointnet.6} parent=11 // pred_region
          %s260 = ssub.s32 16, 16
          %261 = vsyncadd [#allocation10], %s260
          %s263 = sshll.u32 [#allocation11], 4
          %s264 = int_to_ptr.vmem [resolvable:$true] %s263
          %266 = dma.hbm_to_vmem [thread:$0]  %s3, 16, %s264, [#allocation10]
        $region20: #{vnn_local_pool_pointnet.6} parent=11 // pred_fallthru
          _
        // Predicated region
        $region21: #{vnn_local_pool_pointnet.6} parent=11 // pred_check
          %p267 = pneg %p137
        $region22: #{vnn_local_pool_pointnet.6} parent=11 // pred_check_branch
          %269 = sbr.rel (%p267) target = $region24
        $region23: #{vnn_local_pool_pointnet.6} parent=11 // pred_region
          %s271 = ssub.s32 1536, 1536
          %272 = vsyncadd [#allocation13], %s271
          %s273 = sshll.u32 [#allocation12], 4
          %s274 = int_to_ptr.vmem [resolvable:$true] %s273
          %279 = dma.hbm_to_vmem [thread:$0]  %s4, 1536, %s274, [#allocation13], 128, 128, 8
        $region24: #{vnn_local_pool_pointnet.6} parent=11 // pred_fallthru
          _
        // Predicated region
        $region25: #{vnn_local_pool_pointnet.6} parent=11 // pred_check
          %p280 = pneg %p158
        $region26: #{vnn_local_pool_pointnet.6} parent=11 // pred_check_branch
          %282 = sbr.rel (%p280) target = $region28
        $region27: #{vnn_local_pool_pointnet.6} parent=11 // pred_region
          %s284 = ssub.s32 16, 16
          %285 = vsyncadd [#allocation13], %s284
          %s287 = sshll.u32 [#allocation14], 4
          %s288 = int_to_ptr.vmem [resolvable:$true] %s287
          %290 = dma.hbm_to_vmem [thread:$0]  %s5, 16, %s288, [#allocation13]
        $region28: #{vnn_local_pool_pointnet.6} parent=11 // pred_fallthru
          _
        // Predicated region
        $region29: #{vnn_local_pool_pointnet.6} parent=11 // pred_check
          %p291 = pneg %p179
        $region30: #{vnn_local_pool_pointnet.6} parent=11 // pred_check_branch
          %293 = sbr.rel (%p291) target = $region32
        $region31: #{vnn_local_pool_pointnet.6} parent=11 // pred_region
          %s295 = ssub.s32 512, 512
          %296 = vsyncadd [#allocation16], %s295
          %s297 = sshll.u32 [#allocation15], 4
          %s298 = int_to_ptr.vmem [resolvable:$true] %s297
          %303 = dma.hbm_to_vmem [thread:$0]  %s6, 512, %s298, [#allocation16], 128, 128, 8
        $region32: #{vnn_local_pool_pointnet.6} parent=11 // pred_fallthru
          _
        // Predicated region
        $region33: #{vnn_local_pool_pointnet.6} parent=11 // pred_check
          %p304 = pneg %p200
        $region34: #{vnn_local_pool_pointnet.6} parent=11 // pred_check_branch
          %306 = sbr.rel (%p304) target = $region36
        $region35: #{vnn_local_pool_pointnet.6} parent=11 // pred_region
          %s308 = ssub.s32 16, 16
          %309 = vsyncadd [#allocation16], %s308
          %s311 = sshll.u32 [#allocation17], 4
          %s312 = int_to_ptr.vmem [resolvable:$true] %s311
          %314 = dma.hbm_to_vmem [thread:$0]  %s7, 16, %s312, [#allocation16]
        $region36: #{vnn_local_pool_pointnet.6} parent=11 // pred_fallthru
          _
      $region12: #{vnn_local_pool_pointnet.6} parent=5 // pred_fallthru
        _
      %p315 = scmp.lt.s32.totalorder %s27, 4
      // Predicated region
      $region37: #{vnn_local_pool_pointnet.6} parent=5 // pred_check
        %p316 = pneg %p315
      $region38: #{vnn_local_pool_pointnet.6} parent=5 // pred_check_branch
        %318 = sbr.rel (%p316) target = $region40
      $region39: #{vnn_local_pool_pointnet.6} parent=5 // pred_region
        // Predicated region
        $region41: #{vnn_local_pool_pointnet.6} parent=39 // pred_check
          %p319 = pneg %p68
        $region42: #{vnn_local_pool_pointnet.6} parent=39 // pred_check_branch
          %321 = sbr.rel (%p319) target = $region44
        $region43: #{vnn_local_pool_pointnet.6} parent=39 // pred_region
          %s322 = sand.u32 %s58, 1
          %s323 = scalar_lea.sflag [#allocation7], %s322
          %s324 = sand.u32 %s58, 1
          %s325 = smul.addr %s324, 16
          %s326 = scalar_lea.vmem [#allocation6], %s325
          %s327 = smul.u32 2, %s36
          %s329 = ssub.s32 256, 256
          %330 = vsyncadd %s323, %s329
          %s331 = smul.addr %s34, 2
          %s332 = sadd.s32 %s327, %s331
          %s333 = smul.addr %s332, 128
          %s334 = scalar_lea.hbm %s1, %s333
          %s335 = sshll.u32 %s326, 4
          %s336 = int_to_ptr.vmem [resolvable:$true] %s335
          %341 = dma.hbm_to_vmem [thread:$0]  %s334, 256, %s336, %s323, 128, 128, 8
        $region44: #{vnn_local_pool_pointnet.6} parent=39 // pred_fallthru
          _
      $region40: #{vnn_local_pool_pointnet.6} parent=5 // pred_fallthru
        _
      %p342 = scmp.le.s32.totalorder 1, %s27
      %p343 = scmp.lt.s32.totalorder %s27, 5
      %p344 = pnand %p342, %p343
      %p345 = pneg %p344
      // Predicated region
      $region45: #{vnn_local_pool_pointnet.6} parent=5 // pred_check
        _
      $region46: #{vnn_local_pool_pointnet.6} parent=5 // pred_check_branch
        %347 = sbr.rel (%p344) target = $region48
      $region47: #{vnn_local_pool_pointnet.6} parent=5 // pred_region
        %s348 = ssub.s32 %s27, 1
        %s349 = sand.u32 %s61, 1
        %s350 = scalar_lea.sflag [#allocation7], %s349
        %s351 = sand.u32 %s61, 1
        %s352 = smul.addr %s351, 16
        %s353 = scalar_lea.vmem [#allocation6], %s352
        // Predicated region
        $region49: #{vnn_local_pool_pointnet.6} parent=47 // pred_check
          %p354 = pneg %p74
        $region50: #{vnn_local_pool_pointnet.6} parent=47 // pred_check_branch
          %356 = sbr.rel (%p354) target = $region52
        $region51: #{vnn_local_pool_pointnet.6} parent=47 // pred_region
          %357 = dma.done %s350, 256
        $region52: #{vnn_local_pool_pointnet.6} parent=47 // pred_fallthru
          _
        // Predicated region
        $region53: #{vnn_local_pool_pointnet.6} parent=47 // pred_check
          %p358 = pneg %p95
        $region54: #{vnn_local_pool_pointnet.6} parent=47 // pred_check_branch
          %360 = sbr.rel (%p358) target = $region56
        $region55: #{vnn_local_pool_pointnet.6} parent=47 // pred_region
          %361 = dma.done [#allocation10], 1024
        $region56: #{vnn_local_pool_pointnet.6} parent=47 // pred_fallthru
          _
        // Predicated region
        $region57: #{vnn_local_pool_pointnet.6} parent=47 // pred_check
          %p362 = pneg %p116
        $region58: #{vnn_local_pool_pointnet.6} parent=47 // pred_check_branch
          %364 = sbr.rel (%p362) target = $region60
        $region59: #{vnn_local_pool_pointnet.6} parent=47 // pred_region
          %365 = dma.done [#allocation10], 16
        $region60: #{vnn_local_pool_pointnet.6} parent=47 // pred_fallthru
          _
        // Predicated region
        $region61: #{vnn_local_pool_pointnet.6} parent=47 // pred_check
          %p366 = pneg %p137
        $region62: #{vnn_local_pool_pointnet.6} parent=47 // pred_check_branch
          %368 = sbr.rel (%p366) target = $region64
        $region63: #{vnn_local_pool_pointnet.6} parent=47 // pred_region
          %369 = dma.done [#allocation13], 1536
        $region64: #{vnn_local_pool_pointnet.6} parent=47 // pred_fallthru
          _
        // Predicated region
        $region65: #{vnn_local_pool_pointnet.6} parent=47 // pred_check
          %p370 = pneg %p158
        $region66: #{vnn_local_pool_pointnet.6} parent=47 // pred_check_branch
          %372 = sbr.rel (%p370) target = $region68
        $region67: #{vnn_local_pool_pointnet.6} parent=47 // pred_region
          %373 = dma.done [#allocation13], 16
        $region68: #{vnn_local_pool_pointnet.6} parent=47 // pred_fallthru
          _
        // Predicated region
        $region69: #{vnn_local_pool_pointnet.6} parent=47 // pred_check
          %p374 = pneg %p179
        $region70: #{vnn_local_pool_pointnet.6} parent=47 // pred_check_branch
          %376 = sbr.rel (%p374) target = $region72
        $region71: #{vnn_local_pool_pointnet.6} parent=47 // pred_region
          %377 = dma.done [#allocation16], 512
        $region72: #{vnn_local_pool_pointnet.6} parent=47 // pred_fallthru
          _
        // Predicated region
        $region73: #{vnn_local_pool_pointnet.6} parent=47 // pred_check
          %p378 = pneg %p200
        $region74: #{vnn_local_pool_pointnet.6} parent=47 // pred_check_branch
          %380 = sbr.rel (%p378) target = $region76
        $region75: #{vnn_local_pool_pointnet.6} parent=47 // pred_region
          %381 = dma.done [#allocation16], 16
        $region76: #{vnn_local_pool_pointnet.6} parent=47 // pred_fallthru
          _
        %s382 = sand.u32 %s61, 1
        %s383 = scalar_lea.sflag [#allocation7], %s382
        %s384 = sand.u32 %s61, 1
        %s385 = smul.addr %s384, 16
        %s386 = scalar_lea.vmem [#allocation6], %s385
        %p387 = pneg %p74
        %p388 = pneg %p71
        %p389 = pneg %p95
        %p390 = pneg %p92
        %p391 = pneg %p116
        %p392 = pneg %p113
        %p393 = pneg %p137
        %p394 = pneg %p134
        %p395 = pneg %p158
        %p396 = pneg %p155
        %p397 = pneg %p179
        %p398 = pneg %p176
        %p399 = pneg %p200
        %p400 = pneg %p197
        %p401 = pneg %p228
        %p402 = pneg %p225
        %s403 = sand.u32 %s215, 1
        %s404 = scalar_lea.sflag [#allocation8], %s403
        %s405 = sand.u32 %s215, 1
        %s406 = smul.addr %s405, 16
        %s407 = scalar_lea.vmem [#allocation18], %s406
        %s408 = smul.u32 2, %s39
        %s409 = smul.u32 2, %s39
        %s410 = smul.u32 %s39, 16
        %s411 = ssub.s32 16, %s410
        %p412 = scmp.lt.s32.totalorder %s411, 16
        %s413 = scalar_select %p412, %s411, 16
        %s414 = smul.u32 %s37, 48
        %s415 = sadd.s32 %s414, %s410
        %p416 = scmp.eq.s32.totalorder %s38, 0
        %p417 = scmp.eq.s32.totalorder %s39, 0
        %p418 = pnand %p416, %p417
        %p419 = pneg %p418
        // Predicated region
        $region77: #{vnn_local_pool_pointnet.6} parent=47 // pred_check
          _
        $region78: #{vnn_local_pool_pointnet.6} parent=47 // pred_check_branch
          %421 = sbr.rel (%p418) target = $region80
        $region79: #{vnn_local_pool_pointnet.6} parent=47 // pred_region
          %vm422 = vcmask 261120
          %423 = vst.msk [vmem:[#allocation2] sm:$0xff] %vm422, -1e+30
          %424 = vst.msk [vmem:[#allocation2 + $0x8] sm:$0xff] %vm422, -1e+30
          %425 = vst.msk [vmem:[#allocation2 + $0x10] sm:$0xff] %vm422, -1e+30
          %426 = vst.msk [vmem:[#allocation2 + $0x18] sm:$0xff] %vm422, -1e+30
          %427 = vst.msk [vmem:[#allocation2 + $0x20] sm:$0xff] %vm422, -1e+30
          %428 = vst.msk [vmem:[#allocation2 + $0x28] sm:$0xff] %vm422, -1e+30
        $region80: #{vnn_local_pool_pointnet.6} parent=47 // pred_fallthru
          _
        // Predicated region
        $region81: #{vnn_local_pool_pointnet.6} parent=47 // pred_check
          %p429 = pneg %p416
        $region82: #{vnn_local_pool_pointnet.6} parent=47 // pred_check_branch
          %431 = sbr.rel (%p429) target = $region84
        $region83: #{vnn_local_pool_pointnet.6} parent=47 // pred_region
          // While loop
          $region85: #{vnn_local_pool_pointnet.6} parent=83 // loop_pre_header
            _
          $region86: #{vnn_local_pool_pointnet.6} parent=83 // loop_header
            %s433 = sphi 0, %s435
            %p434 = scmp.ge.s32.totalorder %s433, %s413
          $region87: #{vnn_local_pool_pointnet.6} parent=83 // loop_header_branch
            %437 = sbr.rel (%p434) target = $region91
          $region88: #{vnn_local_pool_pointnet.6} parent=83 // loop_body
            %s438 = scalar_lea.vmem %s353, %s433 [#allocation6]
            %v439 = vld [vmem:[%s438] sm:$0x1]
            %s440 = sadd.s32 %s415, %s433
            %s441 = sld [smem:[#allocation5 + %s440]]
            %s442 = scalar_lea.vmem [#allocation2], %s441
            %v443 = vld [vmem:[%s442] sm:$0x1]
            %v444 = vmax.f32 %v443, %v439
            %vm445 = vcmask 253952
            %446 = vst.msk [vmem:[%s442] sm:$0x1] %vm445, %v444
            %s447 = sadd.s32 %s415, 16
            %s448 = sadd.s32 %s447, %s433
            %s449 = sld [smem:[#allocation5 + %s448]]
            %s450 = sadd.s32 %s449, 16
            %s451 = scalar_lea.vmem [#allocation2], %s450
            %v452 = vld [vmem:[%s451] sm:$0x1]
            %v453 = vmax.f32 %v452, %v439
            %454 = vst.msk [vmem:[%s451] sm:$0x1] %vm445, %v453
            %s455 = sadd.s32 %s415, 32
            %s456 = sadd.s32 %s455, %s433
            %s457 = sld [smem:[#allocation5 + %s456]]
            %s458 = sadd.s32 %s457, 32
            %s459 = scalar_lea.vmem [#allocation2], %s458
            %v460 = vld [vmem:[%s459] sm:$0x1]
            %v461 = vmax.f32 %v460, %v439
            %462 = vst.msk [vmem:[%s459] sm:$0x1] %vm445, %v461
          $region89: #{vnn_local_pool_pointnet.6} parent=83 // loop_footer
            %s435 = sadd.s32 %s433, 1
          $region90: #{vnn_local_pool_pointnet.6} parent=83 // loop_footer_branch
            %432 = sbr.rel target = $region86
          $region91: #{vnn_local_pool_pointnet.6} parent=83 // loop_exit
            _
        $region84: #{vnn_local_pool_pointnet.6} parent=47 // pred_fallthru
          _
        %p463 = scmp.eq.s32.totalorder %s38, 1
        // Predicated region
        $region92: #{vnn_local_pool_pointnet.6} parent=47 // pred_check
          %p464 = pneg %p463
        $region93: #{vnn_local_pool_pointnet.6} parent=47 // pred_check_branch
          %466 = sbr.rel (%p464) target = $region95
        $region94: #{vnn_local_pool_pointnet.6} parent=47 // pred_region
          // While loop
          $region96: #{vnn_local_pool_pointnet.6} parent=94 // loop_pre_header
            _
          $region97: #{vnn_local_pool_pointnet.6} parent=94 // loop_header
            %s468 = sphi 0, %s470
            %p469 = scmp.ge.s32.totalorder %s468, %s413
          $region98: #{vnn_local_pool_pointnet.6} parent=94 // loop_header_branch
            %472 = sbr.rel (%p469) target = $region102
          $region99: #{vnn_local_pool_pointnet.6} parent=94 // loop_body
            %s473 = sadd.s32 %s415, %s468
            %s474 = sld [smem:[#allocation5 + %s473]]
            %s475 = scalar_lea.vmem [#allocation2], %s474
            %v476 = vld [vmem:[%s475] sm:$0x1]
            %s477 = sadd.s32 %s415, 16
            %s478 = sadd.s32 %s477, %s468
            %s479 = sld [smem:[#allocation5 + %s478]]
            %s480 = sadd.s32 %s479, 16
            %s481 = scalar_lea.vmem [#allocation2], %s480
            %v482 = vld [vmem:[%s481] sm:$0x1]
            %v483 = vadd.f32 %v476, %v482
            %s484 = sadd.s32 %s415, 32
            %s485 = sadd.s32 %s484, %s468
            %s486 = sld [smem:[#allocation5 + %s485]]
            %s487 = sadd.s32 %s486, 32
            %s488 = scalar_lea.vmem [#allocation2], %s487
            %v489 = vld [vmem:[%s488] sm:$0x1]
            %v490 = vadd.f32 %v483, %v489
            %s491 = scalar_lea.vmem [#allocation3], %s468
            %vm492 = vcmask 253952
            %493 = vst.msk [vmem:[%s491] sm:$0x1] %vm492, %v490
          $region100: #{vnn_local_pool_pointnet.6} parent=94 // loop_footer
            %s470 = sadd.s32 %s468, 1
          $region101: #{vnn_local_pool_pointnet.6} parent=94 // loop_footer_branch
            %467 = sbr.rel target = $region97
          $region102: #{vnn_local_pool_pointnet.6} parent=94 // loop_exit
            _
          %v494 = vld [vmem:[%s353] sm:$0xff]
          %v495 = vld [vmem:[%s353 + $0x8] sm:$0xff]
          %v496 = vld [vmem:[#allocation3] sm:$0xff]
          %v497 = vld [vmem:[#allocation3 + $0x8] sm:$0xff]
          %v498 = vmax.f32 %v494, 0.0
          %v499 = vmax.f32 %v495, 0.0
          %v500 = vmax.f32 %v496, 0.0
          %v501 = vmax.f32 %v497, 0.0
          %504 = vrot.lane.b32.xlu0 %v500, 32
          %v505 = vpop.permute.xlu0 %504
          %506 = vrot.lane.b32.xlu0 %v501, 32
          %v507 = vpop.permute.xlu0 %506
          %vm510 = vcmask 261120
          %v511 = vsel %vm510, %v498, %v505
          %v512 = vsel %vm510, %v499, %v507
          %v513 = vld [vmem:[#allocation9] sm:$0xff]
          %v514 = vld [vmem:[#allocation9 + $0x8] sm:$0xff]
          %v515 = vld [vmem:[#allocation9 + $0x10] sm:$0xff]
          %v516 = vld [vmem:[#allocation9 + $0x18] sm:$0xff]
          %v517 = vld [vmem:[#allocation9 + $0x20] sm:$0xff]
          %v518 = vld [vmem:[#allocation9 + $0x28] sm:$0xff]
          %v519 = vld [vmem:[#allocation9 + $0x30] sm:$0xff]
          %v520 = vld [vmem:[#allocation9 + $0x38] sm:$0xff]
          %v521 = vld [vmem:[#allocation11] sm:$0x1]
          %v523 = vlaneseq
          %v524 = vshrl.u32 %v523, 7
          %v525 = vsub.s32 0, %v524
          %v526 = vrot.slane %v521, %v525
          %vm528 = vcmask 523264
          %v530 = vsel %vm528, %v511, 0
          %v533 = vsel %vm528, %v512, 0
          %535 = vmatprep.subr.mxu0 0.0
          %536 = vmatpush1.msra.mxu0 %v513
          %537 = vmatprep.subr.mxu0 0.0
          %538 = vmatpush1.msra.mxu0 %v514
          %539 = vmatprep.subr.mxu0 0.0
          %540 = vmatpush1.msra.mxu0 %v515
          %541 = vmatprep.subr.mxu0 0.0
          %542 = vmatpush1.msra.mxu0 %v516
          %543 = vmatprep.subr.mxu0 0.0
          %544 = vmatpush1.msra.mxu0 %v517
          %545 = vmatprep.subr.mxu0 0.0
          %546 = vmatpush1.msra.mxu0 %v518
          %547 = vmatprep.subr.mxu0 0.0
          %548 = vmatpush1.msra.mxu0 %v519
          %549 = vmatprep.subr.mxu0 0.0
          %550 = vmatpush1.msra.mxu0 %v520
          %551 = vmatprep.subr.mxu0 0.0
          %552 = vmatpush1.msra.mxu0 0.0
          %553 = vmatprep.subr.mxu0 0.0
          %554 = vmatpush1.msra.mxu0 0.0
          %555 = vmatprep.subr.mxu0 0.0
          %556 = vmatpush1.msra.mxu0 0.0
          %557 = vmatprep.subr.mxu0 0.0
          %558 = vmatpush1.msra.mxu0 0.0
          %559 = vmatprep.subr.mxu0 0.0
          %560 = vmatpush1.msra.mxu0 0.0
          %561 = vmatprep.subr.mxu0 0.0
          %562 = vmatpush1.msra.mxu0 0.0
          %563 = vmatprep.subr.mxu0 0.0
          %564 = vmatpush1.msra.mxu0 0.0
          %565 = vmatprep.subr.mxu0 0.0
          %566 = vmatpush1.msra.mxu0 0.0
          %567 = vmatprep.subr.mxu0 0.0
          %568 = vmatpush1.msra.mxu0 0.0
          %569 = vmatprep.subr.mxu0 0.0
          %570 = vmatpush1.msra.mxu0 0.0
          %571 = vmatprep.subr.mxu0 0.0
          %572 = vmatpush1.msra.mxu0 0.0
          %573 = vmatprep.subr.mxu0 0.0
          %574 = vmatpush1.msra.mxu0 0.0
          %575 = vmatprep.subr.mxu0 0.0
          %576 = vmatpush1.msra.mxu0 0.0
          %577 = vmatprep.subr.mxu0 0.0
          %578 = vmatpush1.msra.mxu0 0.0
          %579 = vmatprep.subr.mxu0 0.0
          %580 = vmatpush1.msra.mxu0 0.0
          %581 = vmatprep.subr.mxu0 0.0
          %582 = vmatpush1.msra.mxu0 0.0
          %583 = vmatprep.subr.mxu0 0.0
          %584 = vmatpush1.msra.mxu0 0.0
          %585 = vmatprep.subr.mxu0 0.0
          %586 = vmatpush1.msra.mxu0 0.0
          %587 = vmatprep.subr.mxu0 0.0
          %588 = vmatpush1.msra.mxu0 0.0
          %589 = vmatprep.subr.mxu0 0.0
          %590 = vmatpush1.msra.mxu0 0.0
          %591 = vmatprep.subr.mxu0 0.0
          %592 = vmatpush1.msra.mxu0 0.0
          %593 = vmatprep.subr.mxu0 0.0
          %594 = vmatpush1.msra.mxu0 0.0
          %595 = vmatprep.subr.mxu0 0.0
          %596 = vmatpush1.msra.mxu0 0.0
          %597 = vmatprep.subr.mxu0 0.0
          %598 = vmatpush1.msra.mxu0 0.0
          %599 = vmatprep.mubr.f32.mxu0 0.0
          %600 = vmatmul.mubr.f32.gmra.mrb[0].mxu0 %v530
          %v601 = vpop.f32.mrb[0].mxu0
          %v602 = vadd.f32 %v526, %v601
          %v603 = vpop.f32.mrb[0].mxu0
          %604 = vmatprep.mubr.f32.mxu0 0.0
          %605 = vmatmul.mubr.f32.gmra.mrb[0].mxu0 %v533
          %v606 = vpop.f32.mrb[0].mxu0
          %v607 = vadd.f32 %v526, %v606
          %v608 = vpop.f32.mrb[0].mxu0
          %609 = vdwg.mxu0
          %v610 = vmax.f32 %v602, 0.0
          %v611 = vmax.f32 %v607, 0.0
          %614 = vrot.lane.b32.xlu0 %v494, 32
          %v615 = vpop.permute.xlu0 %614
          %616 = vrot.lane.b32.xlu0 %v495, 32
          %v617 = vpop.permute.xlu0 %616
          %622 = vrot.lane.b32.xlu0 %v496, 64
          %v623 = vpop.permute.xlu0 %622
          %624 = vrot.lane.b32.xlu0 %v497, 64
          %v625 = vpop.permute.xlu0 %624
          %v628 = vsel %vm510, %v610, %v615
          %v629 = vsel %vm510, %v611, %v617
          %v630 = vsel %vm528, %v628, %v623
          %v631 = vsel %vm528, %v629, %v625
          %v632 = vld [vmem:[#allocation12] sm:$0xff]
          %v633 = vld [vmem:[#allocation12 + $0x8] sm:$0xff]
          %v634 = vld [vmem:[#allocation12 + $0x10] sm:$0xff]
          %v635 = vld [vmem:[#allocation12 + $0x18] sm:$0xff]
          %v636 = vld [vmem:[#allocation12 + $0x20] sm:$0xff]
          %v637 = vld [vmem:[#allocation12 + $0x28] sm:$0xff]
          %v638 = vld [vmem:[#allocation12 + $0x30] sm:$0xff]
          %v639 = vld [vmem:[#allocation12 + $0x38] sm:$0xff]
          %v640 = vld [vmem:[#allocation12 + $0x40] sm:$0xff]
          %v641 = vld [vmem:[#allocation12 + $0x48] sm:$0xff]
          %v642 = vld [vmem:[#allocation12 + $0x50] sm:$0xff]
          %v643 = vld [vmem:[#allocation12 + $0x58] sm:$0xff]
          %v644 = vld [vmem:[#allocation14] sm:$0x1]
          %v646 = vlaneseq
          %v647 = vshrl.u32 %v646, 7
          %v648 = vsub.s32 0, %v647
          %v649 = vrot.slane %v644, %v648
          %vm651 = vcmask 785408
          %v653 = vsel %vm651, %v630, 0
          %v656 = vsel %vm651, %v631, 0
          %658 = vmatprep.subr.mxu0 0.0
          %659 = vmatpush1.msra.mxu0 %v632
          %660 = vmatprep.subr.mxu0 0.0
          %661 = vmatpush1.msra.mxu0 %v633
          %662 = vmatprep.subr.mxu0 0.0
          %663 = vmatpush1.msra.mxu0 %v634
          %664 = vmatprep.subr.mxu0 0.0
          %665 = vmatpush1.msra.mxu0 %v635
          %666 = vmatprep.subr.mxu0 0.0
          %667 = vmatpush1.msra.mxu0 %v636
          %668 = vmatprep.subr.mxu0 0.0
          %669 = vmatpush1.msra.mxu0 %v637
          %670 = vmatprep.subr.mxu0 0.0
          %671 = vmatpush1.msra.mxu0 %v638
          %672 = vmatprep.subr.mxu0 0.0
          %673 = vmatpush1.msra.mxu0 %v639
          %674 = vmatprep.subr.mxu0 0.0
          %675 = vmatpush1.msra.mxu0 %v640
          %676 = vmatprep.subr.mxu0 0.0
          %677 = vmatpush1.msra.mxu0 %v641
          %678 = vmatprep.subr.mxu0 0.0
          %679 = vmatpush1.msra.mxu0 %v642
          %680 = vmatprep.subr.mxu0 0.0
          %681 = vmatpush1.msra.mxu0 %v643
          %682 = vmatprep.subr.mxu0 0.0
          %683 = vmatpush1.msra.mxu0 0.0
          %684 = vmatprep.subr.mxu0 0.0
          %685 = vmatpush1.msra.mxu0 0.0
          %686 = vmatprep.subr.mxu0 0.0
          %687 = vmatpush1.msra.mxu0 0.0
          %688 = vmatprep.subr.mxu0 0.0
          %689 = vmatpush1.msra.mxu0 0.0
          %690 = vmatprep.subr.mxu0 0.0
          %691 = vmatpush1.msra.mxu0 0.0
          %692 = vmatprep.subr.mxu0 0.0
          %693 = vmatpush1.msra.mxu0 0.0
          %694 = vmatprep.subr.mxu0 0.0
          %695 = vmatpush1.msra.mxu0 0.0
          %696 = vmatprep.subr.mxu0 0.0
          %697 = vmatpush1.msra.mxu0 0.0
          %698 = vmatprep.subr.mxu0 0.0
          %699 = vmatpush1.msra.mxu0 0.0
          %700 = vmatprep.subr.mxu0 0.0
          %701 = vmatpush1.msra.mxu0 0.0
          %702 = vmatprep.subr.mxu0 0.0
          %703 = vmatpush1.msra.mxu0 0.0
          %704 = vmatprep.subr.mxu0 0.0
          %705 = vmatpush1.msra.mxu0 0.0
          %706 = vmatprep.subr.mxu0 0.0
          %707 = vmatpush1.msra.mxu0 0.0
          %708 = vmatprep.subr.mxu0 0.0
          %709 = vmatpush1.msra.mxu0 0.0
          %710 = vmatprep.subr.mxu0 0.0
          %711 = vmatpush1.msra.mxu0 0.0
          %712 = vmatprep.subr.mxu0 0.0
          %713 = vmatpush1.msra.mxu0 0.0
          %714 = vmatprep.subr.mxu0 0.0
          %715 = vmatpush1.msra.mxu0 0.0
          %716 = vmatprep.subr.mxu0 0.0
          %717 = vmatpush1.msra.mxu0 0.0
          %718 = vmatprep.subr.mxu0 0.0
          %719 = vmatpush1.msra.mxu0 0.0
          %720 = vmatprep.subr.mxu0 0.0
          %721 = vmatpush1.msra.mxu0 0.0
          %722 = vmatprep.mubr.f32.mxu0 0.0
          %723 = vmatmul.mubr.f32.gmra.mrb[0].mxu0 %v653
          %v724 = vpop.f32.mrb[0].mxu0
          %v725 = vadd.f32 %v649, %v724
          %v726 = vpop.f32.mrb[0].mxu0
          %727 = vmatprep.mubr.f32.mxu0 0.0
          %728 = vmatmul.mubr.f32.gmra.mrb[0].mxu0 %v656
          %v729 = vpop.f32.mrb[0].mxu0
          %v730 = vadd.f32 %v649, %v729
          %v731 = vpop.f32.mrb[0].mxu0
          %732 = vdwg.mxu0
          %v733 = vld [vmem:[#allocation15] sm:$0xff]
          %v734 = vld [vmem:[#allocation15 + $0x8] sm:$0xff]
          %v735 = vld [vmem:[#allocation15 + $0x10] sm:$0xff]
          %v736 = vld [vmem:[#allocation15 + $0x18] sm:$0xff]
          %v737 = vld [vmem:[#allocation17] sm:$0x1]
          %v739 = vlaneseq
          %v740 = vshrl.u32 %v739, 7
          %v741 = vsub.s32 0, %v740
          %v742 = vrot.slane %v737, %v741
          %v745 = vsel %vm510, %v725, 0
          %v748 = vsel %vm510, %v730, 0
          %750 = vmatprep.subr.mxu0 0.0
          %751 = vmatpush1.msra.mxu0 %v733
          %752 = vmatprep.subr.mxu0 0.0
          %753 = vmatpush1.msra.mxu0 %v734
          %754 = vmatprep.subr.mxu0 0.0
          %755 = vmatpush1.msra.mxu0 %v735
          %756 = vmatprep.subr.mxu0 0.0
          %757 = vmatpush1.msra.mxu0 %v736
          %758 = vmatprep.subr.mxu0 0.0
          %759 = vmatpush1.msra.mxu0 0.0
          %760 = vmatprep.subr.mxu0 0.0
          %761 = vmatpush1.msra.mxu0 0.0
          %762 = vmatprep.subr.mxu0 0.0
          %763 = vmatpush1.msra.mxu0 0.0
          %764 = vmatprep.subr.mxu0 0.0
          %765 = vmatpush1.msra.mxu0 0.0
          %766 = vmatprep.subr.mxu0 0.0
          %767 = vmatpush1.msra.mxu0 0.0
          %768 = vmatprep.subr.mxu0 0.0
          %769 = vmatpush1.msra.mxu0 0.0
          %770 = vmatprep.subr.mxu0 0.0
          %771 = vmatpush1.msra.mxu0 0.0
          %772 = vmatprep.subr.mxu0 0.0
          %773 = vmatpush1.msra.mxu0 0.0
          %774 = vmatprep.subr.mxu0 0.0
          %775 = vmatpush1.msra.mxu0 0.0
          %776 = vmatprep.subr.mxu0 0.0
          %777 = vmatpush1.msra.mxu0 0.0
          %778 = vmatprep.subr.mxu0 0.0
          %779 = vmatpush1.msra.mxu0 0.0
          %780 = vmatprep.subr.mxu0 0.0
          %781 = vmatpush1.msra.mxu0 0.0
          %782 = vmatprep.subr.mxu0 0.0
          %783 = vmatpush1.msra.mxu0 0.0
          %784 = vmatprep.subr.mxu0 0.0
          %785 = vmatpush1.msra.mxu0 0.0
          %786 = vmatprep.subr.mxu0 0.0
          %787 = vmatpush1.msra.mxu0 0.0
          %788 = vmatprep.subr.mxu0 0.0
          %789 = vmatpush1.msra.mxu0 0.0
          %790 = vmatprep.subr.mxu0 0.0
          %791 = vmatpush1.msra.mxu0 0.0
          %792 = vmatprep.subr.mxu0 0.0
          %793 = vmatpush1.msra.mxu0 0.0
          %794 = vmatprep.subr.mxu0 0.0
          %795 = vmatpush1.msra.mxu0 0.0
          %796 = vmatprep.subr.mxu0 0.0
          %797 = vmatpush1.msra.mxu0 0.0
          %798 = vmatprep.subr.mxu0 0.0
          %799 = vmatpush1.msra.mxu0 0.0
          %800 = vmatprep.subr.mxu0 0.0
          %801 = vmatpush1.msra.mxu0 0.0
          %802 = vmatprep.subr.mxu0 0.0
          %803 = vmatpush1.msra.mxu0 0.0
          %804 = vmatprep.subr.mxu0 0.0
          %805 = vmatpush1.msra.mxu0 0.0
          %806 = vmatprep.subr.mxu0 0.0
          %807 = vmatpush1.msra.mxu0 0.0
          %808 = vmatprep.subr.mxu0 0.0
          %809 = vmatpush1.msra.mxu0 0.0
          %810 = vmatprep.subr.mxu0 0.0
          %811 = vmatpush1.msra.mxu0 0.0
          %812 = vmatprep.subr.mxu0 0.0
          %813 = vmatpush1.msra.mxu0 0.0
          %814 = vmatprep.mubr.f32.mxu0 0.0
          %815 = vmatmul.mubr.f32.gmra.mrb[0].mxu0 %v745
          %v816 = vpop.f32.mrb[0].mxu0
          %v817 = vadd.f32 %v742, %v816
          %v818 = vpop.f32.mrb[0].mxu0
          %819 = vmatprep.mubr.f32.mxu0 0.0
          %820 = vmatmul.mubr.f32.gmra.mrb[0].mxu0 %v748
          %v821 = vpop.f32.mrb[0].mxu0
          %v822 = vadd.f32 %v742, %v821
          %v823 = vpop.f32.mrb[0].mxu0
          %824 = vdwg.mxu0
          %825 = vst.msk [vmem:[%s407] sm:$0xff] %vm510, %v817
          %826 = vst.msk [vmem:[%s407 + $0x8] sm:$0xff] %vm510, %v822
        $region95: #{vnn_local_pool_pointnet.6} parent=47 // pred_fallthru
          _
        %s827 = sand.u32 %s215, 1
        %s828 = scalar_lea.sflag [#allocation8], %s827
        %s829 = sand.u32 %s215, 1
        %s830 = smul.addr %s829, 16
        %s831 = scalar_lea.vmem [#allocation18], %s830
        // Predicated region
        $region103: #{vnn_local_pool_pointnet.6} parent=47 // pred_check
          %p832 = pneg %p225
        $region104: #{vnn_local_pool_pointnet.6} parent=47 // pred_check_branch
          %834 = sbr.rel (%p832) target = $region106
        $region105: #{vnn_local_pool_pointnet.6} parent=47 // pred_region
          %s835 = smul.u32 2, %s39
          %s837 = ssub.s32 256, 256
          %838 = vsyncadd %s828, %s837
          %s839 = smul.addr %s37, 2
          %s840 = sadd.s32 %s835, %s839
          %s841 = smul.addr %s840, 128
          %s842 = scalar_lea.hbm %s8, %s841
          %s843 = sshll.u32 %s831, 4
          %s844 = int_to_ptr.vmem [resolvable:$true] %s843
          %849 = dma.vmem_to_hbm [thread:$0]  %s844, 256, %s842, %s828, 128, 128, 8
        $region106: #{vnn_local_pool_pointnet.6} parent=47 // pred_fallthru
          _
      $region48: #{vnn_local_pool_pointnet.6} parent=5 // pred_fallthru
        _
      %p850 = scmp.le.s32.totalorder 2, %s27
      // Predicated region
      $region107: #{vnn_local_pool_pointnet.6} parent=5 // pred_check
        %p851 = pneg %p850
      $region108: #{vnn_local_pool_pointnet.6} parent=5 // pred_check_branch
        %853 = sbr.rel (%p851) target = $region110
      $region109: #{vnn_local_pool_pointnet.6} parent=5 // pred_region
        %s854 = ssub.s32 %s27, 2
        // Predicated region
        $region111: #{vnn_local_pool_pointnet.6} parent=109 // pred_check
          %p855 = pneg %p231
        $region112: #{vnn_local_pool_pointnet.6} parent=109 // pred_check_branch
          %857 = sbr.rel (%p855) target = $region114
        $region113: #{vnn_local_pool_pointnet.6} parent=109 // pred_region
          %s858 = sand.u32 %s216, 1
          %s859 = scalar_lea.sflag [#allocation8], %s858
          %s860 = sand.u32 %s216, 1
          %s861 = smul.addr %s860, 16
          %s862 = scalar_lea.vmem [#allocation18], %s861
          %863 = dma.done %s859, 256
        $region114: #{vnn_local_pool_pointnet.6} parent=109 // pred_fallthru
          _
      $region110: #{vnn_local_pool_pointnet.6} parent=5 // pred_fallthru
        _
    $region6: #{vnn_local_pool_pointnet.6} parent=1 // loop_footer
      %s31 = sadd.s32 1, %s27
    $region7: #{vnn_local_pool_pointnet.6} parent=1 // loop_footer_branch
      %26 = sbr.rel target = $region3
    $region8: #{vnn_local_pool_pointnet.6} parent=1 // loop_exit
      _
    %864 = vsyncpa [#allocation7], 1
    %s865 = scalar_lea.sflag [#allocation7], 1
    %866 = vsyncpa %s865, 1
    %867 = vsyncpa [#allocation10], 1
    %868 = vsyncpa [#allocation13], 1
    %869 = vsyncpa [#allocation16], 1
    %870 = vsyncpa [#allocation8], 1
    %s871 = scalar_lea.sflag [#allocation8], 1
    %872 = vsyncpa %s871, 1

</llo_original>
